<compile_context>
chip_gen: v6e
topology: v6e:2x2x1
jax: 0.10.0
libtpu: 0.0.40
codegen_flags: <defaults>
</compile_context>

<pallas_src>
import jax
import jax.numpy as jnp
from jax.experimental import pallas as pl
from jax.experimental.pallas import tpu as pltpu

# ----------------------------- model sizes --------------------------------------------
B = 2          # real batch
B_PAD = 8      # batch padded to one full sublane tile (f32)
NL = 8         # number_labels
H = 32         # embedding width
HL = 32        # LSTM hidden size
COND = 32      # conditioning_size
REP = 16       # representation_size
BOX = 4        # (x, y, w, h)
LANES = 128    # lane width of all packed slabs
T_STEPS = 8    # autoregressive steps in the demo

# ---- packed INPUT lane layout (per step, per batch row) -------------------------------
X_OFF = 0      # current gt box            (4)
BSF_OFF = 4    # boxes_so_far              (4)
LS_OFF = 8     # label_set                 (8)
CL_OFF = 16    # current_label             (8)
LSF_OFF = 24   # labels_so_far             (8)
EPS_OFF = 32   # standard-normal eps       (16)
# 48:128 zero

# ---- packed OUTPUT lane layout ---------------------------------------------------------
O_Z = 0        # z                         (16)
O_BOX = 16     # boxes                     (4)
O_KL = 20      # kl                        (1)
OUT_PAD = LANES - (REP + BOX + 1)          # 107 zero lanes

# ---- weight-slab row layout (all offsets multiples of 8) --------------------------------
# emb lane layout produced by R_EMB: ls_e 0:32 | cl_e 32:64 | bx_e 64:96 | hist_e 96:128
R_EMB = 0      # (128,128) fused ls/cl/bx/hist embedding (rows = packed-input lanes)
R_IH = 128     # (32,128)  LSTM input->gates  [i|f|g|o]
R_HH = 160     # (32,128)  LSTM hidden->gates [i|f|g|o]
R_CE = 192     # (128,64)  emb -> [cond contribution (0:32) | enc-hidden contribution (32:64)]
R_COH = 320    # (32, 32)  h    -> cond contribution
R_ENC = 352    # (32, 32)  cond -> enc-hidden contribution
R_MULV = 384   # (32, 32)  enc_h -> [mu (0:16) | log_var (16:32)]
R_D1Z = 416    # (16, 32)  z    -> decoder hidden
R_D1C = 432    # (32, 32)  cond -> decoder hidden
R_D2 = 464     # (32,  4)  decoder hidden -> boxes
R_BIAS = 496   # 8 bias rows
TOTAL_ROWS = 504

# bias rows inside the bias region
BI_EMB = 0     # [b_ls | b_cl | b_bx | b_hi]   (128)
BI_GATE = 1    # b_ih + b_hh                   (128)
BI_CO = 2      # (32)
BI_EN = 3      # (32)
BI_MULV = 4    # [b_mu | b_lv]                 (32)
BI_D1 = 5      # (32)
BI_D2 = 6      # (4)


# ----------------------------- fused sequence kernel -----------------------------------
def _vae_seq_kernel(inp_ref, state0_ref, w_ref, out_ref, state_out_ref):
    f32 = jnp.float32
    relu = lambda v: jnp.maximum(v, 0.0)
    sig = jax.nn.sigmoid

    n_rows = inp_ref.shape[0]              # T * B_PAD (static)
    n_steps = n_rows // B_PAD

    def wrow(r0, rows, cols=LANES):        # load a weight block (static slice -> value)
        return w_ref[r0:r0 + rows, 0:cols]

    def brow(j, cols=LANES):               # (1, cols) bias row, broadcasts over batch
        return w_ref[R_BIAS + j:R_BIAS + j + 1, 0:cols]

    inp = inp_ref[...]                     # (T*B_PAD, 128) packed inputs, resident

    # ---- batched fused embedding over ALL steps: [ls_e | cl_e | bx_e | hist_e] ----------
    # NOTE: correctness relies on rows EPS_OFF:EPS_OFF+REP of R_EMB being exactly zero in
    # pack_weight_slab (eps lanes must not contaminate the embeddings).
    emb = relu(jnp.dot(inp, wrow(R_EMB, LANES), preferred_element_type=f32)
               + brow(BI_EMB))                                     # (T*B_PAD, 128)

    # ---- serial LSTM recurrence (only 2 fused MXU issues per step); weights hoisted -----
    w_ih = wrow(R_IH, H)                   # (32, 128)
    w_hh = wrow(R_HH, HL)                  # (32, 128)
    b_gate = brow(BI_GATE)                 # (1, 128)
    h = state0_ref[:, 0:HL]                # (B_PAD, 32)
    c = state0_ref[:, HL:2 * HL]           # (B_PAD, 32)
    hs = []
    for t in range(n_steps):               # static unroll; tiny per-step tensors
        hist_t = emb[t * B_PAD:(t + 1) * B_PAD, 3 * H:4 * H]       # (B_PAD, 32)
        gates = (jnp.dot(hist_t, w_ih, preferred_element_type=f32)
                 + jnp.dot(h, w_hh, preferred_element_type=f32)
                 + b_gate)                                          # (B_PAD, 128) = [i|f|g|o]
        i_g = sig(gates[:, 0:HL])
        f_g = sig(gates[:, HL:2 * HL])
        g_g = jnp.tanh(gates[:, 2 * HL:3 * HL])
        o_g = sig(gates[:, 3 * HL:4 * HL])
        c = f_g * c + i_g * g_g
        h = o_g * jnp.tanh(c)
        hs.append(h)
    h_all = jnp.concatenate(hs, axis=0)                             # (T*B_PAD, 32)
    state_out_ref[...] = jnp.concatenate([h, c], axis=-1)           # final (h | c)

    # ---- batched encoder heads over ALL steps -------------------------------------------
    ce = jnp.dot(emb, wrow(R_CE, LANES, 2 * COND),
                 preferred_element_type=f32)                        # (T*B_PAD, 64)
    cond = relu(ce[:, 0:COND]
                + jnp.dot(h_all, wrow(R_COH, HL, COND), preferred_element_type=f32)
                + brow(BI_CO, COND))                                # (T*B_PAD, 32)
    enc_h = relu(jnp.dot(cond, wrow(R_ENC, COND, H), preferred_element_type=f32)
                 + ce[:, COND:2 * COND]
                 + brow(BI_EN, H))                                  # (T*B_PAD, 32)
    mulv = (jnp.dot(enc_h, wrow(R_MULV, H, 2 * REP), preferred_element_type=f32)
            + brow(BI_MULV, 2 * REP))                               # (T*B_PAD, 32) = [mu|lv]
    mu = mulv[:, 0:REP]
    lv = mulv[:, REP:2 * REP]

    # ---- reparameterisation + KL (single exp; std = sqrt(exp(lv))) ----------------------
    eps = inp[:, EPS_OFF:EPS_OFF + REP]
    e = jnp.exp(lv)
    z = mu + eps * jnp.sqrt(e)
    kl = -0.5 * jnp.sum(1.0 + lv - mu * mu - e, axis=1, keepdims=True)   # (T*B_PAD, 1)

    # ---- batched decoder -----------------------------------------------------------------
    dec_h = relu(jnp.dot(z, wrow(R_D1Z, REP, H), preferred_element_type=f32)
                 + jnp.dot(cond, wrow(R_D1C, COND, H), preferred_element_type=f32)
                 + brow(BI_D1, H))
    boxes = sig(jnp.dot(dec_h, wrow(R_D2, H, BOX), preferred_element_type=f32)
                + brow(BI_D2, BOX))

    # ---- single lane-dense packed output store (once for the whole sequence) ------------
    out_ref[...] = jnp.concatenate(
        [z, boxes, kl, jnp.zeros((n_rows, OUT_PAD), f32)], axis=-1)      # (T*B_PAD, 128)


# ----------------------------- parameters ----------------------------------------------
def init_params(key):
    def lin_init(k, fan_in, fan_out):
        k1, k2 = jax.random.split(k)
        w = jax.random.normal(k1, (fan_in, fan_out), jnp.float32) * (fan_in ** -0.5)
        b = 0.01 * jax.random.normal(k2, (fan_out,), jnp.float32)
        return w, b

    layers = [('ls', NL, H), ('cl', NL, H), ('bx', BOX, H), ('hi', NL + BOX, H),
              ('ih', H, 4 * HL), ('hh', HL, 4 * HL), ('co', 2 * H + HL, COND),
              ('en', COND + H, H), ('mu', H, REP), ('lv', H, REP),
              ('d1', REP + COND, H), ('d2', H, BOX)]
    keys = jax.random.split(key, len(layers))
    p = {}
    for k, (nm, fi, fo) in zip(keys, layers):
        w, b = lin_init(k, fi, fo)
        p['w_' + nm], p['b_' + nm] = w, b
    return p


def pack_weight_slab(p):
    """Pack all weights/biases into one (TOTAL_ROWS, 128) f32 slab (zero-row padded)."""
    s = jnp.zeros((TOTAL_ROWS, LANES), jnp.float32)
    # fused embedding: rows = packed-input lanes, cols = emb lanes (ls|cl|bx|hist)
    s = s.at[R_EMB + LS_OFF:R_EMB + LS_OFF + NL, 0:H].set(p['w_ls'])
    s = s.at[R_EMB + CL_OFF:R_EMB + CL_OFF + NL, H:2 * H].set(p['w_cl'])
    s = s.at[R_EMB + X_OFF:R_EMB + X_OFF + BOX, 2 * H:3 * H].set(p['w_bx'])
    # history embedding folded into emb lanes 96:128 (w_hi rows 0:8 = labels_so_far, 8:12 = boxes_so_far)
    s = s.at[R_EMB + LSF_OFF:R_EMB + LSF_OFF + NL, 3 * H:4 * H].set(p['w_hi'][0:NL])
    s = s.at[R_EMB + BSF_OFF:R_EMB + BSF_OFF + BOX, 3 * H:4 * H].set(p['w_hi'][NL:NL + BOX])
    # IMPORTANT: rows R_EMB+EPS_OFF : R_EMB+EPS_OFF+REP stay zero (eps must not feed emb).
    # fused LSTM gate blocks (128-wide, order i|f|g|o)
    s = s.at[R_IH:R_IH + H, 0:4 * HL].set(p['w_ih'])
    s = s.at[R_HH:R_HH + HL, 0:4 * HL].set(p['w_hh'])
    # emb -> [cond contribution | enc-hidden contribution]
    s = s.at[R_CE + 0:R_CE + H, 0:COND].set(p['w_co'][0:H])                 # ls_e part
    s = s.at[R_CE + H:R_CE + 2 * H, 0:COND].set(p['w_co'][H:2 * H])         # cl_e part
    s = s.at[R_CE + 2 * H:R_CE + 3 * H, COND:2 * COND].set(p['w_en'][COND:COND + H])  # bx_e part
    # h -> cond ; cond -> enc-hidden
    s = s.at[R_COH:R_COH + HL, 0:COND].set(p['w_co'][2 * H:2 * H + HL])
    s = s.at[R_ENC:R_ENC + COND, 0:H].set(p['w_en'][0:COND])
    # enc_h -> [mu | lv]
    s = s.at[R_MULV:R_MULV + H, 0:REP].set(p['w_mu'])
    s = s.at[R_MULV:R_MULV + H, REP:2 * REP].set(p['w_lv'])
    # decoder: original input [z | cond]
    s = s.at[R_D1Z:R_D1Z + REP, 0:H].set(p['w_d1'][0:REP])
    s = s.at[R_D1C:R_D1C + COND, 0:H].set(p['w_d1'][REP:REP + COND])
    s = s.at[R_D2:R_D2 + H, 0:BOX].set(p['w_d2'])
    # biases
    s = s.at[R_BIAS + BI_EMB, 0:H].set(p['b_ls'])
    s = s.at[R_BIAS + BI_EMB, H:2 * H].set(p['b_cl'])
    s = s.at[R_BIAS + BI_EMB, 2 * H:3 * H].set(p['b_bx'])
    s = s.at[R_BIAS + BI_EMB, 3 * H:4 * H].set(p['b_hi'])
    s = s.at[R_BIAS + BI_GATE, 0:4 * HL].set(p['b_ih'] + p['b_hh'])
    s = s.at[R_BIAS + BI_CO, 0:COND].set(p['b_co'])
    s = s.at[R_BIAS + BI_EN, 0:H].set(p['b_en'])
    s = s.at[R_BIAS + BI_MULV, 0:REP].set(p['b_mu'])
    s = s.at[R_BIAS + BI_MULV, REP:2 * REP].set(p['b_lv'])
    s = s.at[R_BIAS + BI_D1, 0:H].set(p['b_d1'])
    s = s.at[R_BIAS + BI_D2, 0:BOX].set(p['b_d2'])
    return s


def pack_inputs(x, label_set, current_label, labels_so_far, boxes_so_far, eps):
    """Pack per-step activations into one lane-dense (T*B_PAD, 128) slab (batch padded)."""
    t, b = x.shape[:2]
    inp = jnp.zeros((t, B_PAD, LANES), jnp.float32)
    inp = inp.at[:, :b, X_OFF:X_OFF + BOX].set(x)
    inp = inp.at[:, :b, BSF_OFF:BSF_OFF + BOX].set(boxes_so_far)
    inp = inp.at[:, :b, LS_OFF:LS_OFF + NL].set(label_set)
    inp = inp.at[:, :b, CL_OFF:CL_OFF + NL].set(current_label)
    inp = inp.at[:, :b, LSF_OFF:LSF_OFF + NL].set(labels_so_far)
    inp = inp.at[:, :b, EPS_OFF:EPS_OFF + REP].set(eps)
    return inp.reshape(t * B_PAD, LANES)


def pack_state(h0, c0):
    b = h0.shape[0]
    st = jnp.zeros((B_PAD, 2 * HL), jnp.float32)
    st = st.at[:b, 0:HL].set(h0)
    st = st.at[:b, HL:2 * HL].set(c0)
    return st


# ----------------------------- wrapper (whole autoregressive sequence) ------------------
def forward_sequence(w_slab, inp_packed, state_init):
    tb = inp_packed.shape[0]
    t = tb // B_PAD
    out, state_out = pl.pallas_call(
        _vae_seq_kernel,
        out_shape=(jax.ShapeDtypeStruct((tb, LANES), jnp.float32),
                   jax.ShapeDtypeStruct((B_PAD, 2 * HL), jnp.float32)),
        grid=(1,),
        in_specs=[
            pl.BlockSpec((tb, LANES), lambda i: (0, 0)),            # packed inputs (resident)
            pl.BlockSpec((B_PAD, 2 * HL), lambda i: (0, 0)),        # initial (h | c)
            pl.BlockSpec((TOTAL_ROWS, LANES), lambda i: (0, 0)),    # weight slab (resident)
        ],
        out_specs=(pl.BlockSpec((tb, LANES), lambda i: (0, 0)),     # packed [z|boxes|kl]
                   pl.BlockSpec((B_PAD, 2 * HL), lambda i: (0, 0))),  # final (h | c)
        compiler_params=pltpu.CompilerParams(dimension_semantics=("arbitrary",)),
    )(inp_packed, state_init, w_slab)

    out3 = out.reshape(t, B_PAD, LANES)[:, :B]     # drop padded batch rows
    z = out3[..., O_Z:O_Z + REP]
    boxes = out3[..., O_BOX:O_BOX + BOX]
    kl = out3[..., O_KL]
    h = state_out[:B, 0:HL]
    c = state_out[:B, HL:2 * HL]
    return boxes, kl, z, (h, c)


# ----------------------------- pure-JAX reference (for validation) ----------------------
def reference_forward(p, x, label_set, current_label, lsf, bsf, eps, h0, c0):
    hp = jax.lax.Precision.HIGHEST
    relu = lambda v: jnp.maximum(v, 0.0)
    sig = jax.nn.sigmoid
    lin = lambda a, w, b: jnp.dot(a, w, precision=hp) + b
    h, c = h0, c0
    all_boxes, all_kl, all_z = [], [], []
    for t in range(x.shape[0]):
        ls_e = relu(lin(label_set[t], p['w_ls'], p['b_ls']))
        cl_e = relu(lin(current_label[t], p['w_cl'], p['b_cl']))
        bx_e = relu(lin(x[t], p['w_bx'], p['b_bx']))
        hist_e = relu(lin(jnp.concatenate([lsf[t], bsf[t]], -1), p['w_hi'], p['b_hi']))
        gates = lin(hist_e, p['w_ih'], p['b_ih']) + lin(h, p['w_hh'], p['b_hh'])
        i = sig(gates[:, :HL]); f = sig(gates[:, HL:2 * HL])
        g = jnp.tanh(gates[:, 2 * HL:3 * HL]); o = sig(gates[:, 3 * HL:])
        c = f * c + i * g
        h = o * jnp.tanh(c)
        cond = relu(lin(jnp.concatenate([ls_e, cl_e, h], -1), p['w_co'], p['b_co']))
        enc_h = relu(lin(jnp.concatenate([cond, bx_e], -1), p['w_en'], p['b_en']))
        mu = lin(enc_h, p['w_mu'], p['b_mu'])
        lv = lin(enc_h, p['w_lv'], p['b_lv'])
        z = mu + eps[t] * jnp.exp(0.5 * lv)
        kl = -0.5 * jnp.sum(1.0 + lv - mu ** 2 - jnp.exp(lv), axis=1)
        dec_h = relu(lin(jnp.concatenate([z, cond], -1), p['w_d1'], p['b_d1']))
        boxes = sig(lin(dec_h, p['w_d2'], p['b_d2']))
        all_boxes.append(boxes); all_kl.append(kl); all_z.append(z)
    return jnp.stack(all_boxes), jnp.stack(all_kl), jnp.stack(all_z), (h, c)


# ----------------------------- demo ------------------------------------------------------
if __name__ == "__main__":
    root = jax.random.PRNGKey(0)
    kp, kx, kls, kcl, klsf, kbsf, keps, kh, kc = jax.random.split(root, 9)

    params = init_params(kp)
    w_slab = pack_weight_slab(params)
    # sanity: eps rows of the fused embedding block must stay zero
    assert bool(jnp.all(w_slab[R_EMB + EPS_OFF:R_EMB + EPS_OFF + REP] == 0.0))

    T = T_STEPS
    x = jax.random.uniform(kx, (T, B, BOX), jnp.float32)                        # gt boxes
    label_set = (jax.random.uniform(kls, (T, B, NL)) > 0.5).astype(jnp.float32)
    current_label = jax.nn.one_hot(jax.random.randint(kcl, (T, B), 0, NL), NL, dtype=jnp.float32)
    labels_so_far = jax.nn.one_hot(jax.random.randint(klsf, (T, B), 0, NL), NL, dtype=jnp.float32)
    boxes_so_far = jax.random.uniform(kbsf, (T, B, BOX), jnp.float32)
    eps = jax.random.normal(keps, (T, B, REP), jnp.float32)    # torch.randn drawn per step
    h0 = 0.1 * jax.random.normal(kh, (B, HL), jnp.float32)
    c0 = 0.1 * jax.random.normal(kc, (B, HL), jnp.float32)

    inp_packed = pack_inputs(x, label_set, current_label, labels_so_far, boxes_so_far, eps)
    state_init = pack_state(h0, c0)

    boxes, kl, z, (hT, cT) = jax.jit(forward_sequence)(w_slab, inp_packed, state_init)
    jax.block_until_ready((boxes, kl, z, hT, cT))

    # validate against the plain-JAX reference of the module semantics
    r_boxes, r_kl, r_z, (r_h, r_c) = reference_forward(
        params, x, label_set, current_label, labels_so_far, boxes_so_far, eps, h0, c0)

    def close(a, b, tol=2e-3):
        return bool(jnp.max(jnp.abs(a - b)) <= tol)

    assert boxes.shape == (T, B, BOX) and kl.shape == (T, B) and z.shape == (T, B, REP)
    assert hT.shape == (B, HL) and cT.shape == (B, HL)
    assert bool(jnp.all(jnp.isfinite(boxes))) and bool(jnp.all(jnp.isfinite(kl)))
    assert close(boxes, r_boxes) and close(kl, r_kl) and close(z, r_z)
    assert close(hT, r_h) and close(cT, r_c)

    print("KERNEL_OK")
</pallas_src>

<mosaic_0001>
module attributes {stable_mosaic.version = 11 : i64} {
  func.func @_vae_seq_kernel(%arg0: i32, %arg1: memref<64x128xf32, #tpu.memory_space<vmem>>, %arg2: memref<8x64xf32, #tpu.memory_space<vmem>>, %arg3: memref<504x128xf32, #tpu.memory_space<vmem>>, %arg4: memref<64x128xf32, #tpu.memory_space<vmem>>, %arg5: memref<8x64xf32, #tpu.memory_space<vmem>>) attributes {dimension_semantics = [#tpu.dimension_semantics<arbitrary>], iteration_bounds = array<i64: 1>, scalar_prefetch = 0 : i64, scratch_operands = 0 : i64, tpu.core_type = #tpu.core_type<tc>, window_params = [{pipeline_mode = #tpu.pipeline_mode<synchronous>, transform_indices = @transform_0, window_bounds = array<i64: 64, 128>}, {pipeline_mode = #tpu.pipeline_mode<synchronous>, transform_indices = @transform_1, window_bounds = array<i64: 8, 64>}, {pipeline_mode = #tpu.pipeline_mode<synchronous>, transform_indices = @transform_2, window_bounds = array<i64: 504, 128>}, {pipeline_mode = #tpu.pipeline_mode<synchronous>, transform_indices = @transform_3, window_bounds = array<i64: 64, 128>}, {pipeline_mode = #tpu.pipeline_mode<synchronous>, transform_indices = @transform_4, window_bounds = array<i64: 8, 64>}]} {
    %c0 = arith.constant 0 : index
    %c0_0 = arith.constant 0 : index
    %0 = vector.load %arg1[%c0, %c0_0] : memref<64x128xf32, #tpu.memory_space<vmem>>, vector<64x128xf32>
    %c0_1 = arith.constant 0 : index
    %c0_2 = arith.constant 0 : index
    %1 = vector.load %arg3[%c0_1, %c0_2] : memref<504x128xf32, #tpu.memory_space<vmem>>, vector<128x128xf32>
    %cst = arith.constant dense<0.000000e+00> : vector<64x128xf32>
    %2 = tpu.matmul %0, %1, %cst {dimension_numbers = #tpu.dot_dimension_numbers<[1], [0], [0], [1], [0, 0, 1, 1], [], []>} : vector<64x128xf32>, vector<128x128xf32>, vector<64x128xf32> -> vector<64x128xf32>
    %c496 = arith.constant 496 : index
    %c0_3 = arith.constant 0 : index
    %3 = vector.load %arg3[%c496, %c0_3] : memref<504x128xf32, #tpu.memory_space<vmem>>, vector<1x128xf32>
    %4 = vector.broadcast %3 : vector<1x128xf32> to vector<64x128xf32>
    %5 = arith.addf %2, %4 : vector<64x128xf32>
    %cst_4 = arith.constant 0.000000e+00 : f32
    %6 = vector.broadcast %cst_4 : f32 to vector<64x128xf32>
    %7 = arith.maximumf %5, %6 : vector<64x128xf32>
    %c128 = arith.constant 128 : index
    %c0_5 = arith.constant 0 : index
    %8 = vector.load %arg3[%c128, %c0_5] : memref<504x128xf32, #tpu.memory_space<vmem>>, vector<32x128xf32>
    %c160 = arith.constant 160 : index
    %c0_6 = arith.constant 0 : index
    %9 = vector.load %arg3[%c160, %c0_6] : memref<504x128xf32, #tpu.memory_space<vmem>>, vector<32x128xf32>
    %c497 = arith.constant 497 : index
    %c0_7 = arith.constant 0 : index
    %10 = vector.load %arg3[%c497, %c0_7] : memref<504x128xf32, #tpu.memory_space<vmem>>, vector<1x128xf32>
    %c0_8 = arith.constant 0 : index
    %c0_9 = arith.constant 0 : index
    %11 = vector.load %arg2[%c0_8, %c0_9] : memref<8x64xf32, #tpu.memory_space<vmem>>, vector<8x32xf32>
    %c0_10 = arith.constant 0 : index
    %c32 = arith.constant 32 : index
    %12 = vector.load %arg2[%c0_10, %c32] : memref<8x64xf32, #tpu.memory_space<vmem>>, vector<8x32xf32>
    %13 = vector.extract_strided_slice %7 {offsets = [0, 96], sizes = [8, 32], strides = [1, 1]} : vector<64x128xf32> to vector<8x32xf32>
    %cst_11 = arith.constant dense<0.000000e+00> : vector<8x128xf32>
    %14 = tpu.matmul %13, %8, %cst_11 {dimension_numbers = #tpu.dot_dimension_numbers<[1], [0], [0], [1], [0, 0, 1, 1], [], []>} : vector<8x32xf32>, vector<32x128xf32>, vector<8x128xf32> -> vector<8x128xf32>
    %cst_12 = arith.constant dense<0.000000e+00> : vector<8x128xf32>
    %15 = tpu.matmul %11, %9, %cst_12 {dimension_numbers = #tpu.dot_dimension_numbers<[1], [0], [0], [1], [0, 0, 1, 1], [], []>} : vector<8x32xf32>, vector<32x128xf32>, vector<8x128xf32> -> vector<8x128xf32>
    %16 = arith.addf %14, %15 : vector<8x128xf32>
    %17 = vector.broadcast %10 : vector<1x128xf32> to vector<8x128xf32>
    %18 = arith.addf %16, %17 : vector<8x128xf32>
    %19 = vector.extract_strided_slice %18 {offsets = [0, 0], sizes = [8, 32], strides = [1, 1]} : vector<8x128xf32> to vector<8x32xf32>
    %20 = arith.negf %19 : vector<8x32xf32>
    %21 = math.exp %20 : vector<8x32xf32>
    %cst_13 = arith.constant 1.000000e+00 : f32
    %22 = vector.broadcast %cst_13 : f32 to vector<8x32xf32>
    %23 = arith.addf %22, %21 : vector<8x32xf32>
    %24 = arith.divf %22, %23 : vector<8x32xf32>
    %25 = vector.extract_strided_slice %18 {offsets = [0, 32], sizes = [8, 32], strides = [1, 1]} : vector<8x128xf32> to vector<8x32xf32>
    %26 = arith.negf %25 : vector<8x32xf32>
    %27 = math.exp %26 : vector<8x32xf32>
    %cst_14 = arith.constant 1.000000e+00 : f32
    %28 = vector.broadcast %cst_14 : f32 to vector<8x32xf32>
    %29 = arith.addf %28, %27 : vector<8x32xf32>
    %30 = arith.divf %28, %29 : vector<8x32xf32>
    %31 = vector.extract_strided_slice %18 {offsets = [0, 64], sizes = [8, 32], strides = [1, 1]} : vector<8x128xf32> to vector<8x32xf32>
    %32 = math.tanh %31 : vector<8x32xf32>
    %33 = vector.extract_strided_slice %18 {offsets = [0, 96], sizes = [8, 32], strides = [1, 1]} : vector<8x128xf32> to vector<8x32xf32>
    %34 = arith.negf %33 : vector<8x32xf32>
    %35 = math.exp %34 : vector<8x32xf32>
    %cst_15 = arith.constant 1.000000e+00 : f32
    %36 = vector.broadcast %cst_15 : f32 to vector<8x32xf32>
    %37 = arith.addf %36, %35 : vector<8x32xf32>
    %38 = arith.divf %36, %37 : vector<8x32xf32>
    %39 = arith.mulf %30, %12 : vector<8x32xf32>
    %40 = arith.mulf %24, %32 : vector<8x32xf32>
    %41 = arith.addf %39, %40 : vector<8x32xf32>
    %42 = math.tanh %41 : vector<8x32xf32>
    %43 = arith.mulf %38, %42 : vector<8x32xf32>
    %44 = vector.extract_strided_slice %7 {offsets = [8, 96], sizes = [8, 32], strides = [1, 1]} : vector<64x128xf32> to vector<8x32xf32>
    %cst_16 = arith.constant dense<0.000000e+00> : vector<8x128xf32>
    %45 = tpu.matmul %44, %8, %cst_16 {dimension_numbers = #tpu.dot_dimension_numbers<[1], [0], [0], [1], [0, 0, 1, 1], [], []>} : vector<8x32xf32>, vector<32x128xf32>, vector<8x128xf32> -> vector<8x128xf32>
    %cst_17 = arith.constant dense<0.000000e+00> : vector<8x128xf32>
    %46 = tpu.matmul %43, %9, %cst_17 {dimension_numbers = #tpu.dot_dimension_numbers<[1], [0], [0], [1], [0, 0, 1, 1], [], []>} : vector<8x32xf32>, vector<32x128xf32>, vector<8x128xf32> -> vector<8x128xf32>
    %47 = arith.addf %45, %46 : vector<8x128xf32>
    %48 = vector.broadcast %10 : vector<1x128xf32> to vector<8x128xf32>
    %49 = arith.addf %47, %48 : vector<8x128xf32>
    %50 = vector.extract_strided_slice %49 {offsets = [0, 0], sizes = [8, 32], strides = [1, 1]} : vector<8x128xf32> to vector<8x32xf32>
    %51 = arith.negf %50 : vector<8x32xf32>
    %52 = math.exp %51 : vector<8x32xf32>
    %cst_18 = arith.constant 1.000000e+00 : f32
    %53 = vector.broadcast %cst_18 : f32 to vector<8x32xf32>
    %54 = arith.addf %53, %52 : vector<8x32xf32>
    %55 = arith.divf %53, %54 : vector<8x32xf32>
    %56 = vector.extract_strided_slice %49 {offsets = [0, 32], sizes = [8, 32], strides = [1, 1]} : vector<8x128xf32> to vector<8x32xf32>
    %57 = arith.negf %56 : vector<8x32xf32>
    %58 = math.exp %57 : vector<8x32xf32>
    %cst_19 = arith.constant 1.000000e+00 : f32
    %59 = vector.broadcast %cst_19 : f32 to vector<8x32xf32>
    %60 = arith.addf %59, %58 : vector<8x32xf32>
    %61 = arith.divf %59, %60 : vector<8x32xf32>
    %62 = vector.extract_strided_slice %49 {offsets = [0, 64], sizes = [8, 32], strides = [1, 1]} : vector<8x128xf32> to vector<8x32xf32>
    %63 = math.tanh %62 : vector<8x32xf32>
    %64 = vector.extract_strided_slice %49 {offsets = [0, 96], sizes = [8, 32], strides = [1, 1]} : vector<8x128xf32> to vector<8x32xf32>
    %65 = arith.negf %64 : vector<8x32xf32>
    %66 = math.exp %65 : vector<8x32xf32>
    %cst_20 = arith.constant 1.000000e+00 : f32
    %67 = vector.broadcast %cst_20 : f32 to vector<8x32xf32>
    %68 = arith.addf %67, %66 : vector<8x32xf32>
    %69 = arith.divf %67, %68 : vector<8x32xf32>
    %70 = arith.mulf %61, %41 : vector<8x32xf32>
    %71 = arith.mulf %55, %63 : vector<8x32xf32>
    %72 = arith.addf %70, %71 : vector<8x32xf32>
    %73 = math.tanh %72 : vector<8x32xf32>
    %74 = arith.mulf %69, %73 : vector<8x32xf32>
    %75 = vector.extract_strided_slice %7 {offsets = [16, 96], sizes = [8, 32], strides = [1, 1]} : vector<64x128xf32> to vector<8x32xf32>
    %cst_21 = arith.constant dense<0.000000e+00> : vector<8x128xf32>
    %76 = tpu.matmul %75, %8, %cst_21 {dimension_numbers = #tpu.dot_dimension_numbers<[1], [0], [0], [1], [0, 0, 1, 1], [], []>} : vector<8x32xf32>, vector<32x128xf32>, vector<8x128xf32> -> vector<8x128xf32>
    %cst_22 = arith.constant dense<0.000000e+00> : vector<8x128xf32>
    %77 = tpu.matmul %74, %9, %cst_22 {dimension_numbers = #tpu.dot_dimension_numbers<[1], [0], [0], [1], [0, 0, 1, 1], [], []>} : vector<8x32xf32>, vector<32x128xf32>, vector<8x128xf32> -> vector<8x128xf32>
    %78 = arith.addf %76, %77 : vector<8x128xf32>
    %79 = vector.broadcast %10 : vector<1x128xf32> to vector<8x128xf32>
    %80 = arith.addf %78, %79 : vector<8x128xf32>
    %81 = vector.extract_strided_slice %80 {offsets = [0, 0], sizes = [8, 32], strides = [1, 1]} : vector<8x128xf32> to vector<8x32xf32>
    %82 = arith.negf %81 : vector<8x32xf32>
    %83 = math.exp %82 : vector<8x32xf32>
    %cst_23 = arith.constant 1.000000e+00 : f32
    %84 = vector.broadcast %cst_23 : f32 to vector<8x32xf32>
    %85 = arith.addf %84, %83 : vector<8x32xf32>
    %86 = arith.divf %84, %85 : vector<8x32xf32>
    %87 = vector.extract_strided_slice %80 {offsets = [0, 32], sizes = [8, 32], strides = [1, 1]} : vector<8x128xf32> to vector<8x32xf32>
    %88 = arith.negf %87 : vector<8x32xf32>
    %89 = math.exp %88 : vector<8x32xf32>
    %cst_24 = arith.constant 1.000000e+00 : f32
    %90 = vector.broadcast %cst_24 : f32 to vector<8x32xf32>
    %91 = arith.addf %90, %89 : vector<8x32xf32>
    %92 = arith.divf %90, %91 : vector<8x32xf32>
    %93 = vector.extract_strided_slice %80 {offsets = [0, 64], sizes = [8, 32], strides = [1, 1]} : vector<8x128xf32> to vector<8x32xf32>
    %94 = math.tanh %93 : vector<8x32xf32>
    %95 = vector.extract_strided_slice %80 {offsets = [0, 96], sizes = [8, 32], strides = [1, 1]} : vector<8x128xf32> to vector<8x32xf32>
    %96 = arith.negf %95 : vector<8x32xf32>
    %97 = math.exp %96 : vector<8x32xf32>
    %cst_25 = arith.constant 1.000000e+00 : f32
    %98 = vector.broadcast %cst_25 : f32 to vector<8x32xf32>
    %99 = arith.addf %98, %97 : vector<8x32xf32>
    %100 = arith.divf %98, %99 : vector<8x32xf32>
    %101 = arith.mulf %92, %72 : vector<8x32xf32>
    %102 = arith.mulf %86, %94 : vector<8x32xf32>
    %103 = arith.addf %101, %102 : vector<8x32xf32>
    %104 = math.tanh %103 : vector<8x32xf32>
    %105 = arith.mulf %100, %104 : vector<8x32xf32>
    %106 = vector.extract_strided_slice %7 {offsets = [24, 96], sizes = [8, 32], strides = [1, 1]} : vector<64x128xf32> to vector<8x32xf32>
    %cst_26 = arith.constant dense<0.000000e+00> : vector<8x128xf32>
    %107 = tpu.matmul %106, %8, %cst_26 {dimension_numbers = #tpu.dot_dimension_numbers<[1], [0], [0], [1], [0, 0, 1, 1], [], []>} : vector<8x32xf32>, vector<32x128xf32>, vector<8x128xf32> -> vector<8x128xf32>
    %cst_27 = arith.constant dense<0.000000e+00> : vector<8x128xf32>
    %108 = tpu.matmul %105, %9, %cst_27 {dimension_numbers = #tpu.dot_dimension_numbers<[1], [0], [0], [1], [0, 0, 1, 1], [], []>} : vector<8x32xf32>, vector<32x128xf32>, vector<8x128xf32> -> vector<8x128xf32>
    %109 = arith.addf %107, %108 : vector<8x128xf32>
    %110 = vector.broadcast %10 : vector<1x128xf32> to vector<8x128xf32>
    %111 = arith.addf %109, %110 : vector<8x128xf32>
    %112 = vector.extract_strided_slice %111 {offsets = [0, 0], sizes = [8, 32], strides = [1, 1]} : vector<8x128xf32> to vector<8x32xf32>
    %113 = arith.negf %112 : vector<8x32xf32>
    %114 = math.exp %113 : vector<8x32xf32>
    %cst_28 = arith.constant 1.000000e+00 : f32
    %115 = vector.broadcast %cst_28 : f32 to vector<8x32xf32>
    %116 = arith.addf %115, %114 : vector<8x32xf32>
    %117 = arith.divf %115, %116 : vector<8x32xf32>
    %118 = vector.extract_strided_slice %111 {offsets = [0, 32], sizes = [8, 32], strides = [1, 1]} : vector<8x128xf32> to vector<8x32xf32>
    %119 = arith.negf %118 : vector<8x32xf32>
    %120 = math.exp %119 : vector<8x32xf32>
    %cst_29 = arith.constant 1.000000e+00 : f32
    %121 = vector.broadcast %cst_29 : f32 to vector<8x32xf32>
    %122 = arith.addf %121, %120 : vector<8x32xf32>
    %123 = arith.divf %121, %122 : vector<8x32xf32>
    %124 = vector.extract_strided_slice %111 {offsets = [0, 64], sizes = [8, 32], strides = [1, 1]} : vector<8x128xf32> to vector<8x32xf32>
    %125 = math.tanh %124 : vector<8x32xf32>
    %126 = vector.extract_strided_slice %111 {offsets = [0, 96], sizes = [8, 32], strides = [1, 1]} : vector<8x128xf32> to vector<8x32xf32>
    %127 = arith.negf %126 : vector<8x32xf32>
    %128 = math.exp %127 : vector<8x32xf32>
    %cst_30 = arith.constant 1.000000e+00 : f32
    %129 = vector.broadcast %cst_30 : f32 to vector<8x32xf32>
    %130 = arith.addf %129, %128 : vector<8x32xf32>
    %131 = arith.divf %129, %130 : vector<8x32xf32>
    %132 = arith.mulf %123, %103 : vector<8x32xf32>
    %133 = arith.mulf %117, %125 : vector<8x32xf32>
    %134 = arith.addf %132, %133 : vector<8x32xf32>
    %135 = math.tanh %134 : vector<8x32xf32>
    %136 = arith.mulf %131, %135 : vector<8x32xf32>
    %137 = vector.extract_strided_slice %7 {offsets = [32, 96], sizes = [8, 32], strides = [1, 1]} : vector<64x128xf32> to vector<8x32xf32>
    %cst_31 = arith.constant dense<0.000000e+00> : vector<8x128xf32>
    %138 = tpu.matmul %137, %8, %cst_31 {dimension_numbers = #tpu.dot_dimension_numbers<[1], [0], [0], [1], [0, 0, 1, 1], [], []>} : vector<8x32xf32>, vector<32x128xf32>, vector<8x128xf32> -> vector<8x128xf32>
    %cst_32 = arith.constant dense<0.000000e+00> : vector<8x128xf32>
    %139 = tpu.matmul %136, %9, %cst_32 {dimension_numbers = #tpu.dot_dimension_numbers<[1], [0], [0], [1], [0, 0, 1, 1], [], []>} : vector<8x32xf32>, vector<32x128xf32>, vector<8x128xf32> -> vector<8x128xf32>
    %140 = arith.addf %138, %139 : vector<8x128xf32>
    %141 = vector.broadcast %10 : vector<1x128xf32> to vector<8x128xf32>
    %142 = arith.addf %140, %141 : vector<8x128xf32>
    %143 = vector.extract_strided_slice %142 {offsets = [0, 0], sizes = [8, 32], strides = [1, 1]} : vector<8x128xf32> to vector<8x32xf32>
    %144 = arith.negf %143 : vector<8x32xf32>
    %145 = math.exp %144 : vector<8x32xf32>
    %cst_33 = arith.constant 1.000000e+00 : f32
    %146 = vector.broadcast %cst_33 : f32 to vector<8x32xf32>
    %147 = arith.addf %146, %145 : vector<8x32xf32>
    %148 = arith.divf %146, %147 : vector<8x32xf32>
    %149 = vector.extract_strided_slice %142 {offsets = [0, 32], sizes = [8, 32], strides = [1, 1]} : vector<8x128xf32> to vector<8x32xf32>
    %150 = arith.negf %149 : vector<8x32xf32>
    %151 = math.exp %150 : vector<8x32xf32>
    %cst_34 = arith.constant 1.000000e+00 : f32
    %152 = vector.broadcast %cst_34 : f32 to vector<8x32xf32>
    %153 = arith.addf %152, %151 : vector<8x32xf32>
    %154 = arith.divf %152, %153 : vector<8x32xf32>
    %155 = vector.extract_strided_slice %142 {offsets = [0, 64], sizes = [8, 32], strides = [1, 1]} : vector<8x128xf32> to vector<8x32xf32>
    %156 = math.tanh %155 : vector<8x32xf32>
    %157 = vector.extract_strided_slice %142 {offsets = [0, 96], sizes = [8, 32], strides = [1, 1]} : vector<8x128xf32> to vector<8x32xf32>
    %158 = arith.negf %157 : vector<8x32xf32>
    %159 = math.exp %158 : vector<8x32xf32>
    %cst_35 = arith.constant 1.000000e+00 : f32
    %160 = vector.broadcast %cst_35 : f32 to vector<8x32xf32>
    %161 = arith.addf %160, %159 : vector<8x32xf32>
    %162 = arith.divf %160, %161 : vector<8x32xf32>
    %163 = arith.mulf %154, %134 : vector<8x32xf32>
    %164 = arith.mulf %148, %156 : vector<8x32xf32>
    %165 = arith.addf %163, %164 : vector<8x32xf32>
    %166 = math.tanh %165 : vector<8x32xf32>
    %167 = arith.mulf %162, %166 : vector<8x32xf32>
    %168 = vector.extract_strided_slice %7 {offsets = [40, 96], sizes = [8, 32], strides = [1, 1]} : vector<64x128xf32> to vector<8x32xf32>
    %cst_36 = arith.constant dense<0.000000e+00> : vector<8x128xf32>
    %169 = tpu.matmul %168, %8, %cst_36 {dimension_numbers = #tpu.dot_dimension_numbers<[1], [0], [0], [1], [0, 0, 1, 1], [], []>} : vector<8x32xf32>, vector<32x128xf32>, vector<8x128xf32> -> vector<8x128xf32>
    %cst_37 = arith.constant dense<0.000000e+00> : vector<8x128xf32>
    %170 = tpu.matmul %167, %9, %cst_37 {dimension_numbers = #tpu.dot_dimension_numbers<[1], [0], [0], [1], [0, 0, 1, 1], [], []>} : vector<8x32xf32>, vector<32x128xf32>, vector<8x128xf32> -> vector<8x128xf32>
    %171 = arith.addf %169, %170 : vector<8x128xf32>
    %172 = vector.broadcast %10 : vector<1x128xf32> to vector<8x128xf32>
    %173 = arith.addf %171, %172 : vector<8x128xf32>
    %174 = vector.extract_strided_slice %173 {offsets = [0, 0], sizes = [8, 32], strides = [1, 1]} : vector<8x128xf32> to vector<8x32xf32>
    %175 = arith.negf %174 : vector<8x32xf32>
    %176 = math.exp %175 : vector<8x32xf32>
    %cst_38 = arith.constant 1.000000e+00 : f32
    %177 = vector.broadcast %cst_38 : f32 to vector<8x32xf32>
    %178 = arith.addf %177, %176 : vector<8x32xf32>
    %179 = arith.divf %177, %178 : vector<8x32xf32>
    %180 = vector.extract_strided_slice %173 {offsets = [0, 32], sizes = [8, 32], strides = [1, 1]} : vector<8x128xf32> to vector<8x32xf32>
    %181 = arith.negf %180 : vector<8x32xf32>
    %182 = math.exp %181 : vector<8x32xf32>
    %cst_39 = arith.constant 1.000000e+00 : f32
    %183 = vector.broadcast %cst_39 : f32 to vector<8x32xf32>
    %184 = arith.addf %183, %182 : vector<8x32xf32>
    %185 = arith.divf %183, %184 : vector<8x32xf32>
    %186 = vector.extract_strided_slice %173 {offsets = [0, 64], sizes = [8, 32], strides = [1, 1]} : vector<8x128xf32> to vector<8x32xf32>
    %187 = math.tanh %186 : vector<8x32xf32>
    %188 = vector.extract_strided_slice %173 {offsets = [0, 96], sizes = [8, 32], strides = [1, 1]} : vector<8x128xf32> to vector<8x32xf32>
    %189 = arith.negf %188 : vector<8x32xf32>
    %190 = math.exp %189 : vector<8x32xf32>
    %cst_40 = arith.constant 1.000000e+00 : f32
    %191 = vector.broadcast %cst_40 : f32 to vector<8x32xf32>
    %192 = arith.addf %191, %190 : vector<8x32xf32>
    %193 = arith.divf %191, %192 : vector<8x32xf32>
    %194 = arith.mulf %185, %165 : vector<8x32xf32>
    %195 = arith.mulf %179, %187 : vector<8x32xf32>
    %196 = arith.addf %194, %195 : vector<8x32xf32>
    %197 = math.tanh %196 : vector<8x32xf32>
    %198 = arith.mulf %193, %197 : vector<8x32xf32>
    %199 = vector.extract_strided_slice %7 {offsets = [48, 96], sizes = [8, 32], strides = [1, 1]} : vector<64x128xf32> to vector<8x32xf32>
    %cst_41 = arith.constant dense<0.000000e+00> : vector<8x128xf32>
    %200 = tpu.matmul %199, %8, %cst_41 {dimension_numbers = #tpu.dot_dimension_numbers<[1], [0], [0], [1], [0, 0, 1, 1], [], []>} : vector<8x32xf32>, vector<32x128xf32>, vector<8x128xf32> -> vector<8x128xf32>
    %cst_42 = arith.constant dense<0.000000e+00> : vector<8x128xf32>
    %201 = tpu.matmul %198, %9, %cst_42 {dimension_numbers = #tpu.dot_dimension_numbers<[1], [0], [0], [1], [0, 0, 1, 1], [], []>} : vector<8x32xf32>, vector<32x128xf32>, vector<8x128xf32> -> vector<8x128xf32>
    %202 = arith.addf %200, %201 : vector<8x128xf32>
    %203 = vector.broadcast %10 : vector<1x128xf32> to vector<8x128xf32>
    %204 = arith.addf %202, %203 : vector<8x128xf32>
    %205 = vector.extract_strided_slice %204 {offsets = [0, 0], sizes = [8, 32], strides = [1, 1]} : vector<8x128xf32> to vector<8x32xf32>
    %206 = arith.negf %205 : vector<8x32xf32>
    %207 = math.exp %206 : vector<8x32xf32>
    %cst_43 = arith.constant 1.000000e+00 : f32
    %208 = vector.broadcast %cst_43 : f32 to vector<8x32xf32>
    %209 = arith.addf %208, %207 : vector<8x32xf32>
    %210 = arith.divf %208, %209 : vector<8x32xf32>
    %211 = vector.extract_strided_slice %204 {offsets = [0, 32], sizes = [8, 32], strides = [1, 1]} : vector<8x128xf32> to vector<8x32xf32>
    %212 = arith.negf %211 : vector<8x32xf32>
    %213 = math.exp %212 : vector<8x32xf32>
    %cst_44 = arith.constant 1.000000e+00 : f32
    %214 = vector.broadcast %cst_44 : f32 to vector<8x32xf32>
    %215 = arith.addf %214, %213 : vector<8x32xf32>
    %216 = arith.divf %214, %215 : vector<8x32xf32>
    %217 = vector.extract_strided_slice %204 {offsets = [0, 64], sizes = [8, 32], strides = [1, 1]} : vector<8x128xf32> to vector<8x32xf32>
    %218 = math.tanh %217 : vector<8x32xf32>
    %219 = vector.extract_strided_slice %204 {offsets = [0, 96], sizes = [8, 32], strides = [1, 1]} : vector<8x128xf32> to vector<8x32xf32>
    %220 = arith.negf %219 : vector<8x32xf32>
    %221 = math.exp %220 : vector<8x32xf32>
    %cst_45 = arith.constant 1.000000e+00 : f32
    %222 = vector.broadcast %cst_45 : f32 to vector<8x32xf32>
    %223 = arith.addf %222, %221 : vector<8x32xf32>
    %224 = arith.divf %222, %223 : vector<8x32xf32>
    %225 = arith.mulf %216, %196 : vector<8x32xf32>
    %226 = arith.mulf %210, %218 : vector<8x32xf32>
    %227 = arith.addf %225, %226 : vector<8x32xf32>
    %228 = math.tanh %227 : vector<8x32xf32>
    %229 = arith.mulf %224, %228 : vector<8x32xf32>
    %230 = vector.extract_strided_slice %7 {offsets = [56, 96], sizes = [8, 32], strides = [1, 1]} : vector<64x128xf32> to vector<8x32xf32>
    %cst_46 = arith.constant dense<0.000000e+00> : vector<8x128xf32>
    %231 = tpu.matmul %230, %8, %cst_46 {dimension_numbers = #tpu.dot_dimension_numbers<[1], [0], [0], [1], [0, 0, 1, 1], [], []>} : vector<8x32xf32>, vector<32x128xf32>, vector<8x128xf32> -> vector<8x128xf32>
    %cst_47 = arith.constant dense<0.000000e+00> : vector<8x128xf32>
    %232 = tpu.matmul %229, %9, %cst_47 {dimension_numbers = #tpu.dot_dimension_numbers<[1], [0], [0], [1], [0, 0, 1, 1], [], []>} : vector<8x32xf32>, vector<32x128xf32>, vector<8x128xf32> -> vector<8x128xf32>
    %233 = arith.addf %231, %232 : vector<8x128xf32>
    %234 = vector.broadcast %10 : vector<1x128xf32> to vector<8x128xf32>
    %235 = arith.addf %233, %234 : vector<8x128xf32>
    %236 = vector.extract_strided_slice %235 {offsets = [0, 0], sizes = [8, 32], strides = [1, 1]} : vector<8x128xf32> to vector<8x32xf32>
    %237 = arith.negf %236 : vector<8x32xf32>
    %238 = math.exp %237 : vector<8x32xf32>
    %cst_48 = arith.constant 1.000000e+00 : f32
    %239 = vector.broadcast %cst_48 : f32 to vector<8x32xf32>
    %240 = arith.addf %239, %238 : vector<8x32xf32>
    %241 = arith.divf %239, %240 : vector<8x32xf32>
    %242 = vector.extract_strided_slice %235 {offsets = [0, 32], sizes = [8, 32], strides = [1, 1]} : vector<8x128xf32> to vector<8x32xf32>
    %243 = arith.negf %242 : vector<8x32xf32>
    %244 = math.exp %243 : vector<8x32xf32>
    %cst_49 = arith.constant 1.000000e+00 : f32
    %245 = vector.broadcast %cst_49 : f32 to vector<8x32xf32>
    %246 = arith.addf %245, %244 : vector<8x32xf32>
    %247 = arith.divf %245, %246 : vector<8x32xf32>
    %248 = vector.extract_strided_slice %235 {offsets = [0, 64], sizes = [8, 32], strides = [1, 1]} : vector<8x128xf32> to vector<8x32xf32>
    %249 = math.tanh %248 : vector<8x32xf32>
    %250 = vector.extract_strided_slice %235 {offsets = [0, 96], sizes = [8, 32], strides = [1, 1]} : vector<8x128xf32> to vector<8x32xf32>
    %251 = arith.negf %250 : vector<8x32xf32>
    %252 = math.exp %251 : vector<8x32xf32>
    %cst_50 = arith.constant 1.000000e+00 : f32
    %253 = vector.broadcast %cst_50 : f32 to vector<8x32xf32>
    %254 = arith.addf %253, %252 : vector<8x32xf32>
    %255 = arith.divf %253, %254 : vector<8x32xf32>
    %256 = arith.mulf %247, %227 : vector<8x32xf32>
    %257 = arith.mulf %241, %249 : vector<8x32xf32>
    %258 = arith.addf %256, %257 : vector<8x32xf32>
    %259 = math.tanh %258 : vector<8x32xf32>
    %260 = arith.mulf %255, %259 : vector<8x32xf32>
    %261 = tpu.concatenate %43, %74, %105, %136, %167, %198, %229, %260 in 0 : vector<8x32xf32>, vector<8x32xf32>, vector<8x32xf32>, vector<8x32xf32>, vector<8x32xf32>, vector<8x32xf32>, vector<8x32xf32>, vector<8x32xf32> -> vector<64x32xf32>
    %262 = tpu.concatenate %260, %258 in 1 : vector<8x32xf32>, vector<8x32xf32> -> vector<8x64xf32>
    %c0_51 = arith.constant 0 : index
    %c0_52 = arith.constant 0 : index
    %263 = vector.load %arg5[%c0_51, %c0_52] : memref<8x64xf32, #tpu.memory_space<vmem>>, vector<8x64xf32>
    tpu.vector_store %arg5[%c0_51, %c0_52], %262 {strides = array<i32>} : memref<8x64xf32, #tpu.memory_space<vmem>>, vector<8x64xf32>,
    %c192 = arith.constant 192 : index
    %c0_53 = arith.constant 0 : index
    %264 = vector.load %arg3[%c192, %c0_53] : memref<504x128xf32, #tpu.memory_space<vmem>>, vector<128x64xf32>
    %cst_54 = arith.constant dense<0.000000e+00> : vector<64x64xf32>
    %265 = tpu.matmul %7, %264, %cst_54 {dimension_numbers = #tpu.dot_dimension_numbers<[1], [0], [0], [1], [0, 0, 1, 1], [], []>} : vector<64x128xf32>, vector<128x64xf32>, vector<64x64xf32> -> vector<64x64xf32>
    %266 = vector.extract_strided_slice %265 {offsets = [0, 0], sizes = [64, 32], strides = [1, 1]} : vector<64x64xf32> to vector<64x32xf32>
    %c320 = arith.constant 320 : index
    %c0_55 = arith.constant 0 : index
    %267 = vector.load %arg3[%c320, %c0_55] : memref<504x128xf32, #tpu.memory_space<vmem>>, vector<32x32xf32>
    %cst_56 = arith.constant dense<0.000000e+00> : vector<64x32xf32>
    %268 = tpu.matmul %261, %267, %cst_56 {dimension_numbers = #tpu.dot_dimension_numbers<[1], [0], [0], [1], [0, 0, 1, 1], [], []>} : vector<64x32xf32>, vector<32x32xf32>, vector<64x32xf32> -> vector<64x32xf32>
    %269 = arith.addf %266, %268 : vector<64x32xf32>
    %c498 = arith.constant 498 : index
    %c0_57 = arith.constant 0 : index
    %270 = vector.load %arg3[%c498, %c0_57] : memref<504x128xf32, #tpu.memory_space<vmem>>, vector<1x32xf32>
    %271 = vector.broadcast %270 : vector<1x32xf32> to vector<64x32xf32>
    %272 = arith.addf %269, %271 : vector<64x32xf32>
    %cst_58 = arith.constant 0.000000e+00 : f32
    %273 = vector.broadcast %cst_58 : f32 to vector<64x32xf32>
    %274 = arith.maximumf %272, %273 : vector<64x32xf32>
    %c352 = arith.constant 352 : index
    %c0_59 = arith.constant 0 : index
    %275 = vector.load %arg3[%c352, %c0_59] : memref<504x128xf32, #tpu.memory_space<vmem>>, vector<32x32xf32>
    %cst_60 = arith.constant dense<0.000000e+00> : vector<64x32xf32>
    %276 = tpu.matmul %274, %275, %cst_60 {dimension_numbers = #tpu.dot_dimension_numbers<[1], [0], [0], [1], [0, 0, 1, 1], [], []>} : vector<64x32xf32>, vector<32x32xf32>, vector<64x32xf32> -> vector<64x32xf32>
    %277 = vector.extract_strided_slice %265 {offsets = [0, 32], sizes = [64, 32], strides = [1, 1]} : vector<64x64xf32> to vector<64x32xf32>
    %278 = arith.addf %276, %277 : vector<64x32xf32>
    %c499 = arith.constant 499 : index
    %c0_61 = arith.constant 0 : index
    %279 = vector.load %arg3[%c499, %c0_61] : memref<504x128xf32, #tpu.memory_space<vmem>>, vector<1x32xf32>
    %280 = vector.broadcast %279 : vector<1x32xf32> to vector<64x32xf32>
    %281 = arith.addf %278, %280 : vector<64x32xf32>
    %cst_62 = arith.constant 0.000000e+00 : f32
    %282 = vector.broadcast %cst_62 : f32 to vector<64x32xf32>
    %283 = arith.maximumf %281, %282 : vector<64x32xf32>
    %c384 = arith.constant 384 : index
    %c0_63 = arith.constant 0 : index
    %284 = vector.load %arg3[%c384, %c0_63] : memref<504x128xf32, #tpu.memory_space<vmem>>, vector<32x32xf32>
    %cst_64 = arith.constant dense<0.000000e+00> : vector<64x32xf32>
    %285 = tpu.matmul %283, %284, %cst_64 {dimension_numbers = #tpu.dot_dimension_numbers<[1], [0], [0], [1], [0, 0, 1, 1], [], []>} : vector<64x32xf32>, vector<32x32xf32>, vector<64x32xf32> -> vector<64x32xf32>
    %c500 = arith.constant 500 : index
    %c0_65 = arith.constant 0 : index
    %286 = vector.load %arg3[%c500, %c0_65] : memref<504x128xf32, #tpu.memory_space<vmem>>, vector<1x32xf32>
    %287 = vector.broadcast %286 : vector<1x32xf32> to vector<64x32xf32>
    %288 = arith.addf %285, %287 : vector<64x32xf32>
    %289 = vector.extract_strided_slice %288 {offsets = [0, 0], sizes = [64, 16], strides = [1, 1]} : vector<64x32xf32> to vector<64x16xf32>
    %290 = vector.extract_strided_slice %288 {offsets = [0, 16], sizes = [64, 16], strides = [1, 1]} : vector<64x32xf32> to vector<64x16xf32>
    %291 = vector.extract_strided_slice %0 {offsets = [0, 32], sizes = [64, 16], strides = [1, 1]} : vector<64x128xf32> to vector<64x16xf32>
    %292 = math.exp %290 : vector<64x16xf32>
    %293 = math.sqrt %292 : vector<64x16xf32>
    %294 = arith.mulf %291, %293 : vector<64x16xf32>
    %295 = arith.addf %289, %294 : vector<64x16xf32>
    %cst_66 = arith.constant 1.000000e+00 : f32
    %296 = vector.broadcast %cst_66 : f32 to vector<64x16xf32>
    %297 = arith.addf %296, %290 : vector<64x16xf32>
    %298 = arith.mulf %289, %289 : vector<64x16xf32>
    %299 = arith.subf %297, %298 : vector<64x16xf32>
    %300 = arith.subf %299, %292 : vector<64x16xf32>
    %cst_67 = arith.constant dense<0.000000e+00> : vector<64xf32>
    %301 = vector.multi_reduction <add>, %300, %cst_67 [1] : vector<64x16xf32> to vector<64xf32>
    %302 = vector.shape_cast %301 : vector<64xf32> to vector<64x1xf32>
    %cst_68 = arith.constant -5.000000e-01 : f32
    %303 = vector.broadcast %cst_68 : f32 to vector<64x1xf32>
    %304 = arith.mulf %303, %302 : vector<64x1xf32>
    %c416 = arith.constant 416 : index
    %c0_69 = arith.constant 0 : index
    %305 = vector.load %arg3[%c416, %c0_69] : memref<504x128xf32, #tpu.memory_space<vmem>>, vector<16x32xf32>
    %cst_70 = arith.constant dense<0.000000e+00> : vector<64x32xf32>
    %306 = tpu.matmul %295, %305, %cst_70 {dimension_numbers = #tpu.dot_dimension_numbers<[1], [0], [0], [1], [0, 0, 1, 1], [], []>} : vector<64x16xf32>, vector<16x32xf32>, vector<64x32xf32> -> vector<64x32xf32>
    %c432 = arith.constant 432 : index
    %c0_71 = arith.constant 0 : index
    %307 = vector.load %arg3[%c432, %c0_71] : memref<504x128xf32, #tpu.memory_space<vmem>>, vector<32x32xf32>
    %cst_72 = arith.constant dense<0.000000e+00> : vector<64x32xf32>
    %308 = tpu.matmul %274, %307, %cst_72 {dimension_numbers = #tpu.dot_dimension_numbers<[1], [0], [0], [1], [0, 0, 1, 1], [], []>} : vector<64x32xf32>, vector<32x32xf32>, vector<64x32xf32> -> vector<64x32xf32>
    %309 = arith.addf %306, %308 : vector<64x32xf32>
    %c501 = arith.constant 501 : index
    %c0_73 = arith.constant 0 : index
    %310 = vector.load %arg3[%c501, %c0_73] : memref<504x128xf32, #tpu.memory_space<vmem>>, vector<1x32xf32>
    %311 = vector.broadcast %310 : vector<1x32xf32> to vector<64x32xf32>
    %312 = arith.addf %309, %311 : vector<64x32xf32>
    %cst_74 = arith.constant 0.000000e+00 : f32
    %313 = vector.broadcast %cst_74 : f32 to vector<64x32xf32>
    %314 = arith.maximumf %312, %313 : vector<64x32xf32>
    %c464 = arith.constant 464 : index
    %c0_75 = arith.constant 0 : index
    %315 = vector.load %arg3[%c464, %c0_75] : memref<504x128xf32, #tpu.memory_space<vmem>>, vector<32x4xf32>
    %cst_76 = arith.constant dense<0.000000e+00> : vector<64x4xf32>
    %316 = tpu.matmul %314, %315, %cst_76 {dimension_numbers = #tpu.dot_dimension_numbers<[1], [0], [0], [1], [0, 0, 1, 1], [], []>} : vector<64x32xf32>, vector<32x4xf32>, vector<64x4xf32> -> vector<64x4xf32>
    %c502 = arith.constant 502 : index
    %c0_77 = arith.constant 0 : index
    %317 = vector.load %arg3[%c502, %c0_77] : memref<504x128xf32, #tpu.memory_space<vmem>>, vector<1x4xf32>
    %318 = vector.broadcast %317 : vector<1x4xf32> to vector<64x4xf32>
    %319 = arith.addf %316, %318 : vector<64x4xf32>
    %320 = arith.negf %319 : vector<64x4xf32>
    %321 = math.exp %320 : vector<64x4xf32>
    %cst_78 = arith.constant 1.000000e+00 : f32
    %322 = vector.broadcast %cst_78 : f32 to vector<64x4xf32>
    %323 = arith.addf %322, %321 : vector<64x4xf32>
    %324 = arith.divf %322, %323 : vector<64x4xf32>
    %cst_79 = arith.constant 0.000000e+00 : f32
    %325 = vector.broadcast %cst_79 : f32 to vector<64x107xf32>
    %326 = tpu.concatenate %295, %324, %304, %325 in 1 : vector<64x16xf32>, vector<64x4xf32>, vector<64x1xf32>, vector<64x107xf32> -> vector<64x128xf32>
    %c0_80 = arith.constant 0 : index
    %c0_81 = arith.constant 0 : index
    %327 = vector.load %arg4[%c0_80, %c0_81] : memref<64x128xf32, #tpu.memory_space<vmem>>, vector<64x128xf32>
    tpu.vector_store %arg4[%c0_80, %c0_81], %326 {strides = array<i32>} : memref<64x128xf32, #tpu.memory_space<vmem>>, vector<64x128xf32>,
    return
  }
  func.func @transform_0(%arg0: i32) -> (i32, i32) {
    %c0_i32 = arith.constant 0 : i32
    %c0_i32_0 = arith.constant 0 : i32
    %c0_i32_1 = arith.constant 0 : i32
    return %c0_i32, %c0_i32_0 : i32, i32
  }
  func.func @transform_1(%arg0: i32) -> (i32, i32) {
    %c0_i32 = arith.constant 0 : i32
    %c0_i32_0 = arith.constant 0 : i32
    %c0_i32_1 = arith.constant 0 : i32
    return %c0_i32, %c0_i32_0 : i32, i32
  }
  func.func @transform_2(%arg0: i32) -> (i32, i32) {
    %c0_i32 = arith.constant 0 : i32
    %c0_i32_0 = arith.constant 0 : i32
    %c0_i32_1 = arith.constant 0 : i32
    return %c0_i32, %c0_i32_0 : i32, i32
  }
  func.func @transform_3(%arg0: i32) -> (i32, i32) {
    %c0_i32 = arith.constant 0 : i32
    %c0_i32_0 = arith.constant 0 : i32
    %c0_i32_1 = arith.constant 0 : i32
    return %c0_i32, %c0_i32_0 : i32, i32
  }
  func.func @transform_4(%arg0: i32) -> (i32, i32) {
    %c0_i32 = arith.constant 0 : i32
    %c0_i32_0 = arith.constant 0 : i32
    %c0_i32_1 = arith.constant 0 : i32
    return %c0_i32, %c0_i32_0 : i32, i32
  }
}

</mosaic_0001>

<llo_original>
// kernel: forward_sequence.1
$region0: #{forward_sequence.1}
  #allocation0 [shape = 'u32[]', space=smem, size = 0x4, offset = 0x4, fixed_abs, tag = 'smem constant byte address 0x4 - core index']
  #allocation1 [shape = 'u32[144,128]{1,0:T(1,128)}', space=vmem, size = 0x12000, scoped, tag = 'internal scratch']
  %s0 = inlined_call_operand.hbm [shape: f32[64,128], index: 0, kind: input, shape index: {}]
  %s1 = inlined_call_operand.hbm [shape: f32[8,64], index: 1, kind: input, shape index: {}]
  %s2 = inlined_call_operand.hbm [shape: f32[504,128], index: 2, kind: input, shape index: {}]
  %s3 = inlined_call_operand.vmem [shape: f32[64,128], index: 3, kind: output, shape index: {0}]
  %s4 = inlined_call_operand.vmem [shape: f32[8,64], index: 4, kind: output, shape index: {1}]
  %5 = xla_tuple %s3, %s4
  %s6 = sld [smem:[#allocation0]]
  $region42: #{forward_sequence.1} parent=0
    _
  %s8 = ssub.s32 1, %s6
  %s9 = scalar_select 0, %s8, %s6
  $region1: #{forward_sequence.1} parent=0
    #allocation2 [shape = 'u8[32768]{0}', space=vmem, size = 0x8000, scoped, tag = 'input window, operand 0, single buffered']
    #allocation3 [shape = 's32[1]{0}', space=sflag, size = 0x4, scoped, tag = 'scoped memory for forward_sequence.1']
    #allocation4 [shape = 'u8[4096]{0}', space=vmem, size = 0x1000, scoped, tag = 'input window, operand 1, single buffered']
    #allocation5 [shape = 's32[1]{0}', space=sflag, size = 0x4, scoped, tag = 'scoped memory for forward_sequence.1']
    #allocation6 [shape = 'u8[258048]{0}', space=vmem, size = 0x3f000, scoped, tag = 'input window, operand 2, single buffered']
    %10 = vsyncpa [#allocation3], 0
    %11 = vsyncpa [#allocation5], 0
    // Predicated region
    $region2: #{forward_sequence.1} parent=1 // pred_check
      _
    $region3: #{forward_sequence.1} parent=1 // pred_check_branch
      %13 = sbr.rel (0) target = $region5
    $region4: #{forward_sequence.1} parent=1 // pred_region
      %s15 = ssub.s32 1024, 1024
      %16 = vsyncadd [#allocation3], %s15
      %s17 = sshll.u32 [#allocation2], 4
      %s18 = int_to_ptr.vmem [resolvable:$true] %s17
      %23 = dma.hbm_to_vmem [thread:$0]  %s0, 1024, %s18, [#allocation3], 128, 128, 8
    $region5: #{forward_sequence.1} parent=1 // pred_fallthru
      _
    // Predicated region
    $region6: #{forward_sequence.1} parent=1 // pred_check
      _
    $region7: #{forward_sequence.1} parent=1 // pred_check_branch
      %25 = sbr.rel (0) target = $region9
    $region8: #{forward_sequence.1} parent=1 // pred_region
      %s27 = ssub.s32 128, 128
      %28 = vsyncadd [#allocation5], %s27
      %s30 = sshll.u32 [#allocation4], 4
      %s31 = int_to_ptr.vmem [resolvable:$true] %s30
      %33 = dma.hbm_to_vmem [thread:$0]  %s1, 128, %s31, [#allocation5]
    $region9: #{forward_sequence.1} parent=1 // pred_fallthru
      _
    // Predicated region
    $region10: #{forward_sequence.1} parent=1 // pred_check
      _
    $region11: #{forward_sequence.1} parent=1 // pred_check_branch
      %35 = sbr.rel (0) target = $region13
    $region12: #{forward_sequence.1} parent=1 // pred_region
      %s37 = ssub.s32 8064, 8064
      %38 = vsyncadd [#allocation5], %s37
      %s39 = sshll.u32 [#allocation6], 4
      %s40 = int_to_ptr.vmem [resolvable:$true] %s39
      %45 = dma.hbm_to_vmem [thread:$0]  %s2, 8064, %s40, [#allocation5], 128, 128, 8
    $region13: #{forward_sequence.1} parent=1 // pred_fallthru
      _
    // Predicated region
    $region14: #{forward_sequence.1} parent=1 // pred_check
      _
    $region15: #{forward_sequence.1} parent=1 // pred_check_branch
      %47 = sbr.rel (0) target = $region17
    $region16: #{forward_sequence.1} parent=1 // pred_region
      %48 = dma.done [#allocation3], 1024
    $region17: #{forward_sequence.1} parent=1 // pred_fallthru
      _
    // Predicated region
    $region18: #{forward_sequence.1} parent=1 // pred_check
      _
    $region19: #{forward_sequence.1} parent=1 // pred_check_branch
      %50 = sbr.rel (0) target = $region21
    $region20: #{forward_sequence.1} parent=1 // pred_region
      %51 = dma.done [#allocation5], 128
    $region21: #{forward_sequence.1} parent=1 // pred_fallthru
      _
    // Predicated region
    $region22: #{forward_sequence.1} parent=1 // pred_check
      _
    $region23: #{forward_sequence.1} parent=1 // pred_check_branch
      %53 = sbr.rel (0) target = $region25
    $region24: #{forward_sequence.1} parent=1 // pred_region
      %54 = dma.done [#allocation5], 8064
    $region25: #{forward_sequence.1} parent=1 // pred_fallthru
      _
    %v55 = vld [vmem:[#allocation2] sm:$0xff]
    %v56 = vld [vmem:[#allocation2 + $0x8] sm:$0xff]
    %v57 = vld [vmem:[#allocation2 + $0x10] sm:$0xff]
    %v58 = vld [vmem:[#allocation2 + $0x18] sm:$0xff]
    %v59 = vld [vmem:[#allocation2 + $0x20] sm:$0xff]
    %v60 = vld [vmem:[#allocation2 + $0x28] sm:$0xff]
    %v61 = vld [vmem:[#allocation2 + $0x30] sm:$0xff]
    %v62 = vld [vmem:[#allocation2 + $0x38] sm:$0xff]
    %v63 = vld [vmem:[#allocation6] sm:$0xff]
    %v64 = vld [vmem:[#allocation6 + $0x8] sm:$0xff]
    %v65 = vld [vmem:[#allocation6 + $0x10] sm:$0xff]
    %v66 = vld [vmem:[#allocation6 + $0x18] sm:$0xff]
    %v67 = vld [vmem:[#allocation6 + $0x20] sm:$0xff]
    %v68 = vld [vmem:[#allocation6 + $0x28] sm:$0xff]
    %v69 = vld [vmem:[#allocation6 + $0x30] sm:$0xff]
    %v70 = vld [vmem:[#allocation6 + $0x38] sm:$0xff]
    %v71 = vld [vmem:[#allocation6 + $0x40] sm:$0xff]
    %v72 = vld [vmem:[#allocation6 + $0x48] sm:$0xff]
    %v73 = vld [vmem:[#allocation6 + $0x50] sm:$0xff]
    %v74 = vld [vmem:[#allocation6 + $0x58] sm:$0xff]
    %v75 = vld [vmem:[#allocation6 + $0x60] sm:$0xff]
    %v76 = vld [vmem:[#allocation6 + $0x68] sm:$0xff]
    %v77 = vld [vmem:[#allocation6 + $0x70] sm:$0xff]
    %v78 = vld [vmem:[#allocation6 + $0x78] sm:$0xff]
    %v79 = vld [vmem:[#allocation6 + $0x1f0] sm:$0x1]
    %v80 = vlaneseq
    %v81 = vshrl.u32 %v80, 7
    %v82 = vsub.s32 0, %v81
    %v83 = vrot.slane %v79, %v82
    %84 = vmatprep.subr.mxu0 0.0
    %85 = vmatpush1.msra.mxu0 %v78
    %86 = vmatprep.subr.mxu0 0.0
    %87 = vmatpush1.msra.mxu0 %v77
    %88 = vmatprep.subr.mxu0 0.0
    %89 = vmatpush1.msra.mxu0 %v76
    %90 = vmatprep.subr.mxu0 0.0
    %91 = vmatpush1.msra.mxu0 %v75
    %92 = vmatprep.subr.mxu0 0.0
    %93 = vmatpush1.msra.mxu0 %v74
    %94 = vmatprep.subr.mxu0 0.0
    %95 = vmatpush1.msra.mxu0 %v73
    %96 = vmatprep.subr.mxu0 0.0
    %97 = vmatpush1.msra.mxu0 %v72
    %98 = vmatprep.subr.mxu0 0.0
    %99 = vmatpush1.msra.mxu0 %v71
    %100 = vmatprep.subr.mxu0 0.0
    %101 = vmatpush1.msra.mxu0 %v70
    %102 = vmatprep.subr.mxu0 0.0
    %103 = vmatpush1.msra.mxu0 %v69
    %104 = vmatprep.subr.mxu0 0.0
    %105 = vmatpush1.msra.mxu0 %v68
    %106 = vmatprep.subr.mxu0 0.0
    %107 = vmatpush1.msra.mxu0 %v67
    %108 = vmatprep.subr.mxu0 0.0
    %109 = vmatpush1.msra.mxu0 %v66
    %110 = vmatprep.subr.mxu0 0.0
    %111 = vmatpush1.msra.mxu0 %v65
    %112 = vmatprep.subr.mxu0 0.0
    %113 = vmatpush1.msra.mxu0 %v64
    %114 = vmatprep.subr.mxu0 0.0
    %115 = vmatpush1.msra.mxu0 %v63
    %116 = vmatprep.subr.mxu0 0.0
    %117 = vmatpush2.msra.mxu0 0.0
    %118 = vmatprep.subr.mxu0 0.0
    %119 = vmatpush2.msra.mxu0 0.0
    %120 = vmatprep.subr.mxu0 0.0
    %121 = vmatpush2.msra.mxu0 0.0
    %122 = vmatprep.subr.mxu0 0.0
    %123 = vmatpush2.msra.mxu0 0.0
    %124 = vmatprep.subr.mxu0 0.0
    %125 = vmatpush2.msra.mxu0 0.0
    %126 = vmatprep.subr.mxu0 0.0
    %127 = vmatpush2.msra.mxu0 0.0
    %128 = vmatprep.subr.mxu0 0.0
    %129 = vmatpush2.msra.mxu0 0.0
    %130 = vmatprep.subr.mxu0 0.0
    %131 = vmatpush2.msra.mxu0 0.0
    %132 = vmatprep.subr.mxu0 0.0
    %133 = vmatpush2.msra.mxu0 0.0
    %134 = vmatprep.subr.mxu0 0.0
    %135 = vmatpush2.msra.mxu0 0.0
    %136 = vmatprep.subr.mxu0 0.0
    %137 = vmatpush2.msra.mxu0 0.0
    %138 = vmatprep.subr.mxu0 0.0
    %139 = vmatpush2.msra.mxu0 0.0
    %140 = vmatprep.subr.mxu0 0.0
    %141 = vmatpush2.msra.mxu0 0.0
    %142 = vmatprep.subr.mxu0 0.0
    %143 = vmatpush2.msra.mxu0 0.0
    %144 = vmatprep.subr.mxu0 0.0
    %145 = vmatpush2.msra.mxu0 0.0
    %146 = vmatprep.subr.mxu0 0.0
    %147 = vmatpush2.msra.mxu0 0.0
    %148 = vmatprep.mubr.f32.mxu0 0.0
    %149 = vmatmul.mubr.f32.gmra.mxu0 %v55
    %v150 = vpop.f32.mrf.mxu0
    %v151 = vadd.f32 %v83, %v150
    %v152 = vpop.f32.mrf.mxu0
    %153 = vmatprep.mubr.f32.mxu0 0.0
    %154 = vmatmul.mubr.f32.gmra.mxu0 %v56
    %v155 = vpop.f32.mrf.mxu0
    %v156 = vadd.f32 %v83, %v155
    %v157 = vpop.f32.mrf.mxu0
    %158 = vmatprep.mubr.f32.mxu0 0.0
    %159 = vmatmul.mubr.f32.gmra.mxu0 %v57
    %v160 = vpop.f32.mrf.mxu0
    %v161 = vadd.f32 %v83, %v160
    %v162 = vpop.f32.mrf.mxu0
    %163 = vmatprep.mubr.f32.mxu0 0.0
    %164 = vmatmul.mubr.f32.gmra.mxu0 %v58
    %v165 = vpop.f32.mrf.mxu0
    %v166 = vadd.f32 %v83, %v165
    %v167 = vpop.f32.mrf.mxu0
    %168 = vmatprep.mubr.f32.mxu0 0.0
    %169 = vmatmul.mubr.f32.gmra.mxu0 %v59
    %v170 = vpop.f32.mrf.mxu0
    %v171 = vadd.f32 %v83, %v170
    %v172 = vpop.f32.mrf.mxu0
    %173 = vmatprep.mubr.f32.mxu0 0.0
    %174 = vmatmul.mubr.f32.gmra.mxu0 %v60
    %v175 = vpop.f32.mrf.mxu0
    %v176 = vadd.f32 %v83, %v175
    %v177 = vpop.f32.mrf.mxu0
    %178 = vmatprep.mubr.f32.mxu0 0.0
    %179 = vmatmul.mubr.f32.gmra.mxu0 %v61
    %v180 = vpop.f32.mrf.mxu0
    %v181 = vadd.f32 %v83, %v180
    %v182 = vpop.f32.mrf.mxu0
    %183 = vmatprep.mubr.f32.mxu0 0.0
    %184 = vmatmul.mubr.f32.gmra.mxu0 %v62
    %v185 = vpop.f32.mrf.mxu0
    %v186 = vadd.f32 %v83, %v185
    %v187 = vpop.f32.mrf.mxu0
    %188 = vdwg.mxu0
    %v189 = vmax.f32 %v151, 0.0
    %v190 = vmax.f32 %v156, 0.0
    %v191 = vmax.f32 %v161, 0.0
    %v192 = vmax.f32 %v166, 0.0
    %v193 = vmax.f32 %v171, 0.0
    %v194 = vmax.f32 %v176, 0.0
    %v195 = vmax.f32 %v181, 0.0
    %v196 = vmax.f32 %v186, 0.0
    %v197 = vld [vmem:[#allocation6 + $0x80] sm:$0xff]
    %v198 = vld [vmem:[#allocation6 + $0x88] sm:$0xff]
    %v199 = vld [vmem:[#allocation6 + $0x90] sm:$0xff]
    %v200 = vld [vmem:[#allocation6 + $0x98] sm:$0xff]
    %v201 = vld [vmem:[#allocation6 + $0xa0] sm:$0xff]
    %v202 = vld [vmem:[#allocation6 + $0xa8] sm:$0xff]
    %v203 = vld [vmem:[#allocation6 + $0xb0] sm:$0xff]
    %v204 = vld [vmem:[#allocation6 + $0xb8] sm:$0xff]
    %v205 = vld [vmem:[#allocation6 + $0x1f1] sm:$0x1]
    %v206 = vld [vmem:[#allocation4] sm:$0xff]
    %vm207 = vcmask 261120
    %v209 = vsel %vm207, %v206, 0
    %211 = vmatprep.subr.mxu0 0.0
    %212 = vmatpush1.msra.mxu0 0.0
    %213 = vmatprep.subr.mxu0 0.0
    %214 = vmatpush1.msra.mxu0 0.0
    %215 = vmatprep.subr.mxu0 0.0
    %216 = vmatpush1.msra.mxu0 0.0
    %217 = vmatprep.subr.mxu0 0.0
    %218 = vmatpush1.msra.mxu0 0.0
    %219 = vmatprep.subr.mxu0 0.0
    %220 = vmatpush1.msra.mxu0 0.0
    %221 = vmatprep.subr.mxu0 0.0
    %222 = vmatpush1.msra.mxu0 0.0
    %223 = vmatprep.subr.mxu0 0.0
    %224 = vmatpush1.msra.mxu0 0.0
    %225 = vmatprep.subr.mxu0 0.0
    %226 = vmatpush1.msra.mxu0 0.0
    %227 = vmatprep.subr.mxu0 0.0
    %228 = vmatpush1.msra.mxu0 0.0
    %229 = vmatprep.subr.mxu0 0.0
    %230 = vmatpush1.msra.mxu0 0.0
    %231 = vmatprep.subr.mxu0 0.0
    %232 = vmatpush1.msra.mxu0 0.0
    %233 = vmatprep.subr.mxu0 0.0
    %234 = vmatpush1.msra.mxu0 0.0
    %235 = vmatprep.subr.mxu0 0.0
    %236 = vmatpush1.msra.mxu0 %v204
    %237 = vmatprep.subr.mxu0 0.0
    %238 = vmatpush1.msra.mxu0 %v203
    %239 = vmatprep.subr.mxu0 0.0
    %240 = vmatpush1.msra.mxu0 %v202
    %241 = vmatprep.subr.mxu0 0.0
    %242 = vmatpush1.msra.mxu0 %v201
    %243 = vmatprep.subr.mxu0 0.0
    %244 = vmatpush2.msra.mxu0 0.0
    %245 = vmatprep.subr.mxu0 0.0
    %246 = vmatpush2.msra.mxu0 0.0
    %247 = vmatprep.subr.mxu0 0.0
    %248 = vmatpush2.msra.mxu0 0.0
    %249 = vmatprep.subr.mxu0 0.0
    %250 = vmatpush2.msra.mxu0 0.0
    %251 = vmatprep.subr.mxu0 0.0
    %252 = vmatpush2.msra.mxu0 0.0
    %253 = vmatprep.subr.mxu0 0.0
    %254 = vmatpush2.msra.mxu0 0.0
    %255 = vmatprep.subr.mxu0 0.0
    %256 = vmatpush2.msra.mxu0 0.0
    %257 = vmatprep.subr.mxu0 0.0
    %258 = vmatpush2.msra.mxu0 0.0
    %259 = vmatprep.subr.mxu0 0.0
    %260 = vmatpush2.msra.mxu0 0.0
    %261 = vmatprep.subr.mxu0 0.0
    %262 = vmatpush2.msra.mxu0 0.0
    %263 = vmatprep.subr.mxu0 0.0
    %264 = vmatpush2.msra.mxu0 0.0
    %265 = vmatprep.subr.mxu0 0.0
    %266 = vmatpush2.msra.mxu0 0.0
    %267 = vmatprep.subr.mxu0 0.0
    %268 = vmatpush2.msra.mxu0 0.0
    %269 = vmatprep.subr.mxu0 0.0
    %270 = vmatpush2.msra.mxu0 0.0
    %271 = vmatprep.subr.mxu0 0.0
    %272 = vmatpush2.msra.mxu0 0.0
    %273 = vmatprep.subr.mxu0 0.0
    %274 = vmatpush2.msra.mxu0 0.0
    %275 = vmatprep.mubr.f32.mxu0 0.0
    %276 = vmatmul.mubr.f32.gmra.mxu0 %v209
    %v277 = vpop.f32.mrf.mxu0
    %v278 = vadd.f32 0.0, %v277
    %v279 = vpop.f32.mrf.mxu0
    %280 = vdwg.mxu0
    %282 = vrot.lane.b32.xlu0 %v189, 32
    %v283 = vpop.permute.xlu0 %282
    %v284 = vsel %vm207, %v283, 0
    %286 = vmatprep.subr.mxu0 0.0
    %287 = vmatpush1.msra.mxu0 0.0
    %288 = vmatprep.subr.mxu0 0.0
    %289 = vmatpush1.msra.mxu0 0.0
    %290 = vmatprep.subr.mxu0 0.0
    %291 = vmatpush1.msra.mxu0 0.0
    %292 = vmatprep.subr.mxu0 0.0
    %293 = vmatpush1.msra.mxu0 0.0
    %294 = vmatprep.subr.mxu0 0.0
    %295 = vmatpush1.msra.mxu0 0.0
    %296 = vmatprep.subr.mxu0 0.0
    %297 = vmatpush1.msra.mxu0 0.0
    %298 = vmatprep.subr.mxu0 0.0
    %299 = vmatpush1.msra.mxu0 0.0
    %300 = vmatprep.subr.mxu0 0.0
    %301 = vmatpush1.msra.mxu0 0.0
    %302 = vmatprep.subr.mxu0 0.0
    %303 = vmatpush1.msra.mxu0 0.0
    %304 = vmatprep.subr.mxu0 0.0
    %305 = vmatpush1.msra.mxu0 0.0
    %306 = vmatprep.subr.mxu0 0.0
    %307 = vmatpush1.msra.mxu0 0.0
    %308 = vmatprep.subr.mxu0 0.0
    %309 = vmatpush1.msra.mxu0 0.0
    %310 = vmatprep.subr.mxu0 0.0
    %311 = vmatpush1.msra.mxu0 %v200
    %312 = vmatprep.subr.mxu0 0.0
    %313 = vmatpush1.msra.mxu0 %v199
    %314 = vmatprep.subr.mxu0 0.0
    %315 = vmatpush1.msra.mxu0 %v198
    %316 = vmatprep.subr.mxu0 0.0
    %317 = vmatpush1.msra.mxu0 %v197
    %318 = vmatprep.subr.mxu0 0.0
    %319 = vmatpush2.msra.mxu0 0.0
    %320 = vmatprep.subr.mxu0 0.0
    %321 = vmatpush2.msra.mxu0 0.0
    %322 = vmatprep.subr.mxu0 0.0
    %323 = vmatpush2.msra.mxu0 0.0
    %324 = vmatprep.subr.mxu0 0.0
    %325 = vmatpush2.msra.mxu0 0.0
    %326 = vmatprep.subr.mxu0 0.0
    %327 = vmatpush2.msra.mxu0 0.0
    %328 = vmatprep.subr.mxu0 0.0
    %329 = vmatpush2.msra.mxu0 0.0
    %330 = vmatprep.subr.mxu0 0.0
    %331 = vmatpush2.msra.mxu0 0.0
    %332 = vmatprep.subr.mxu0 0.0
    %333 = vmatpush2.msra.mxu0 0.0
    %334 = vmatprep.subr.mxu0 0.0
    %335 = vmatpush2.msra.mxu0 0.0
    %336 = vmatprep.subr.mxu0 0.0
    %337 = vmatpush2.msra.mxu0 0.0
    %338 = vmatprep.subr.mxu0 0.0
    %339 = vmatpush2.msra.mxu0 0.0
    %340 = vmatprep.subr.mxu0 0.0
    %341 = vmatpush2.msra.mxu0 0.0
    %342 = vmatprep.subr.mxu0 0.0
    %343 = vmatpush2.msra.mxu0 0.0
    %344 = vmatprep.subr.mxu0 0.0
    %345 = vmatpush2.msra.mxu0 0.0
    %346 = vmatprep.subr.mxu0 0.0
    %347 = vmatpush2.msra.mxu0 0.0
    %348 = vmatprep.subr.mxu0 0.0
    %349 = vmatpush2.msra.mxu0 0.0
    %350 = vmatprep.mubr.f32.mxu0 0.0
    %351 = vmatmul.mubr.f32.gmra.mxu0 %v284
    %v352 = vpop.f32.mrf.mxu0
    %v353 = vadd.f32 %v278, %v352
    %v354 = vpop.f32.mrf.mxu0
    %355 = vdwg.mxu0
    %v356 = vlaneseq
    %v357 = vshrl.u32 %v356, 7
    %v358 = vsub.s32 0, %v357
    %v359 = vrot.slane %v205, %v358
    %v360 = vadd.f32 %v353, %v359
    %v361 = vxor.u32 %v360, 2147483648
    %v362 = vmul.f32 %v361, 1.442695
    %v363 = vpow.pop %v362
    %v364 = vadd.f32 %v363, 1.0
    %v365 = vrcp.pop %v364
    %v366 = vmul.f32 1.0, %v365
    %v367 = vtanh.pop %v360
    %v368 = vmul.f32 %v366, %v206
    %370 = vrot.lane.b32.xlu0 %v367, 64
    %v371 = vpop.permute.xlu0 %370
    %v373 = vmul.f32 %v366, %v371
    %375 = vrot.lane.b32.xlu0 %v373, 32
    %v376 = vpop.permute.xlu0 %375
    %v378 = vadd.f32 %v368, %v376
    %v379 = vtanh.pop %v378
    %381 = vrot.lane.b32.xlu0 %v379, 64
    %v382 = vpop.permute.xlu0 %381
    %v384 = vmul.f32 %v366, %v382
    %386 = vrot.lane.b32.xlu0 %v384, 32
    %v387 = vpop.permute.xlu0 %386
    %v388 = vsel %vm207, %v387, 0
    %390 = vmatprep.subr.mxu0 0.0
    %391 = vmatpush1.msra.mxu0 0.0
    %392 = vmatprep.subr.mxu0 0.0
    %393 = vmatpush1.msra.mxu0 0.0
    %394 = vmatprep.subr.mxu0 0.0
    %395 = vmatpush1.msra.mxu0 0.0
    %396 = vmatprep.subr.mxu0 0.0
    %397 = vmatpush1.msra.mxu0 0.0
    %398 = vmatprep.subr.mxu0 0.0
    %399 = vmatpush1.msra.mxu0 0.0
    %400 = vmatprep.subr.mxu0 0.0
    %401 = vmatpush1.msra.mxu0 0.0
    %402 = vmatprep.subr.mxu0 0.0
    %403 = vmatpush1.msra.mxu0 0.0
    %404 = vmatprep.subr.mxu0 0.0
    %405 = vmatpush1.msra.mxu0 0.0
    %406 = vmatprep.subr.mxu0 0.0
    %407 = vmatpush1.msra.mxu0 0.0
    %408 = vmatprep.subr.mxu0 0.0
    %409 = vmatpush1.msra.mxu0 0.0
    %410 = vmatprep.subr.mxu0 0.0
    %411 = vmatpush1.msra.mxu0 0.0
    %412 = vmatprep.subr.mxu0 0.0
    %413 = vmatpush1.msra.mxu0 0.0
    %414 = vmatprep.subr.mxu0 0.0
    %415 = vmatpush1.msra.mxu0 %v204
    %416 = vmatprep.subr.mxu0 0.0
    %417 = vmatpush1.msra.mxu0 %v203
    %418 = vmatprep.subr.mxu0 0.0
    %419 = vmatpush1.msra.mxu0 %v202
    %420 = vmatprep.subr.mxu0 0.0
    %421 = vmatpush1.msra.mxu0 %v201
    %422 = vmatprep.subr.mxu0 0.0
    %423 = vmatpush2.msra.mxu0 0.0
    %424 = vmatprep.subr.mxu0 0.0
    %425 = vmatpush2.msra.mxu0 0.0
    %426 = vmatprep.subr.mxu0 0.0
    %427 = vmatpush2.msra.mxu0 0.0
    %428 = vmatprep.subr.mxu0 0.0
    %429 = vmatpush2.msra.mxu0 0.0
    %430 = vmatprep.subr.mxu0 0.0
    %431 = vmatpush2.msra.mxu0 0.0
    %432 = vmatprep.subr.mxu0 0.0
    %433 = vmatpush2.msra.mxu0 0.0
    %434 = vmatprep.subr.mxu0 0.0
    %435 = vmatpush2.msra.mxu0 0.0
    %436 = vmatprep.subr.mxu0 0.0
    %437 = vmatpush2.msra.mxu0 0.0
    %438 = vmatprep.subr.mxu0 0.0
    %439 = vmatpush2.msra.mxu0 0.0
    %440 = vmatprep.subr.mxu0 0.0
    %441 = vmatpush2.msra.mxu0 0.0
    %442 = vmatprep.subr.mxu0 0.0
    %443 = vmatpush2.msra.mxu0 0.0
    %444 = vmatprep.subr.mxu0 0.0
    %445 = vmatpush2.msra.mxu0 0.0
    %446 = vmatprep.subr.mxu0 0.0
    %447 = vmatpush2.msra.mxu0 0.0
    %448 = vmatprep.subr.mxu0 0.0
    %449 = vmatpush2.msra.mxu0 0.0
    %450 = vmatprep.subr.mxu0 0.0
    %451 = vmatpush2.msra.mxu0 0.0
    %452 = vmatprep.subr.mxu0 0.0
    %453 = vmatpush2.msra.mxu0 0.0
    %454 = vmatprep.mubr.f32.mxu0 0.0
    %455 = vmatmul.mubr.f32.gmra.mxu0 %v388
    %v456 = vpop.f32.mrf.mxu0
    %v457 = vadd.f32 0.0, %v456
    %v458 = vpop.f32.mrf.mxu0
    %459 = vdwg.mxu0
    %461 = vrot.lane.b32.xlu0 %v190, 32
    %v462 = vpop.permute.xlu0 %461
    %v463 = vsel %vm207, %v462, 0
    %465 = vmatprep.subr.mxu0 0.0
    %466 = vmatpush1.msra.mxu0 0.0
    %467 = vmatprep.subr.mxu0 0.0
    %468 = vmatpush1.msra.mxu0 0.0
    %469 = vmatprep.subr.mxu0 0.0
    %470 = vmatpush1.msra.mxu0 0.0
    %471 = vmatprep.subr.mxu0 0.0
    %472 = vmatpush1.msra.mxu0 0.0
    %473 = vmatprep.subr.mxu0 0.0
    %474 = vmatpush1.msra.mxu0 0.0
    %475 = vmatprep.subr.mxu0 0.0
    %476 = vmatpush1.msra.mxu0 0.0
    %477 = vmatprep.subr.mxu0 0.0
    %478 = vmatpush1.msra.mxu0 0.0
    %479 = vmatprep.subr.mxu0 0.0
    %480 = vmatpush1.msra.mxu0 0.0
    %481 = vmatprep.subr.mxu0 0.0
    %482 = vmatpush1.msra.mxu0 0.0
    %483 = vmatprep.subr.mxu0 0.0
    %484 = vmatpush1.msra.mxu0 0.0
    %485 = vmatprep.subr.mxu0 0.0
    %486 = vmatpush1.msra.mxu0 0.0
    %487 = vmatprep.subr.mxu0 0.0
    %488 = vmatpush1.msra.mxu0 0.0
    %489 = vmatprep.subr.mxu0 0.0
    %490 = vmatpush1.msra.mxu0 %v200
    %491 = vmatprep.subr.mxu0 0.0
    %492 = vmatpush1.msra.mxu0 %v199
    %493 = vmatprep.subr.mxu0 0.0
    %494 = vmatpush1.msra.mxu0 %v198
    %495 = vmatprep.subr.mxu0 0.0
    %496 = vmatpush1.msra.mxu0 %v197
    %497 = vmatprep.subr.mxu0 0.0
    %498 = vmatpush2.msra.mxu0 0.0
    %499 = vmatprep.subr.mxu0 0.0
    %500 = vmatpush2.msra.mxu0 0.0
    %501 = vmatprep.subr.mxu0 0.0
    %502 = vmatpush2.msra.mxu0 0.0
    %503 = vmatprep.subr.mxu0 0.0
    %504 = vmatpush2.msra.mxu0 0.0
    %505 = vmatprep.subr.mxu0 0.0
    %506 = vmatpush2.msra.mxu0 0.0
    %507 = vmatprep.subr.mxu0 0.0
    %508 = vmatpush2.msra.mxu0 0.0
    %509 = vmatprep.subr.mxu0 0.0
    %510 = vmatpush2.msra.mxu0 0.0
    %511 = vmatprep.subr.mxu0 0.0
    %512 = vmatpush2.msra.mxu0 0.0
    %513 = vmatprep.subr.mxu0 0.0
    %514 = vmatpush2.msra.mxu0 0.0
    %515 = vmatprep.subr.mxu0 0.0
    %516 = vmatpush2.msra.mxu0 0.0
    %517 = vmatprep.subr.mxu0 0.0
    %518 = vmatpush2.msra.mxu0 0.0
    %519 = vmatprep.subr.mxu0 0.0
    %520 = vmatpush2.msra.mxu0 0.0
    %521 = vmatprep.subr.mxu0 0.0
    %522 = vmatpush2.msra.mxu0 0.0
    %523 = vmatprep.subr.mxu0 0.0
    %524 = vmatpush2.msra.mxu0 0.0
    %525 = vmatprep.subr.mxu0 0.0
    %526 = vmatpush2.msra.mxu0 0.0
    %527 = vmatprep.subr.mxu0 0.0
    %528 = vmatpush2.msra.mxu0 0.0
    %529 = vmatprep.mubr.f32.mxu0 0.0
    %530 = vmatmul.mubr.f32.gmra.mxu0 %v463
    %v531 = vpop.f32.mrf.mxu0
    %v532 = vadd.f32 %v457, %v531
    %v533 = vpop.f32.mrf.mxu0
    %534 = vdwg.mxu0
    %v535 = vadd.f32 %v532, %v359
    %v536 = vxor.u32 %v535, 2147483648
    %v537 = vmul.f32 %v536, 1.442695
    %v538 = vpow.pop %v537
    %v539 = vadd.f32 %v538, 1.0
    %v540 = vrcp.pop %v539
    %v541 = vmul.f32 1.0, %v540
    %v542 = vtanh.pop %v535
    %v543 = vmul.f32 %v541, %v378
    %545 = vrot.lane.b32.xlu0 %v542, 64
    %v546 = vpop.permute.xlu0 %545
    %v548 = vmul.f32 %v541, %v546
    %550 = vrot.lane.b32.xlu0 %v548, 32
    %v551 = vpop.permute.xlu0 %550
    %v553 = vadd.f32 %v543, %v551
    %v554 = vtanh.pop %v553
    %556 = vrot.lane.b32.xlu0 %v554, 64
    %v557 = vpop.permute.xlu0 %556
    %v559 = vmul.f32 %v541, %v557
    %561 = vrot.lane.b32.xlu0 %v559, 32
    %v562 = vpop.permute.xlu0 %561
    %v563 = vsel %vm207, %v562, 0
    %565 = vmatprep.subr.mxu0 0.0
    %566 = vmatpush1.msra.mxu0 0.0
    %567 = vmatprep.subr.mxu0 0.0
    %568 = vmatpush1.msra.mxu0 0.0
    %569 = vmatprep.subr.mxu0 0.0
    %570 = vmatpush1.msra.mxu0 0.0
    %571 = vmatprep.subr.mxu0 0.0
    %572 = vmatpush1.msra.mxu0 0.0
    %573 = vmatprep.subr.mxu0 0.0
    %574 = vmatpush1.msra.mxu0 0.0
    %575 = vmatprep.subr.mxu0 0.0
    %576 = vmatpush1.msra.mxu0 0.0
    %577 = vmatprep.subr.mxu0 0.0
    %578 = vmatpush1.msra.mxu0 0.0
    %579 = vmatprep.subr.mxu0 0.0
    %580 = vmatpush1.msra.mxu0 0.0
    %581 = vmatprep.subr.mxu0 0.0
    %582 = vmatpush1.msra.mxu0 0.0
    %583 = vmatprep.subr.mxu0 0.0
    %584 = vmatpush1.msra.mxu0 0.0
    %585 = vmatprep.subr.mxu0 0.0
    %586 = vmatpush1.msra.mxu0 0.0
    %587 = vmatprep.subr.mxu0 0.0
    %588 = vmatpush1.msra.mxu0 0.0
    %589 = vmatprep.subr.mxu0 0.0
    %590 = vmatpush1.msra.mxu0 %v204
    %591 = vmatprep.subr.mxu0 0.0
    %592 = vmatpush1.msra.mxu0 %v203
    %593 = vmatprep.subr.mxu0 0.0
    %594 = vmatpush1.msra.mxu0 %v202
    %595 = vmatprep.subr.mxu0 0.0
    %596 = vmatpush1.msra.mxu0 %v201
    %597 = vmatprep.subr.mxu0 0.0
    %598 = vmatpush2.msra.mxu0 0.0
    %599 = vmatprep.subr.mxu0 0.0
    %600 = vmatpush2.msra.mxu0 0.0
    %601 = vmatprep.subr.mxu0 0.0
    %602 = vmatpush2.msra.mxu0 0.0
    %603 = vmatprep.subr.mxu0 0.0
    %604 = vmatpush2.msra.mxu0 0.0
    %605 = vmatprep.subr.mxu0 0.0
    %606 = vmatpush2.msra.mxu0 0.0
    %607 = vmatprep.subr.mxu0 0.0
    %608 = vmatpush2.msra.mxu0 0.0
    %609 = vmatprep.subr.mxu0 0.0
    %610 = vmatpush2.msra.mxu0 0.0
    %611 = vmatprep.subr.mxu0 0.0
    %612 = vmatpush2.msra.mxu0 0.0
    %613 = vmatprep.subr.mxu0 0.0
    %614 = vmatpush2.msra.mxu0 0.0
    %615 = vmatprep.subr.mxu0 0.0
    %616 = vmatpush2.msra.mxu0 0.0
    %617 = vmatprep.subr.mxu0 0.0
    %618 = vmatpush2.msra.mxu0 0.0
    %619 = vmatprep.subr.mxu0 0.0
    %620 = vmatpush2.msra.mxu0 0.0
    %621 = vmatprep.subr.mxu0 0.0
    %622 = vmatpush2.msra.mxu0 0.0
    %623 = vmatprep.subr.mxu0 0.0
    %624 = vmatpush2.msra.mxu0 0.0
    %625 = vmatprep.subr.mxu0 0.0
    %626 = vmatpush2.msra.mxu0 0.0
    %627 = vmatprep.subr.mxu0 0.0
    %628 = vmatpush2.msra.mxu0 0.0
    %629 = vmatprep.mubr.f32.mxu0 0.0
    %630 = vmatmul.mubr.f32.gmra.mxu0 %v563
    %v631 = vpop.f32.mrf.mxu0
    %v632 = vadd.f32 0.0, %v631
    %v633 = vpop.f32.mrf.mxu0
    %634 = vdwg.mxu0
    %636 = vrot.lane.b32.xlu0 %v191, 32
    %v637 = vpop.permute.xlu0 %636
    %v638 = vsel %vm207, %v637, 0
    %640 = vmatprep.subr.mxu0 0.0
    %641 = vmatpush1.msra.mxu0 0.0
    %642 = vmatprep.subr.mxu0 0.0
    %643 = vmatpush1.msra.mxu0 0.0
    %644 = vmatprep.subr.mxu0 0.0
    %645 = vmatpush1.msra.mxu0 0.0
    %646 = vmatprep.subr.mxu0 0.0
    %647 = vmatpush1.msra.mxu0 0.0
    %648 = vmatprep.subr.mxu0 0.0
    %649 = vmatpush1.msra.mxu0 0.0
    %650 = vmatprep.subr.mxu0 0.0
    %651 = vmatpush1.msra.mxu0 0.0
    %652 = vmatprep.subr.mxu0 0.0
    %653 = vmatpush1.msra.mxu0 0.0
    %654 = vmatprep.subr.mxu0 0.0
    %655 = vmatpush1.msra.mxu0 0.0
    %656 = vmatprep.subr.mxu0 0.0
    %657 = vmatpush1.msra.mxu0 0.0
    %658 = vmatprep.subr.mxu0 0.0
    %659 = vmatpush1.msra.mxu0 0.0
    %660 = vmatprep.subr.mxu0 0.0
    %661 = vmatpush1.msra.mxu0 0.0
    %662 = vmatprep.subr.mxu0 0.0
    %663 = vmatpush1.msra.mxu0 0.0
    %664 = vmatprep.subr.mxu0 0.0
    %665 = vmatpush1.msra.mxu0 %v200
    %666 = vmatprep.subr.mxu0 0.0
    %667 = vmatpush1.msra.mxu0 %v199
    %668 = vmatprep.subr.mxu0 0.0
    %669 = vmatpush1.msra.mxu0 %v198
    %670 = vmatprep.subr.mxu0 0.0
    %671 = vmatpush1.msra.mxu0 %v197
    %672 = vmatprep.subr.mxu0 0.0
    %673 = vmatpush2.msra.mxu0 0.0
    %674 = vmatprep.subr.mxu0 0.0
    %675 = vmatpush2.msra.mxu0 0.0
    %676 = vmatprep.subr.mxu0 0.0
    %677 = vmatpush2.msra.mxu0 0.0
    %678 = vmatprep.subr.mxu0 0.0
    %679 = vmatpush2.msra.mxu0 0.0
    %680 = vmatprep.subr.mxu0 0.0
    %681 = vmatpush2.msra.mxu0 0.0
    %682 = vmatprep.subr.mxu0 0.0
    %683 = vmatpush2.msra.mxu0 0.0
    %684 = vmatprep.subr.mxu0 0.0
    %685 = vmatpush2.msra.mxu0 0.0
    %686 = vmatprep.subr.mxu0 0.0
    %687 = vmatpush2.msra.mxu0 0.0
    %688 = vmatprep.subr.mxu0 0.0
    %689 = vmatpush2.msra.mxu0 0.0
    %690 = vmatprep.subr.mxu0 0.0
    %691 = vmatpush2.msra.mxu0 0.0
    %692 = vmatprep.subr.mxu0 0.0
    %693 = vmatpush2.msra.mxu0 0.0
    %694 = vmatprep.subr.mxu0 0.0
    %695 = vmatpush2.msra.mxu0 0.0
    %696 = vmatprep.subr.mxu0 0.0
    %697 = vmatpush2.msra.mxu0 0.0
    %698 = vmatprep.subr.mxu0 0.0
    %699 = vmatpush2.msra.mxu0 0.0
    %700 = vmatprep.subr.mxu0 0.0
    %701 = vmatpush2.msra.mxu0 0.0
    %702 = vmatprep.subr.mxu0 0.0
    %703 = vmatpush2.msra.mxu0 0.0
    %704 = vmatprep.mubr.f32.mxu0 0.0
    %705 = vmatmul.mubr.f32.gmra.mxu0 %v638
    %v706 = vpop.f32.mrf.mxu0
    %v707 = vadd.f32 %v632, %v706
    %v708 = vpop.f32.mrf.mxu0
    %709 = vdwg.mxu0
    %v710 = vadd.f32 %v707, %v359
    %v711 = vxor.u32 %v710, 2147483648
    %v712 = vmul.f32 %v711, 1.442695
    %v713 = vpow.pop %v712
    %v714 = vadd.f32 %v713, 1.0
    %v715 = vrcp.pop %v714
    %v716 = vmul.f32 1.0, %v715
    %v717 = vtanh.pop %v710
    %v718 = vmul.f32 %v716, %v553
    %720 = vrot.lane.b32.xlu0 %v717, 64
    %v721 = vpop.permute.xlu0 %720
    %v723 = vmul.f32 %v716, %v721
    %725 = vrot.lane.b32.xlu0 %v723, 32
    %v726 = vpop.permute.xlu0 %725
    %v728 = vadd.f32 %v718, %v726
    %v729 = vtanh.pop %v728
    %731 = vrot.lane.b32.xlu0 %v729, 64
    %v732 = vpop.permute.xlu0 %731
    %v734 = vmul.f32 %v716, %v732
    %736 = vrot.lane.b32.xlu0 %v734, 32
    %v737 = vpop.permute.xlu0 %736
    %v738 = vsel %vm207, %v737, 0
    %740 = vmatprep.subr.mxu0 0.0
    %741 = vmatpush1.msra.mxu0 0.0
    %742 = vmatprep.subr.mxu0 0.0
    %743 = vmatpush1.msra.mxu0 0.0
    %744 = vmatprep.subr.mxu0 0.0
    %745 = vmatpush1.msra.mxu0 0.0
    %746 = vmatprep.subr.mxu0 0.0
    %747 = vmatpush1.msra.mxu0 0.0
    %748 = vmatprep.subr.mxu0 0.0
    %749 = vmatpush1.msra.mxu0 0.0
    %750 = vmatprep.subr.mxu0 0.0
    %751 = vmatpush1.msra.mxu0 0.0
    %752 = vmatprep.subr.mxu0 0.0
    %753 = vmatpush1.msra.mxu0 0.0
    %754 = vmatprep.subr.mxu0 0.0
    %755 = vmatpush1.msra.mxu0 0.0
    %756 = vmatprep.subr.mxu0 0.0
    %757 = vmatpush1.msra.mxu0 0.0
    %758 = vmatprep.subr.mxu0 0.0
    %759 = vmatpush1.msra.mxu0 0.0
    %760 = vmatprep.subr.mxu0 0.0
    %761 = vmatpush1.msra.mxu0 0.0
    %762 = vmatprep.subr.mxu0 0.0
    %763 = vmatpush1.msra.mxu0 0.0
    %764 = vmatprep.subr.mxu0 0.0
    %765 = vmatpush1.msra.mxu0 %v204
    %766 = vmatprep.subr.mxu0 0.0
    %767 = vmatpush1.msra.mxu0 %v203
    %768 = vmatprep.subr.mxu0 0.0
    %769 = vmatpush1.msra.mxu0 %v202
    %770 = vmatprep.subr.mxu0 0.0
    %771 = vmatpush1.msra.mxu0 %v201
    %772 = vmatprep.subr.mxu0 0.0
    %773 = vmatpush2.msra.mxu0 0.0
    %774 = vmatprep.subr.mxu0 0.0
    %775 = vmatpush2.msra.mxu0 0.0
    %776 = vmatprep.subr.mxu0 0.0
    %777 = vmatpush2.msra.mxu0 0.0
    %778 = vmatprep.subr.mxu0 0.0
    %779 = vmatpush2.msra.mxu0 0.0
    %780 = vmatprep.subr.mxu0 0.0
    %781 = vmatpush2.msra.mxu0 0.0
    %782 = vmatprep.subr.mxu0 0.0
    %783 = vmatpush2.msra.mxu0 0.0
    %784 = vmatprep.subr.mxu0 0.0
    %785 = vmatpush2.msra.mxu0 0.0
    %786 = vmatprep.subr.mxu0 0.0
    %787 = vmatpush2.msra.mxu0 0.0
    %788 = vmatprep.subr.mxu0 0.0
    %789 = vmatpush2.msra.mxu0 0.0
    %790 = vmatprep.subr.mxu0 0.0
    %791 = vmatpush2.msra.mxu0 0.0
    %792 = vmatprep.subr.mxu0 0.0
    %793 = vmatpush2.msra.mxu0 0.0
    %794 = vmatprep.subr.mxu0 0.0
    %795 = vmatpush2.msra.mxu0 0.0
    %796 = vmatprep.subr.mxu0 0.0
    %797 = vmatpush2.msra.mxu0 0.0
    %798 = vmatprep.subr.mxu0 0.0
    %799 = vmatpush2.msra.mxu0 0.0
    %800 = vmatprep.subr.mxu0 0.0
    %801 = vmatpush2.msra.mxu0 0.0
    %802 = vmatprep.subr.mxu0 0.0
    %803 = vmatpush2.msra.mxu0 0.0
    %804 = vmatprep.mubr.f32.mxu0 0.0
    %805 = vmatmul.mubr.f32.gmra.mxu0 %v738
    %v806 = vpop.f32.mrf.mxu0
    %v807 = vadd.f32 0.0, %v806
    %v808 = vpop.f32.mrf.mxu0
    %809 = vdwg.mxu0
    %811 = vrot.lane.b32.xlu0 %v192, 32
    %v812 = vpop.permute.xlu0 %811
    %v813 = vsel %vm207, %v812, 0
    %815 = vmatprep.subr.mxu0 0.0
    %816 = vmatpush1.msra.mxu0 0.0
    %817 = vmatprep.subr.mxu0 0.0
    %818 = vmatpush1.msra.mxu0 0.0
    %819 = vmatprep.subr.mxu0 0.0
    %820 = vmatpush1.msra.mxu0 0.0
    %821 = vmatprep.subr.mxu0 0.0
    %822 = vmatpush1.msra.mxu0 0.0
    %823 = vmatprep.subr.mxu0 0.0
    %824 = vmatpush1.msra.mxu0 0.0
    %825 = vmatprep.subr.mxu0 0.0
    %826 = vmatpush1.msra.mxu0 0.0
    %827 = vmatprep.subr.mxu0 0.0
    %828 = vmatpush1.msra.mxu0 0.0
    %829 = vmatprep.subr.mxu0 0.0
    %830 = vmatpush1.msra.mxu0 0.0
    %831 = vmatprep.subr.mxu0 0.0
    %832 = vmatpush1.msra.mxu0 0.0
    %833 = vmatprep.subr.mxu0 0.0
    %834 = vmatpush1.msra.mxu0 0.0
    %835 = vmatprep.subr.mxu0 0.0
    %836 = vmatpush1.msra.mxu0 0.0
    %837 = vmatprep.subr.mxu0 0.0
    %838 = vmatpush1.msra.mxu0 0.0
    %839 = vmatprep.subr.mxu0 0.0
    %840 = vmatpush1.msra.mxu0 %v200
    %841 = vmatprep.subr.mxu0 0.0
    %842 = vmatpush1.msra.mxu0 %v199
    %843 = vmatprep.subr.mxu0 0.0
    %844 = vmatpush1.msra.mxu0 %v198
    %845 = vmatprep.subr.mxu0 0.0
    %846 = vmatpush1.msra.mxu0 %v197
    %847 = vmatprep.subr.mxu0 0.0
    %848 = vmatpush2.msra.mxu0 0.0
    %849 = vmatprep.subr.mxu0 0.0
    %850 = vmatpush2.msra.mxu0 0.0
    %851 = vmatprep.subr.mxu0 0.0
    %852 = vmatpush2.msra.mxu0 0.0
    %853 = vmatprep.subr.mxu0 0.0
    %854 = vmatpush2.msra.mxu0 0.0
    %855 = vmatprep.subr.mxu0 0.0
    %856 = vmatpush2.msra.mxu0 0.0
    %857 = vmatprep.subr.mxu0 0.0
    %858 = vmatpush2.msra.mxu0 0.0
    %859 = vmatprep.subr.mxu0 0.0
    %860 = vmatpush2.msra.mxu0 0.0
    %861 = vmatprep.subr.mxu0 0.0
    %862 = vmatpush2.msra.mxu0 0.0
    %863 = vmatprep.subr.mxu0 0.0
    %864 = vmatpush2.msra.mxu0 0.0
    %865 = vmatprep.subr.mxu0 0.0
    %866 = vmatpush2.msra.mxu0 0.0
    %867 = vmatprep.subr.mxu0 0.0
    %868 = vmatpush2.msra.mxu0 0.0
    %869 = vmatprep.subr.mxu0 0.0
    %870 = vmatpush2.msra.mxu0 0.0
    %871 = vmatprep.subr.mxu0 0.0
    %872 = vmatpush2.msra.mxu0 0.0
    %873 = vmatprep.subr.mxu0 0.0
    %874 = vmatpush2.msra.mxu0 0.0
    %875 = vmatprep.subr.mxu0 0.0
    %876 = vmatpush2.msra.mxu0 0.0
    %877 = vmatprep.subr.mxu0 0.0
    %878 = vmatpush2.msra.mxu0 0.0
    %879 = vmatprep.mubr.f32.mxu0 0.0
    %880 = vmatmul.mubr.f32.gmra.mxu0 %v813
    %v881 = vpop.f32.mrf.mxu0
    %v882 = vadd.f32 %v807, %v881
    %v883 = vpop.f32.mrf.mxu0
    %884 = vdwg.mxu0
    %v885 = vadd.f32 %v882, %v359
    %v886 = vxor.u32 %v885, 2147483648
    %v887 = vmul.f32 %v886, 1.442695
    %v888 = vpow.pop %v887
    %v889 = vadd.f32 %v888, 1.0
    %v890 = vrcp.pop %v889
    %v891 = vmul.f32 1.0, %v890
    %v892 = vtanh.pop %v885
    %v893 = vmul.f32 %v891, %v728
    %895 = vrot.lane.b32.xlu0 %v892, 64
    %v896 = vpop.permute.xlu0 %895
    %v898 = vmul.f32 %v891, %v896
    %900 = vrot.lane.b32.xlu0 %v898, 32
    %v901 = vpop.permute.xlu0 %900
    %v903 = vadd.f32 %v893, %v901
    %v904 = vtanh.pop %v903
    %906 = vrot.lane.b32.xlu0 %v904, 64
    %v907 = vpop.permute.xlu0 %906
    %v909 = vmul.f32 %v891, %v907
    %911 = vrot.lane.b32.xlu0 %v909, 32
    %v912 = vpop.permute.xlu0 %911
    %v913 = vsel %vm207, %v912, 0
    %915 = vmatprep.subr.mxu0 0.0
    %916 = vmatpush1.msra.mxu0 0.0
    %917 = vmatprep.subr.mxu0 0.0
    %918 = vmatpush1.msra.mxu0 0.0
    %919 = vmatprep.subr.mxu0 0.0
    %920 = vmatpush1.msra.mxu0 0.0
    %921 = vmatprep.subr.mxu0 0.0
    %922 = vmatpush1.msra.mxu0 0.0
    %923 = vmatprep.subr.mxu0 0.0
    %924 = vmatpush1.msra.mxu0 0.0
    %925 = vmatprep.subr.mxu0 0.0
    %926 = vmatpush1.msra.mxu0 0.0
    %927 = vmatprep.subr.mxu0 0.0
    %928 = vmatpush1.msra.mxu0 0.0
    %929 = vmatprep.subr.mxu0 0.0
    %930 = vmatpush1.msra.mxu0 0.0
    %931 = vmatprep.subr.mxu0 0.0
    %932 = vmatpush1.msra.mxu0 0.0
    %933 = vmatprep.subr.mxu0 0.0
    %934 = vmatpush1.msra.mxu0 0.0
    %935 = vmatprep.subr.mxu0 0.0
    %936 = vmatpush1.msra.mxu0 0.0
    %937 = vmatprep.subr.mxu0 0.0
    %938 = vmatpush1.msra.mxu0 0.0
    %939 = vmatprep.subr.mxu0 0.0
    %940 = vmatpush1.msra.mxu0 %v204
    %941 = vmatprep.subr.mxu0 0.0
    %942 = vmatpush1.msra.mxu0 %v203
    %943 = vmatprep.subr.mxu0 0.0
    %944 = vmatpush1.msra.mxu0 %v202
    %945 = vmatprep.subr.mxu0 0.0
    %946 = vmatpush1.msra.mxu0 %v201
    %947 = vmatprep.subr.mxu0 0.0
    %948 = vmatpush2.msra.mxu0 0.0
    %949 = vmatprep.subr.mxu0 0.0
    %950 = vmatpush2.msra.mxu0 0.0
    %951 = vmatprep.subr.mxu0 0.0
    %952 = vmatpush2.msra.mxu0 0.0
    %953 = vmatprep.subr.mxu0 0.0
    %954 = vmatpush2.msra.mxu0 0.0
    %955 = vmatprep.subr.mxu0 0.0
    %956 = vmatpush2.msra.mxu0 0.0
    %957 = vmatprep.subr.mxu0 0.0
    %958 = vmatpush2.msra.mxu0 0.0
    %959 = vmatprep.subr.mxu0 0.0
    %960 = vmatpush2.msra.mxu0 0.0
    %961 = vmatprep.subr.mxu0 0.0
    %962 = vmatpush2.msra.mxu0 0.0
    %963 = vmatprep.subr.mxu0 0.0
    %964 = vmatpush2.msra.mxu0 0.0
    %965 = vmatprep.subr.mxu0 0.0
    %966 = vmatpush2.msra.mxu0 0.0
    %967 = vmatprep.subr.mxu0 0.0
    %968 = vmatpush2.msra.mxu0 0.0
    %969 = vmatprep.subr.mxu0 0.0
    %970 = vmatpush2.msra.mxu0 0.0
    %971 = vmatprep.subr.mxu0 0.0
    %972 = vmatpush2.msra.mxu0 0.0
    %973 = vmatprep.subr.mxu0 0.0
    %974 = vmatpush2.msra.mxu0 0.0
    %975 = vmatprep.subr.mxu0 0.0
    %976 = vmatpush2.msra.mxu0 0.0
    %977 = vmatprep.subr.mxu0 0.0
    %978 = vmatpush2.msra.mxu0 0.0
    %979 = vmatprep.mubr.f32.mxu0 0.0
    %980 = vmatmul.mubr.f32.gmra.mxu0 %v913
    %v981 = vpop.f32.mrf.mxu0
    %v982 = vadd.f32 0.0, %v981
    %v983 = vpop.f32.mrf.mxu0
    %984 = vdwg.mxu0
    %986 = vrot.lane.b32.xlu0 %v193, 32
    %v987 = vpop.permute.xlu0 %986
    %v988 = vsel %vm207, %v987, 0
    %990 = vmatprep.subr.mxu0 0.0
    %991 = vmatpush1.msra.mxu0 0.0
    %992 = vmatprep.subr.mxu0 0.0
    %993 = vmatpush1.msra.mxu0 0.0
    %994 = vmatprep.subr.mxu0 0.0
    %995 = vmatpush1.msra.mxu0 0.0
    %996 = vmatprep.subr.mxu0 0.0
    %997 = vmatpush1.msra.mxu0 0.0
    %998 = vmatprep.subr.mxu0 0.0
    %999 = vmatpush1.msra.mxu0 0.0
    %1000 = vmatprep.subr.mxu0 0.0
    %1001 = vmatpush1.msra.mxu0 0.0
    %1002 = vmatprep.subr.mxu0 0.0
    %1003 = vmatpush1.msra.mxu0 0.0
    %1004 = vmatprep.subr.mxu0 0.0
    %1005 = vmatpush1.msra.mxu0 0.0
    %1006 = vmatprep.subr.mxu0 0.0
    %1007 = vmatpush1.msra.mxu0 0.0
    %1008 = vmatprep.subr.mxu0 0.0
    %1009 = vmatpush1.msra.mxu0 0.0
    %1010 = vmatprep.subr.mxu0 0.0
    %1011 = vmatpush1.msra.mxu0 0.0
    %1012 = vmatprep.subr.mxu0 0.0
    %1013 = vmatpush1.msra.mxu0 0.0
    %1014 = vmatprep.subr.mxu0 0.0
    %1015 = vmatpush1.msra.mxu0 %v200
    %1016 = vmatprep.subr.mxu0 0.0
    %1017 = vmatpush1.msra.mxu0 %v199
    %1018 = vmatprep.subr.mxu0 0.0
    %1019 = vmatpush1.msra.mxu0 %v198
    %1020 = vmatprep.subr.mxu0 0.0
    %1021 = vmatpush1.msra.mxu0 %v197
    %1022 = vmatprep.subr.mxu0 0.0
    %1023 = vmatpush2.msra.mxu0 0.0
    %1024 = vmatprep.subr.mxu0 0.0
    %1025 = vmatpush2.msra.mxu0 0.0
    %1026 = vmatprep.subr.mxu0 0.0
    %1027 = vmatpush2.msra.mxu0 0.0
    %1028 = vmatprep.subr.mxu0 0.0
    %1029 = vmatpush2.msra.mxu0 0.0
    %1030 = vmatprep.subr.mxu0 0.0
    %1031 = vmatpush2.msra.mxu0 0.0
    %1032 = vmatprep.subr.mxu0 0.0
    %1033 = vmatpush2.msra.mxu0 0.0
    %1034 = vmatprep.subr.mxu0 0.0
    %1035 = vmatpush2.msra.mxu0 0.0
    %1036 = vmatprep.subr.mxu0 0.0
    %1037 = vmatpush2.msra.mxu0 0.0
    %1038 = vmatprep.subr.mxu0 0.0
    %1039 = vmatpush2.msra.mxu0 0.0
    %1040 = vmatprep.subr.mxu0 0.0
    %1041 = vmatpush2.msra.mxu0 0.0
    %1042 = vmatprep.subr.mxu0 0.0
    %1043 = vmatpush2.msra.mxu0 0.0
    %1044 = vmatprep.subr.mxu0 0.0
    %1045 = vmatpush2.msra.mxu0 0.0
    %1046 = vmatprep.subr.mxu0 0.0
    %1047 = vmatpush2.msra.mxu0 0.0
    %1048 = vmatprep.subr.mxu0 0.0
    %1049 = vmatpush2.msra.mxu0 0.0
    %1050 = vmatprep.subr.mxu0 0.0
    %1051 = vmatpush2.msra.mxu0 0.0
    %1052 = vmatprep.subr.mxu0 0.0
    %1053 = vmatpush2.msra.mxu0 0.0
    %1054 = vmatprep.mubr.f32.mxu0 0.0
    %1055 = vmatmul.mubr.f32.gmra.mxu0 %v988
    %v1056 = vpop.f32.mrf.mxu0
    %v1057 = vadd.f32 %v982, %v1056
    %v1058 = vpop.f32.mrf.mxu0
    %1059 = vdwg.mxu0
    %v1060 = vadd.f32 %v1057, %v359
    %v1061 = vxor.u32 %v1060, 2147483648
    %v1062 = vmul.f32 %v1061, 1.442695
    %v1063 = vpow.pop %v1062
    %v1064 = vadd.f32 %v1063, 1.0
    %v1065 = vrcp.pop %v1064
    %v1066 = vmul.f32 1.0, %v1065
    %v1067 = vtanh.pop %v1060
    %v1068 = vmul.f32 %v1066, %v903
    %1070 = vrot.lane.b32.xlu0 %v1067, 64
    %v1071 = vpop.permute.xlu0 %1070
    %v1073 = vmul.f32 %v1066, %v1071
    %1075 = vrot.lane.b32.xlu0 %v1073, 32
    %v1076 = vpop.permute.xlu0 %1075
    %v1078 = vadd.f32 %v1068, %v1076
    %v1079 = vtanh.pop %v1078
    %1081 = vrot.lane.b32.xlu0 %v1079, 64
    %v1082 = vpop.permute.xlu0 %1081
    %v1084 = vmul.f32 %v1066, %v1082
    %1086 = vrot.lane.b32.xlu0 %v1084, 32
    %v1087 = vpop.permute.xlu0 %1086
    %v1088 = vsel %vm207, %v1087, 0
    %1090 = vmatprep.subr.mxu0 0.0
    %1091 = vmatpush1.msra.mxu0 0.0
    %1092 = vmatprep.subr.mxu0 0.0
    %1093 = vmatpush1.msra.mxu0 0.0
    %1094 = vmatprep.subr.mxu0 0.0
    %1095 = vmatpush1.msra.mxu0 0.0
    %1096 = vmatprep.subr.mxu0 0.0
    %1097 = vmatpush1.msra.mxu0 0.0
    %1098 = vmatprep.subr.mxu0 0.0
    %1099 = vmatpush1.msra.mxu0 0.0
    %1100 = vmatprep.subr.mxu0 0.0
    %1101 = vmatpush1.msra.mxu0 0.0
    %1102 = vmatprep.subr.mxu0 0.0
    %1103 = vmatpush1.msra.mxu0 0.0
    %1104 = vmatprep.subr.mxu0 0.0
    %1105 = vmatpush1.msra.mxu0 0.0
    %1106 = vmatprep.subr.mxu0 0.0
    %1107 = vmatpush1.msra.mxu0 0.0
    %1108 = vmatprep.subr.mxu0 0.0
    %1109 = vmatpush1.msra.mxu0 0.0
    %1110 = vmatprep.subr.mxu0 0.0
    %1111 = vmatpush1.msra.mxu0 0.0
    %1112 = vmatprep.subr.mxu0 0.0
    %1113 = vmatpush1.msra.mxu0 0.0
    %1114 = vmatprep.subr.mxu0 0.0
    %1115 = vmatpush1.msra.mxu0 %v204
    %1116 = vmatprep.subr.mxu0 0.0
    %1117 = vmatpush1.msra.mxu0 %v203
    %1118 = vmatprep.subr.mxu0 0.0
    %1119 = vmatpush1.msra.mxu0 %v202
    %1120 = vmatprep.subr.mxu0 0.0
    %1121 = vmatpush1.msra.mxu0 %v201
    %1122 = vmatprep.subr.mxu0 0.0
    %1123 = vmatpush2.msra.mxu0 0.0
    %1124 = vmatprep.subr.mxu0 0.0
    %1125 = vmatpush2.msra.mxu0 0.0
    %1126 = vmatprep.subr.mxu0 0.0
    %1127 = vmatpush2.msra.mxu0 0.0
    %1128 = vmatprep.subr.mxu0 0.0
    %1129 = vmatpush2.msra.mxu0 0.0
    %1130 = vmatprep.subr.mxu0 0.0
    %1131 = vmatpush2.msra.mxu0 0.0
    %1132 = vmatprep.subr.mxu0 0.0
    %1133 = vmatpush2.msra.mxu0 0.0
    %1134 = vmatprep.subr.mxu0 0.0
    %1135 = vmatpush2.msra.mxu0 0.0
    %1136 = vmatprep.subr.mxu0 0.0
    %1137 = vmatpush2.msra.mxu0 0.0
    %1138 = vmatprep.subr.mxu0 0.0
    %1139 = vmatpush2.msra.mxu0 0.0
    %1140 = vmatprep.subr.mxu0 0.0
    %1141 = vmatpush2.msra.mxu0 0.0
    %1142 = vmatprep.subr.mxu0 0.0
    %1143 = vmatpush2.msra.mxu0 0.0
    %1144 = vmatprep.subr.mxu0 0.0
    %1145 = vmatpush2.msra.mxu0 0.0
    %1146 = vmatprep.subr.mxu0 0.0
    %1147 = vmatpush2.msra.mxu0 0.0
    %1148 = vmatprep.subr.mxu0 0.0
    %1149 = vmatpush2.msra.mxu0 0.0
    %1150 = vmatprep.subr.mxu0 0.0
    %1151 = vmatpush2.msra.mxu0 0.0
    %1152 = vmatprep.subr.mxu0 0.0
    %1153 = vmatpush2.msra.mxu0 0.0
    %1154 = vmatprep.mubr.f32.mxu0 0.0
    %1155 = vmatmul.mubr.f32.gmra.mxu0 %v1088
    %v1156 = vpop.f32.mrf.mxu0
    %v1157 = vadd.f32 0.0, %v1156
    %v1158 = vpop.f32.mrf.mxu0
    %1159 = vdwg.mxu0
    %1161 = vrot.lane.b32.xlu0 %v194, 32
    %v1162 = vpop.permute.xlu0 %1161
    %v1163 = vsel %vm207, %v1162, 0
    %1165 = vmatprep.subr.mxu0 0.0
    %1166 = vmatpush1.msra.mxu0 0.0
    %1167 = vmatprep.subr.mxu0 0.0
    %1168 = vmatpush1.msra.mxu0 0.0
    %1169 = vmatprep.subr.mxu0 0.0
    %1170 = vmatpush1.msra.mxu0 0.0
    %1171 = vmatprep.subr.mxu0 0.0
    %1172 = vmatpush1.msra.mxu0 0.0
    %1173 = vmatprep.subr.mxu0 0.0
    %1174 = vmatpush1.msra.mxu0 0.0
    %1175 = vmatprep.subr.mxu0 0.0
    %1176 = vmatpush1.msra.mxu0 0.0
    %1177 = vmatprep.subr.mxu0 0.0
    %1178 = vmatpush1.msra.mxu0 0.0
    %1179 = vmatprep.subr.mxu0 0.0
    %1180 = vmatpush1.msra.mxu0 0.0
    %1181 = vmatprep.subr.mxu0 0.0
    %1182 = vmatpush1.msra.mxu0 0.0
    %1183 = vmatprep.subr.mxu0 0.0
    %1184 = vmatpush1.msra.mxu0 0.0
    %1185 = vmatprep.subr.mxu0 0.0
    %1186 = vmatpush1.msra.mxu0 0.0
    %1187 = vmatprep.subr.mxu0 0.0
    %1188 = vmatpush1.msra.mxu0 0.0
    %1189 = vmatprep.subr.mxu0 0.0
    %1190 = vmatpush1.msra.mxu0 %v200
    %1191 = vmatprep.subr.mxu0 0.0
    %1192 = vmatpush1.msra.mxu0 %v199
    %1193 = vmatprep.subr.mxu0 0.0
    %1194 = vmatpush1.msra.mxu0 %v198
    %1195 = vmatprep.subr.mxu0 0.0
    %1196 = vmatpush1.msra.mxu0 %v197
    %1197 = vmatprep.subr.mxu0 0.0
    %1198 = vmatpush2.msra.mxu0 0.0
    %1199 = vmatprep.subr.mxu0 0.0
    %1200 = vmatpush2.msra.mxu0 0.0
    %1201 = vmatprep.subr.mxu0 0.0
    %1202 = vmatpush2.msra.mxu0 0.0
    %1203 = vmatprep.subr.mxu0 0.0
    %1204 = vmatpush2.msra.mxu0 0.0
    %1205 = vmatprep.subr.mxu0 0.0
    %1206 = vmatpush2.msra.mxu0 0.0
    %1207 = vmatprep.subr.mxu0 0.0
    %1208 = vmatpush2.msra.mxu0 0.0
    %1209 = vmatprep.subr.mxu0 0.0
    %1210 = vmatpush2.msra.mxu0 0.0
    %1211 = vmatprep.subr.mxu0 0.0
    %1212 = vmatpush2.msra.mxu0 0.0
    %1213 = vmatprep.subr.mxu0 0.0
    %1214 = vmatpush2.msra.mxu0 0.0
    %1215 = vmatprep.subr.mxu0 0.0
    %1216 = vmatpush2.msra.mxu0 0.0
    %1217 = vmatprep.subr.mxu0 0.0
    %1218 = vmatpush2.msra.mxu0 0.0
    %1219 = vmatprep.subr.mxu0 0.0
    %1220 = vmatpush2.msra.mxu0 0.0
    %1221 = vmatprep.subr.mxu0 0.0
    %1222 = vmatpush2.msra.mxu0 0.0
    %1223 = vmatprep.subr.mxu0 0.0
    %1224 = vmatpush2.msra.mxu0 0.0
    %1225 = vmatprep.subr.mxu0 0.0
    %1226 = vmatpush2.msra.mxu0 0.0
    %1227 = vmatprep.subr.mxu0 0.0
    %1228 = vmatpush2.msra.mxu0 0.0
    %1229 = vmatprep.mubr.f32.mxu0 0.0
    %1230 = vmatmul.mubr.f32.gmra.mxu0 %v1163
    %v1231 = vpop.f32.mrf.mxu0
    %v1232 = vadd.f32 %v1157, %v1231
    %v1233 = vpop.f32.mrf.mxu0
    %1234 = vdwg.mxu0
    %v1235 = vadd.f32 %v1232, %v359
    %v1236 = vxor.u32 %v1235, 2147483648
    %v1237 = vmul.f32 %v1236, 1.442695
    %v1238 = vpow.pop %v1237
    %v1239 = vadd.f32 %v1238, 1.0
    %v1240 = vrcp.pop %v1239
    %v1241 = vmul.f32 1.0, %v1240
    %v1242 = vtanh.pop %v1235
    %v1243 = vmul.f32 %v1241, %v1078
    %1245 = vrot.lane.b32.xlu0 %v1242, 64
    %v1246 = vpop.permute.xlu0 %1245
    %v1248 = vmul.f32 %v1241, %v1246
    %1250 = vrot.lane.b32.xlu0 %v1248, 32
    %v1251 = vpop.permute.xlu0 %1250
    %v1253 = vadd.f32 %v1243, %v1251
    %v1254 = vtanh.pop %v1253
    %1256 = vrot.lane.b32.xlu0 %v1254, 64
    %v1257 = vpop.permute.xlu0 %1256
    %v1259 = vmul.f32 %v1241, %v1257
    %1261 = vrot.lane.b32.xlu0 %v1259, 32
    %v1262 = vpop.permute.xlu0 %1261
    %v1263 = vsel %vm207, %v1262, 0
    %1265 = vmatprep.subr.mxu0 0.0
    %1266 = vmatpush1.msra.mxu0 0.0
    %1267 = vmatprep.subr.mxu0 0.0
    %1268 = vmatpush1.msra.mxu0 0.0
    %1269 = vmatprep.subr.mxu0 0.0
    %1270 = vmatpush1.msra.mxu0 0.0
    %1271 = vmatprep.subr.mxu0 0.0
    %1272 = vmatpush1.msra.mxu0 0.0
    %1273 = vmatprep.subr.mxu0 0.0
    %1274 = vmatpush1.msra.mxu0 0.0
    %1275 = vmatprep.subr.mxu0 0.0
    %1276 = vmatpush1.msra.mxu0 0.0
    %1277 = vmatprep.subr.mxu0 0.0
    %1278 = vmatpush1.msra.mxu0 0.0
    %1279 = vmatprep.subr.mxu0 0.0
    %1280 = vmatpush1.msra.mxu0 0.0
    %1281 = vmatprep.subr.mxu0 0.0
    %1282 = vmatpush1.msra.mxu0 0.0
    %1283 = vmatprep.subr.mxu0 0.0
    %1284 = vmatpush1.msra.mxu0 0.0
    %1285 = vmatprep.subr.mxu0 0.0
    %1286 = vmatpush1.msra.mxu0 0.0
    %1287 = vmatprep.subr.mxu0 0.0
    %1288 = vmatpush1.msra.mxu0 0.0
    %1289 = vmatprep.subr.mxu0 0.0
    %1290 = vmatpush1.msra.mxu0 %v204
    %1291 = vmatprep.subr.mxu0 0.0
    %1292 = vmatpush1.msra.mxu0 %v203
    %1293 = vmatprep.subr.mxu0 0.0
    %1294 = vmatpush1.msra.mxu0 %v202
    %1295 = vmatprep.subr.mxu0 0.0
    %1296 = vmatpush1.msra.mxu0 %v201
    %1297 = vmatprep.subr.mxu0 0.0
    %1298 = vmatpush2.msra.mxu0 0.0
    %1299 = vmatprep.subr.mxu0 0.0
    %1300 = vmatpush2.msra.mxu0 0.0
    %1301 = vmatprep.subr.mxu0 0.0
    %1302 = vmatpush2.msra.mxu0 0.0
    %1303 = vmatprep.subr.mxu0 0.0
    %1304 = vmatpush2.msra.mxu0 0.0
    %1305 = vmatprep.subr.mxu0 0.0
    %1306 = vmatpush2.msra.mxu0 0.0
    %1307 = vmatprep.subr.mxu0 0.0
    %1308 = vmatpush2.msra.mxu0 0.0
    %1309 = vmatprep.subr.mxu0 0.0
    %1310 = vmatpush2.msra.mxu0 0.0
    %1311 = vmatprep.subr.mxu0 0.0
    %1312 = vmatpush2.msra.mxu0 0.0
    %1313 = vmatprep.subr.mxu0 0.0
    %1314 = vmatpush2.msra.mxu0 0.0
    %1315 = vmatprep.subr.mxu0 0.0
    %1316 = vmatpush2.msra.mxu0 0.0
    %1317 = vmatprep.subr.mxu0 0.0
    %1318 = vmatpush2.msra.mxu0 0.0
    %1319 = vmatprep.subr.mxu0 0.0
    %1320 = vmatpush2.msra.mxu0 0.0
    %1321 = vmatprep.subr.mxu0 0.0
    %1322 = vmatpush2.msra.mxu0 0.0
    %1323 = vmatprep.subr.mxu0 0.0
    %1324 = vmatpush2.msra.mxu0 0.0
    %1325 = vmatprep.subr.mxu0 0.0
    %1326 = vmatpush2.msra.mxu0 0.0
    %1327 = vmatprep.subr.mxu0 0.0
    %1328 = vmatpush2.msra.mxu0 0.0
    %1329 = vmatprep.mubr.f32.mxu0 0.0
    %1330 = vmatmul.mubr.f32.gmra.mxu0 %v1263
    %v1331 = vpop.f32.mrf.mxu0
    %v1332 = vadd.f32 0.0, %v1331
    %v1333 = vpop.f32.mrf.mxu0
    %1334 = vdwg.mxu0
    %1336 = vrot.lane.b32.xlu0 %v195, 32
    %v1337 = vpop.permute.xlu0 %1336
    %v1338 = vsel %vm207, %v1337, 0
    %1340 = vmatprep.subr.mxu0 0.0
    %1341 = vmatpush1.msra.mxu0 0.0
    %1342 = vmatprep.subr.mxu0 0.0
    %1343 = vmatpush1.msra.mxu0 0.0
    %1344 = vmatprep.subr.mxu0 0.0
    %1345 = vmatpush1.msra.mxu0 0.0
    %1346 = vmatprep.subr.mxu0 0.0
    %1347 = vmatpush1.msra.mxu0 0.0
    %1348 = vmatprep.subr.mxu0 0.0
    %1349 = vmatpush1.msra.mxu0 0.0
    %1350 = vmatprep.subr.mxu0 0.0
    %1351 = vmatpush1.msra.mxu0 0.0
    %1352 = vmatprep.subr.mxu0 0.0
    %1353 = vmatpush1.msra.mxu0 0.0
    %1354 = vmatprep.subr.mxu0 0.0
    %1355 = vmatpush1.msra.mxu0 0.0
    %1356 = vmatprep.subr.mxu0 0.0
    %1357 = vmatpush1.msra.mxu0 0.0
    %1358 = vmatprep.subr.mxu0 0.0
    %1359 = vmatpush1.msra.mxu0 0.0
    %1360 = vmatprep.subr.mxu0 0.0
    %1361 = vmatpush1.msra.mxu0 0.0
    %1362 = vmatprep.subr.mxu0 0.0
    %1363 = vmatpush1.msra.mxu0 0.0
    %1364 = vmatprep.subr.mxu0 0.0
    %1365 = vmatpush1.msra.mxu0 %v200
    %1366 = vmatprep.subr.mxu0 0.0
    %1367 = vmatpush1.msra.mxu0 %v199
    %1368 = vmatprep.subr.mxu0 0.0
    %1369 = vmatpush1.msra.mxu0 %v198
    %1370 = vmatprep.subr.mxu0 0.0
    %1371 = vmatpush1.msra.mxu0 %v197
    %1372 = vmatprep.subr.mxu0 0.0
    %1373 = vmatpush2.msra.mxu0 0.0
    %1374 = vmatprep.subr.mxu0 0.0
    %1375 = vmatpush2.msra.mxu0 0.0
    %1376 = vmatprep.subr.mxu0 0.0
    %1377 = vmatpush2.msra.mxu0 0.0
    %1378 = vmatprep.subr.mxu0 0.0
    %1379 = vmatpush2.msra.mxu0 0.0
    %1380 = vmatprep.subr.mxu0 0.0
    %1381 = vmatpush2.msra.mxu0 0.0
    %1382 = vmatprep.subr.mxu0 0.0
    %1383 = vmatpush2.msra.mxu0 0.0
    %1384 = vmatprep.subr.mxu0 0.0
    %1385 = vmatpush2.msra.mxu0 0.0
    %1386 = vmatprep.subr.mxu0 0.0
    %1387 = vmatpush2.msra.mxu0 0.0
    %1388 = vmatprep.subr.mxu0 0.0
    %1389 = vmatpush2.msra.mxu0 0.0
    %1390 = vmatprep.subr.mxu0 0.0
    %1391 = vmatpush2.msra.mxu0 0.0
    %1392 = vmatprep.subr.mxu0 0.0
    %1393 = vmatpush2.msra.mxu0 0.0
    %1394 = vmatprep.subr.mxu0 0.0
    %1395 = vmatpush2.msra.mxu0 0.0
    %1396 = vmatprep.subr.mxu0 0.0
    %1397 = vmatpush2.msra.mxu0 0.0
    %1398 = vmatprep.subr.mxu0 0.0
    %1399 = vmatpush2.msra.mxu0 0.0
    %1400 = vmatprep.subr.mxu0 0.0
    %1401 = vmatpush2.msra.mxu0 0.0
    %1402 = vmatprep.subr.mxu0 0.0
    %1403 = vmatpush2.msra.mxu0 0.0
    %1404 = vmatprep.mubr.f32.mxu0 0.0
    %1405 = vmatmul.mubr.f32.gmra.mxu0 %v1338
    %v1406 = vpop.f32.mrf.mxu0
    %v1407 = vadd.f32 %v1332, %v1406
    %v1408 = vpop.f32.mrf.mxu0
    %1409 = vdwg.mxu0
    %v1410 = vadd.f32 %v1407, %v359
    %v1411 = vxor.u32 %v1410, 2147483648
    %v1412 = vmul.f32 %v1411, 1.442695
    %v1413 = vpow.pop %v1412
    %v1414 = vadd.f32 %v1413, 1.0
    %v1415 = vrcp.pop %v1414
    %v1416 = vmul.f32 1.0, %v1415
    %v1417 = vtanh.pop %v1410
    %v1418 = vmul.f32 %v1416, %v1253
    %1420 = vrot.lane.b32.xlu0 %v1417, 64
    %v1421 = vpop.permute.xlu0 %1420
    %v1423 = vmul.f32 %v1416, %v1421
    %1425 = vrot.lane.b32.xlu0 %v1423, 32
    %v1426 = vpop.permute.xlu0 %1425
    %v1428 = vadd.f32 %v1418, %v1426
    %v1429 = vtanh.pop %v1428
    %1431 = vrot.lane.b32.xlu0 %v1429, 64
    %v1432 = vpop.permute.xlu0 %1431
    %v1434 = vmul.f32 %v1416, %v1432
    %1436 = vrot.lane.b32.xlu0 %v1434, 32
    %v1437 = vpop.permute.xlu0 %1436
    %v1438 = vsel %vm207, %v1437, 0
    %1440 = vmatprep.subr.mxu0 0.0
    %1441 = vmatpush1.msra.mxu0 0.0
    %1442 = vmatprep.subr.mxu0 0.0
    %1443 = vmatpush1.msra.mxu0 0.0
    %1444 = vmatprep.subr.mxu0 0.0
    %1445 = vmatpush1.msra.mxu0 0.0
    %1446 = vmatprep.subr.mxu0 0.0
    %1447 = vmatpush1.msra.mxu0 0.0
    %1448 = vmatprep.subr.mxu0 0.0
    %1449 = vmatpush1.msra.mxu0 0.0
    %1450 = vmatprep.subr.mxu0 0.0
    %1451 = vmatpush1.msra.mxu0 0.0
    %1452 = vmatprep.subr.mxu0 0.0
    %1453 = vmatpush1.msra.mxu0 0.0
    %1454 = vmatprep.subr.mxu0 0.0
    %1455 = vmatpush1.msra.mxu0 0.0
    %1456 = vmatprep.subr.mxu0 0.0
    %1457 = vmatpush1.msra.mxu0 0.0
    %1458 = vmatprep.subr.mxu0 0.0
    %1459 = vmatpush1.msra.mxu0 0.0
    %1460 = vmatprep.subr.mxu0 0.0
    %1461 = vmatpush1.msra.mxu0 0.0
    %1462 = vmatprep.subr.mxu0 0.0
    %1463 = vmatpush1.msra.mxu0 0.0
    %1464 = vmatprep.subr.mxu0 0.0
    %1465 = vmatpush1.msra.mxu0 %v204
    %1466 = vmatprep.subr.mxu0 0.0
    %1467 = vmatpush1.msra.mxu0 %v203
    %1468 = vmatprep.subr.mxu0 0.0
    %1469 = vmatpush1.msra.mxu0 %v202
    %1470 = vmatprep.subr.mxu0 0.0
    %1471 = vmatpush1.msra.mxu0 %v201
    %1472 = vmatprep.subr.mxu0 0.0
    %1473 = vmatpush2.msra.mxu0 0.0
    %1474 = vmatprep.subr.mxu0 0.0
    %1475 = vmatpush2.msra.mxu0 0.0
    %1476 = vmatprep.subr.mxu0 0.0
    %1477 = vmatpush2.msra.mxu0 0.0
    %1478 = vmatprep.subr.mxu0 0.0
    %1479 = vmatpush2.msra.mxu0 0.0
    %1480 = vmatprep.subr.mxu0 0.0
    %1481 = vmatpush2.msra.mxu0 0.0
    %1482 = vmatprep.subr.mxu0 0.0
    %1483 = vmatpush2.msra.mxu0 0.0
    %1484 = vmatprep.subr.mxu0 0.0
    %1485 = vmatpush2.msra.mxu0 0.0
    %1486 = vmatprep.subr.mxu0 0.0
    %1487 = vmatpush2.msra.mxu0 0.0
    %1488 = vmatprep.subr.mxu0 0.0
    %1489 = vmatpush2.msra.mxu0 0.0
    %1490 = vmatprep.subr.mxu0 0.0
    %1491 = vmatpush2.msra.mxu0 0.0
    %1492 = vmatprep.subr.mxu0 0.0
    %1493 = vmatpush2.msra.mxu0 0.0
    %1494 = vmatprep.subr.mxu0 0.0
    %1495 = vmatpush2.msra.mxu0 0.0
    %1496 = vmatprep.subr.mxu0 0.0
    %1497 = vmatpush2.msra.mxu0 0.0
    %1498 = vmatprep.subr.mxu0 0.0
    %1499 = vmatpush2.msra.mxu0 0.0
    %1500 = vmatprep.subr.mxu0 0.0
    %1501 = vmatpush2.msra.mxu0 0.0
    %1502 = vmatprep.subr.mxu0 0.0
    %1503 = vmatpush2.msra.mxu0 0.0
    %1504 = vmatprep.mubr.f32.mxu0 0.0
    %1505 = vmatmul.mubr.f32.gmra.mxu0 %v1438
    %v1506 = vpop.f32.mrf.mxu0
    %v1507 = vadd.f32 0.0, %v1506
    %v1508 = vpop.f32.mrf.mxu0
    %1509 = vdwg.mxu0
    %1511 = vrot.lane.b32.xlu0 %v196, 32
    %v1512 = vpop.permute.xlu0 %1511
    %v1513 = vsel %vm207, %v1512, 0
    %1515 = vmatprep.subr.mxu0 0.0
    %1516 = vmatpush1.msra.mxu0 0.0
    %1517 = vmatprep.subr.mxu0 0.0
    %1518 = vmatpush1.msra.mxu0 0.0
    %1519 = vmatprep.subr.mxu0 0.0
    %1520 = vmatpush1.msra.mxu0 0.0
    %1521 = vmatprep.subr.mxu0 0.0
    %1522 = vmatpush1.msra.mxu0 0.0
    %1523 = vmatprep.subr.mxu0 0.0
    %1524 = vmatpush1.msra.mxu0 0.0
    %1525 = vmatprep.subr.mxu0 0.0
    %1526 = vmatpush1.msra.mxu0 0.0
    %1527 = vmatprep.subr.mxu0 0.0
    %1528 = vmatpush1.msra.mxu0 0.0
    %1529 = vmatprep.subr.mxu0 0.0
    %1530 = vmatpush1.msra.mxu0 0.0
    %1531 = vmatprep.subr.mxu0 0.0
    %1532 = vmatpush1.msra.mxu0 0.0
    %1533 = vmatprep.subr.mxu0 0.0
    %1534 = vmatpush1.msra.mxu0 0.0
    %1535 = vmatprep.subr.mxu0 0.0
    %1536 = vmatpush1.msra.mxu0 0.0
    %1537 = vmatprep.subr.mxu0 0.0
    %1538 = vmatpush1.msra.mxu0 0.0
    %1539 = vmatprep.subr.mxu0 0.0
    %1540 = vmatpush1.msra.mxu0 %v200
    %1541 = vmatprep.subr.mxu0 0.0
    %1542 = vmatpush1.msra.mxu0 %v199
    %1543 = vmatprep.subr.mxu0 0.0
    %1544 = vmatpush1.msra.mxu0 %v198
    %1545 = vmatprep.subr.mxu0 0.0
    %1546 = vmatpush1.msra.mxu0 %v197
    %1547 = vmatprep.subr.mxu0 0.0
    %1548 = vmatpush2.msra.mxu0 0.0
    %1549 = vmatprep.subr.mxu0 0.0
    %1550 = vmatpush2.msra.mxu0 0.0
    %1551 = vmatprep.subr.mxu0 0.0
    %1552 = vmatpush2.msra.mxu0 0.0
    %1553 = vmatprep.subr.mxu0 0.0
    %1554 = vmatpush2.msra.mxu0 0.0
    %1555 = vmatprep.subr.mxu0 0.0
    %1556 = vmatpush2.msra.mxu0 0.0
    %1557 = vmatprep.subr.mxu0 0.0
    %1558 = vmatpush2.msra.mxu0 0.0
    %1559 = vmatprep.subr.mxu0 0.0
    %1560 = vmatpush2.msra.mxu0 0.0
    %1561 = vmatprep.subr.mxu0 0.0
    %1562 = vmatpush2.msra.mxu0 0.0
    %1563 = vmatprep.subr.mxu0 0.0
    %1564 = vmatpush2.msra.mxu0 0.0
    %1565 = vmatprep.subr.mxu0 0.0
    %1566 = vmatpush2.msra.mxu0 0.0
    %1567 = vmatprep.subr.mxu0 0.0
    %1568 = vmatpush2.msra.mxu0 0.0
    %1569 = vmatprep.subr.mxu0 0.0
    %1570 = vmatpush2.msra.mxu0 0.0
    %1571 = vmatprep.subr.mxu0 0.0
    %1572 = vmatpush2.msra.mxu0 0.0
    %1573 = vmatprep.subr.mxu0 0.0
    %1574 = vmatpush2.msra.mxu0 0.0
    %1575 = vmatprep.subr.mxu0 0.0
    %1576 = vmatpush2.msra.mxu0 0.0
    %1577 = vmatprep.subr.mxu0 0.0
    %1578 = vmatpush2.msra.mxu0 0.0
    %1579 = vmatprep.mubr.f32.mxu0 0.0
    %1580 = vmatmul.mubr.f32.gmra.mxu0 %v1513
    %v1581 = vpop.f32.mrf.mxu0
    %v1582 = vadd.f32 %v1507, %v1581
    %v1583 = vpop.f32.mrf.mxu0
    %1584 = vdwg.mxu0
    %v1585 = vadd.f32 %v1582, %v359
    %v1586 = vxor.u32 %v1585, 2147483648
    %v1587 = vmul.f32 %v1586, 1.442695
    %v1588 = vpow.pop %v1587
    %v1589 = vadd.f32 %v1588, 1.0
    %v1590 = vrcp.pop %v1589
    %v1591 = vmul.f32 1.0, %v1590
    %v1592 = vtanh.pop %v1585
    %v1593 = vmul.f32 %v1591, %v1428
    %1595 = vrot.lane.b32.xlu0 %v1592, 64
    %v1596 = vpop.permute.xlu0 %1595
    %v1598 = vmul.f32 %v1591, %v1596
    %1600 = vrot.lane.b32.xlu0 %v1598, 32
    %v1601 = vpop.permute.xlu0 %1600
    %v1603 = vadd.f32 %v1593, %v1601
    %v1604 = vtanh.pop %v1603
    %1606 = vrot.lane.b32.xlu0 %v1604, 64
    %v1607 = vpop.permute.xlu0 %1606
    %v1609 = vmul.f32 %v1591, %v1607
    %1611 = vrot.lane.b32.xlu0 %v1609, 32
    %v1612 = vpop.permute.xlu0 %1611
    %v1614 = vsel %vm207, %v1612, %v1603
    %vm1615 = vcmask 523264
    %1616 = vst.msk [vmem:[%s4] sm:$0xff] %vm1615, %v1614
    %v1617 = vld [vmem:[#allocation6 + $0xc0] sm:$0xff]
    %v1618 = vld [vmem:[#allocation6 + $0xc8] sm:$0xff]
    %v1619 = vld [vmem:[#allocation6 + $0xd0] sm:$0xff]
    %v1620 = vld [vmem:[#allocation6 + $0xd8] sm:$0xff]
    %v1621 = vld [vmem:[#allocation6 + $0xe0] sm:$0xff]
    %v1622 = vld [vmem:[#allocation6 + $0xe8] sm:$0xff]
    %v1623 = vld [vmem:[#allocation6 + $0xf0] sm:$0xff]
    %v1624 = vld [vmem:[#allocation6 + $0xf8] sm:$0xff]
    %v1625 = vld [vmem:[#allocation6 + $0x100] sm:$0xff]
    %v1626 = vld [vmem:[#allocation6 + $0x108] sm:$0xff]
    %v1627 = vld [vmem:[#allocation6 + $0x110] sm:$0xff]
    %v1628 = vld [vmem:[#allocation6 + $0x118] sm:$0xff]
    %v1629 = vld [vmem:[#allocation6 + $0x120] sm:$0xff]
    %v1630 = vld [vmem:[#allocation6 + $0x128] sm:$0xff]
    %v1631 = vld [vmem:[#allocation6 + $0x130] sm:$0xff]
    %v1632 = vld [vmem:[#allocation6 + $0x138] sm:$0xff]
    %1633 = vmatprep.subr.mxu0 0.0
    %1634 = vmatpush1.msra.mxu0 %v1632
    %1635 = vmatprep.subr.mxu0 0.0
    %1636 = vmatpush1.msra.mxu0 %v1631
    %1637 = vmatprep.subr.mxu0 0.0
    %1638 = vmatpush1.msra.mxu0 %v1630
    %1639 = vmatprep.subr.mxu0 0.0
    %1640 = vmatpush1.msra.mxu0 %v1629
    %1641 = vmatprep.subr.mxu0 0.0
    %1642 = vmatpush1.msra.mxu0 %v1628
    %1643 = vmatprep.subr.mxu0 0.0
    %1644 = vmatpush1.msra.mxu0 %v1627
    %1645 = vmatprep.subr.mxu0 0.0
    %1646 = vmatpush1.msra.mxu0 %v1626
    %1647 = vmatprep.subr.mxu0 0.0
    %1648 = vmatpush1.msra.mxu0 %v1625
    %1649 = vmatprep.subr.mxu0 0.0
    %1650 = vmatpush1.msra.mxu0 %v1624
    %1651 = vmatprep.subr.mxu0 0.0
    %1652 = vmatpush1.msra.mxu0 %v1623
    %1653 = vmatprep.subr.mxu0 0.0
    %1654 = vmatpush1.msra.mxu0 %v1622
    %1655 = vmatprep.subr.mxu0 0.0
    %1656 = vmatpush1.msra.mxu0 %v1621
    %1657 = vmatprep.subr.mxu0 0.0
    %1658 = vmatpush1.msra.mxu0 %v1620
    %1659 = vmatprep.subr.mxu0 0.0
    %1660 = vmatpush1.msra.mxu0 %v1619
    %1661 = vmatprep.subr.mxu0 0.0
    %1662 = vmatpush1.msra.mxu0 %v1618
    %1663 = vmatprep.subr.mxu0 0.0
    %1664 = vmatpush1.msra.mxu0 %v1617
    %1665 = vmatprep.subr.mxu0 0.0
    %1666 = vmatpush2.msra.mxu0 0.0
    %1667 = vmatprep.subr.mxu0 0.0
    %1668 = vmatpush2.msra.mxu0 0.0
    %1669 = vmatprep.subr.mxu0 0.0
    %1670 = vmatpush2.msra.mxu0 0.0
    %1671 = vmatprep.subr.mxu0 0.0
    %1672 = vmatpush2.msra.mxu0 0.0
    %1673 = vmatprep.subr.mxu0 0.0
    %1674 = vmatpush2.msra.mxu0 0.0
    %1675 = vmatprep.subr.mxu0 0.0
    %1676 = vmatpush2.msra.mxu0 0.0
    %1677 = vmatprep.subr.mxu0 0.0
    %1678 = vmatpush2.msra.mxu0 0.0
    %1679 = vmatprep.subr.mxu0 0.0
    %1680 = vmatpush2.msra.mxu0 0.0
    %1681 = vmatprep.subr.mxu0 0.0
    %1682 = vmatpush2.msra.mxu0 0.0
    %1683 = vmatprep.subr.mxu0 0.0
    %1684 = vmatpush2.msra.mxu0 0.0
    %1685 = vmatprep.subr.mxu0 0.0
    %1686 = vmatpush2.msra.mxu0 0.0
    %1687 = vmatprep.subr.mxu0 0.0
    %1688 = vmatpush2.msra.mxu0 0.0
    %1689 = vmatprep.subr.mxu0 0.0
    %1690 = vmatpush2.msra.mxu0 0.0
    %1691 = vmatprep.subr.mxu0 0.0
    %1692 = vmatpush2.msra.mxu0 0.0
    %1693 = vmatprep.subr.mxu0 0.0
    %1694 = vmatpush2.msra.mxu0 0.0
    %1695 = vmatprep.subr.mxu0 0.0
    %1696 = vmatpush2.msra.mxu0 0.0
    %1697 = vmatprep.mubr.f32.mxu0 0.0
    %1698 = vmatmul.mubr.f32.gmra.mxu0 %v189
    %v1699 = vpop.f32.mrf.mxu0
    %v1700 = vadd.f32 0.0, %v1699
    %v1701 = vpop.f32.mrf.mxu0
    %1702 = vmatprep.mubr.f32.mxu0 0.0
    %1703 = vmatmul.mubr.f32.gmra.mxu0 %v190
    %v1704 = vpop.f32.mrf.mxu0
    %v1705 = vadd.f32 0.0, %v1704
    %v1706 = vpop.f32.mrf.mxu0
    %1707 = vmatprep.mubr.f32.mxu0 0.0
    %1708 = vmatmul.mubr.f32.gmra.mxu0 %v191
    %v1709 = vpop.f32.mrf.mxu0
    %v1710 = vadd.f32 0.0, %v1709
    %v1711 = vpop.f32.mrf.mxu0
    %1712 = vmatprep.mubr.f32.mxu0 0.0
    %1713 = vmatmul.mubr.f32.gmra.mxu0 %v192
    %v1714 = vpop.f32.mrf.mxu0
    %v1715 = vadd.f32 0.0, %v1714
    %v1716 = vpop.f32.mrf.mxu0
    %1717 = vmatprep.mubr.f32.mxu0 0.0
    %1718 = vmatmul.mubr.f32.gmra.mxu0 %v193
    %v1719 = vpop.f32.mrf.mxu0
    %v1720 = vadd.f32 0.0, %v1719
    %v1721 = vpop.f32.mrf.mxu0
    %1722 = vmatprep.mubr.f32.mxu0 0.0
    %1723 = vmatmul.mubr.f32.gmra.mxu0 %v194
    %v1724 = vpop.f32.mrf.mxu0
    %v1725 = vadd.f32 0.0, %v1724
    %v1726 = vpop.f32.mrf.mxu0
    %1727 = vmatprep.mubr.f32.mxu0 0.0
    %1728 = vmatmul.mubr.f32.gmra.mxu0 %v195
    %v1729 = vpop.f32.mrf.mxu0
    %v1730 = vadd.f32 0.0, %v1729
    %v1731 = vpop.f32.mrf.mxu0
    %1732 = vmatprep.mubr.f32.mxu0 0.0
    %1733 = vmatmul.mubr.f32.gmra.mxu0 %v196
    %v1734 = vpop.f32.mrf.mxu0
    %v1735 = vadd.f32 0.0, %v1734
    %v1736 = vpop.f32.mrf.mxu0
    %1737 = vdwg.mxu0
    %v1738 = vld [vmem:[#allocation6 + $0x140] sm:$0xff]
    %v1739 = vld [vmem:[#allocation6 + $0x148] sm:$0xff]
    %v1740 = vld [vmem:[#allocation6 + $0x150] sm:$0xff]
    %v1741 = vld [vmem:[#allocation6 + $0x158] sm:$0xff]
    %v1742 = vsel %vm207, %v1612, 0
    %1744 = vmatprep.subr.mxu0 0.0
    %1745 = vmatpush1.msra.mxu0 0.0
    %1746 = vmatprep.subr.mxu0 0.0
    %1747 = vmatpush1.msra.mxu0 0.0
    %1748 = vmatprep.subr.mxu0 0.0
    %1749 = vmatpush1.msra.mxu0 0.0
    %1750 = vmatprep.subr.mxu0 0.0
    %1751 = vmatpush1.msra.mxu0 0.0
    %1752 = vmatprep.subr.mxu0 0.0
    %1753 = vmatpush1.msra.mxu0 0.0
    %1754 = vmatprep.subr.mxu0 0.0
    %1755 = vmatpush1.msra.mxu0 0.0
    %1756 = vmatprep.subr.mxu0 0.0
    %1757 = vmatpush1.msra.mxu0 0.0
    %1758 = vmatprep.subr.mxu0 0.0
    %1759 = vmatpush1.msra.mxu0 0.0
    %1760 = vmatprep.subr.mxu0 0.0
    %1761 = vmatpush1.msra.mxu0 0.0
    %1762 = vmatprep.subr.mxu0 0.0
    %1763 = vmatpush1.msra.mxu0 0.0
    %1764 = vmatprep.subr.mxu0 0.0
    %1765 = vmatpush1.msra.mxu0 0.0
    %1766 = vmatprep.subr.mxu0 0.0
    %1767 = vmatpush1.msra.mxu0 0.0
    %1768 = vmatprep.subr.mxu0 0.0
    %1769 = vmatpush1.msra.mxu0 %v1741
    %1770 = vmatprep.subr.mxu0 0.0
    %1771 = vmatpush1.msra.mxu0 %v1740
    %1772 = vmatprep.subr.mxu0 0.0
    %1773 = vmatpush1.msra.mxu0 %v1739
    %1774 = vmatprep.subr.mxu0 0.0
    %1775 = vmatpush1.msra.mxu0 %v1738
    %1776 = vmatprep.subr.mxu0 0.0
    %1777 = vmatpush2.msra.mxu0 0.0
    %1778 = vmatprep.subr.mxu0 0.0
    %1779 = vmatpush2.msra.mxu0 0.0
    %1780 = vmatprep.subr.mxu0 0.0
    %1781 = vmatpush2.msra.mxu0 0.0
    %1782 = vmatprep.subr.mxu0 0.0
    %1783 = vmatpush2.msra.mxu0 0.0
    %1784 = vmatprep.subr.mxu0 0.0
    %1785 = vmatpush2.msra.mxu0 0.0
    %1786 = vmatprep.subr.mxu0 0.0
    %1787 = vmatpush2.msra.mxu0 0.0
    %1788 = vmatprep.subr.mxu0 0.0
    %1789 = vmatpush2.msra.mxu0 0.0
    %1790 = vmatprep.subr.mxu0 0.0
    %1791 = vmatpush2.msra.mxu0 0.0
    %1792 = vmatprep.subr.mxu0 0.0
    %1793 = vmatpush2.msra.mxu0 0.0
    %1794 = vmatprep.subr.mxu0 0.0
    %1795 = vmatpush2.msra.mxu0 0.0
    %1796 = vmatprep.subr.mxu0 0.0
    %1797 = vmatpush2.msra.mxu0 0.0
    %1798 = vmatprep.subr.mxu0 0.0
    %1799 = vmatpush2.msra.mxu0 0.0
    %1800 = vmatprep.subr.mxu0 0.0
    %1801 = vmatpush2.msra.mxu0 0.0
    %1802 = vmatprep.subr.mxu0 0.0
    %1803 = vmatpush2.msra.mxu0 0.0
    %1804 = vmatprep.subr.mxu0 0.0
    %1805 = vmatpush2.msra.mxu0 0.0
    %1806 = vmatprep.subr.mxu0 0.0
    %1807 = vmatpush2.msra.mxu0 0.0
    %1808 = vmatprep.mubr.f32.mxu0 0.0
    %1809 = vmatmul.mubr.f32.gmra.mxu0 %v388
    %v1810 = vpop.f32.mrf.mxu0
    %v1811 = vadd.f32 0.0, %v1810
    %v1812 = vpop.f32.mrf.mxu0
    %1813 = vmatprep.mubr.f32.mxu0 0.0
    %1814 = vmatmul.mubr.f32.gmra.mxu0 %v563
    %v1815 = vpop.f32.mrf.mxu0
    %v1816 = vadd.f32 0.0, %v1815
    %v1817 = vpop.f32.mrf.mxu0
    %1818 = vmatprep.mubr.f32.mxu0 0.0
    %1819 = vmatmul.mubr.f32.gmra.mxu0 %v738
    %v1820 = vpop.f32.mrf.mxu0
    %v1821 = vadd.f32 0.0, %v1820
    %v1822 = vpop.f32.mrf.mxu0
    %1823 = vmatprep.mubr.f32.mxu0 0.0
    %1824 = vmatmul.mubr.f32.gmra.mxu0 %v913
    %v1825 = vpop.f32.mrf.mxu0
    %v1826 = vadd.f32 0.0, %v1825
    %v1827 = vpop.f32.mrf.mxu0
    %1828 = vmatprep.mubr.f32.mxu0 0.0
    %1829 = vmatmul.mubr.f32.gmra.mxu0 %v1088
    %v1830 = vpop.f32.mrf.mxu0
    %v1831 = vadd.f32 0.0, %v1830
    %v1832 = vpop.f32.mrf.mxu0
    %1833 = vmatprep.mubr.f32.mxu0 0.0
    %1834 = vmatmul.mubr.f32.gmra.mxu0 %v1263
    %v1835 = vpop.f32.mrf.mxu0
    %v1836 = vadd.f32 0.0, %v1835
    %v1837 = vpop.f32.mrf.mxu0
    %1838 = vmatprep.mubr.f32.mxu0 0.0
    %1839 = vmatmul.mubr.f32.gmra.mxu0 %v1438
    %v1840 = vpop.f32.mrf.mxu0
    %v1841 = vadd.f32 0.0, %v1840
    %v1842 = vpop.f32.mrf.mxu0
    %1843 = vmatprep.mubr.f32.mxu0 0.0
    %1844 = vmatmul.mubr.f32.gmra.mxu0 %v1742
    %v1845 = vpop.f32.mrf.mxu0
    %v1846 = vadd.f32 0.0, %v1845
    %v1847 = vpop.f32.mrf.mxu0
    %1848 = vdwg.mxu0
    %v1849 = vadd.f32 %v1700, %v1811
    %v1850 = vadd.f32 %v1705, %v1816
    %v1851 = vadd.f32 %v1710, %v1821
    %v1852 = vadd.f32 %v1715, %v1826
    %v1853 = vadd.f32 %v1720, %v1831
    %v1854 = vadd.f32 %v1725, %v1836
    %v1855 = vadd.f32 %v1730, %v1841
    %v1856 = vadd.f32 %v1735, %v1846
    %v1857 = vld [vmem:[#allocation6 + $0x1f2] sm:$0x1]
    %v1858 = vlaneseq
    %v1859 = vshrl.u32 %v1858, 7
    %v1860 = vsub.s32 0, %v1859
    %v1861 = vrot.slane %v1857, %v1860
    %v1862 = vadd.f32 %v1849, %v1861
    %v1863 = vadd.f32 %v1850, %v1861
    %v1864 = vadd.f32 %v1851, %v1861
    %v1865 = vadd.f32 %v1852, %v1861
    %v1866 = vadd.f32 %v1853, %v1861
    %v1867 = vadd.f32 %v1854, %v1861
    %v1868 = vadd.f32 %v1855, %v1861
    %v1869 = vadd.f32 %v1856, %v1861
    %v1870 = vmax.f32 %v1862, 0.0
    %v1871 = vmax.f32 %v1863, 0.0
    %v1872 = vmax.f32 %v1864, 0.0
    %v1873 = vmax.f32 %v1865, 0.0
    %v1874 = vmax.f32 %v1866, 0.0
    %v1875 = vmax.f32 %v1867, 0.0
    %v1876 = vmax.f32 %v1868, 0.0
    %v1877 = vmax.f32 %v1869, 0.0
    %v1878 = vld [vmem:[#allocation6 + $0x160] sm:$0xff]
    %v1879 = vld [vmem:[#allocation6 + $0x168] sm:$0xff]
    %v1880 = vld [vmem:[#allocation6 + $0x170] sm:$0xff]
    %v1881 = vld [vmem:[#allocation6 + $0x178] sm:$0xff]
    %1890 = vrot.lane.b32.xlu0 %v1700, 96
    %v1891 = vpop.permute.xlu0 %1890
    %1892 = vrot.lane.b32.xlu0 %v1705, 96
    %v1893 = vpop.permute.xlu0 %1892
    %1894 = vrot.lane.b32.xlu0 %v1710, 96
    %v1895 = vpop.permute.xlu0 %1894
    %1896 = vrot.lane.b32.xlu0 %v1715, 96
    %v1897 = vpop.permute.xlu0 %1896
    %1898 = vrot.lane.b32.xlu0 %v1720, 96
    %v1899 = vpop.permute.xlu0 %1898
    %1900 = vrot.lane.b32.xlu0 %v1725, 96
    %v1901 = vpop.permute.xlu0 %1900
    %1902 = vrot.lane.b32.xlu0 %v1730, 96
    %v1903 = vpop.permute.xlu0 %1902
    %1904 = vrot.lane.b32.xlu0 %v1735, 96
    %v1905 = vpop.permute.xlu0 %1904
    %v1915 = vsel %vm207, %v1870, 0
    %v1918 = vsel %vm207, %v1871, 0
    %v1921 = vsel %vm207, %v1872, 0
    %v1924 = vsel %vm207, %v1873, 0
    %v1927 = vsel %vm207, %v1874, 0
    %v1930 = vsel %vm207, %v1875, 0
    %v1933 = vsel %vm207, %v1876, 0
    %v1936 = vsel %vm207, %v1877, 0
    %1938 = vmatprep.subr.mxu0 0.0
    %1939 = vmatpush1.msra.mxu0 0.0
    %1940 = vmatprep.subr.mxu0 0.0
    %1941 = vmatpush1.msra.mxu0 0.0
    %1942 = vmatprep.subr.mxu0 0.0
    %1943 = vmatpush1.msra.mxu0 0.0
    %1944 = vmatprep.subr.mxu0 0.0
    %1945 = vmatpush1.msra.mxu0 0.0
    %1946 = vmatprep.subr.mxu0 0.0
    %1947 = vmatpush1.msra.mxu0 0.0
    %1948 = vmatprep.subr.mxu0 0.0
    %1949 = vmatpush1.msra.mxu0 0.0
    %1950 = vmatprep.subr.mxu0 0.0
    %1951 = vmatpush1.msra.mxu0 0.0
    %1952 = vmatprep.subr.mxu0 0.0
    %1953 = vmatpush1.msra.mxu0 0.0
    %1954 = vmatprep.subr.mxu0 0.0
    %1955 = vmatpush1.msra.mxu0 0.0
    %1956 = vmatprep.subr.mxu0 0.0
    %1957 = vmatpush1.msra.mxu0 0.0
    %1958 = vmatprep.subr.mxu0 0.0
    %1959 = vmatpush1.msra.mxu0 0.0
    %1960 = vmatprep.subr.mxu0 0.0
    %1961 = vmatpush1.msra.mxu0 0.0
    %1962 = vmatprep.subr.mxu0 0.0
    %1963 = vmatpush1.msra.mxu0 %v1881
    %1964 = vmatprep.subr.mxu0 0.0
    %1965 = vmatpush1.msra.mxu0 %v1880
    %1966 = vmatprep.subr.mxu0 0.0
    %1967 = vmatpush1.msra.mxu0 %v1879
    %1968 = vmatprep.subr.mxu0 0.0
    %1969 = vmatpush1.msra.mxu0 %v1878
    %1970 = vmatprep.subr.mxu0 0.0
    %1971 = vmatpush2.msra.mxu0 0.0
    %1972 = vmatprep.subr.mxu0 0.0
    %1973 = vmatpush2.msra.mxu0 0.0
    %1974 = vmatprep.subr.mxu0 0.0
    %1975 = vmatpush2.msra.mxu0 0.0
    %1976 = vmatprep.subr.mxu0 0.0
    %1977 = vmatpush2.msra.mxu0 0.0
    %1978 = vmatprep.subr.mxu0 0.0
    %1979 = vmatpush2.msra.mxu0 0.0
    %1980 = vmatprep.subr.mxu0 0.0
    %1981 = vmatpush2.msra.mxu0 0.0
    %1982 = vmatprep.subr.mxu0 0.0
    %1983 = vmatpush2.msra.mxu0 0.0
    %1984 = vmatprep.subr.mxu0 0.0
    %1985 = vmatpush2.msra.mxu0 0.0
    %1986 = vmatprep.subr.mxu0 0.0
    %1987 = vmatpush2.msra.mxu0 0.0
    %1988 = vmatprep.subr.mxu0 0.0
    %1989 = vmatpush2.msra.mxu0 0.0
    %1990 = vmatprep.subr.mxu0 0.0
    %1991 = vmatpush2.msra.mxu0 0.0
    %1992 = vmatprep.subr.mxu0 0.0
    %1993 = vmatpush2.msra.mxu0 0.0
    %1994 = vmatprep.subr.mxu0 0.0
    %1995 = vmatpush2.msra.mxu0 0.0
    %1996 = vmatprep.subr.mxu0 0.0
    %1997 = vmatpush2.msra.mxu0 0.0
    %1998 = vmatprep.subr.mxu0 0.0
    %1999 = vmatpush2.msra.mxu0 0.0
    %2000 = vmatprep.subr.mxu0 0.0
    %2001 = vmatpush2.msra.mxu0 0.0
    %2002 = vmatprep.mubr.f32.mxu0 0.0
    %2003 = vmatmul.mubr.f32.gmra.mxu0 %v1915
    %v2004 = vpop.f32.mrf.mxu0
    %v2005 = vadd.f32 %v1891, %v2004
    %v2006 = vpop.f32.mrf.mxu0
    %2007 = vmatprep.mubr.f32.mxu0 0.0
    %2008 = vmatmul.mubr.f32.gmra.mxu0 %v1918
    %v2009 = vpop.f32.mrf.mxu0
    %v2010 = vadd.f32 %v1893, %v2009
    %v2011 = vpop.f32.mrf.mxu0
    %2012 = vmatprep.mubr.f32.mxu0 0.0
    %2013 = vmatmul.mubr.f32.gmra.mxu0 %v1921
    %v2014 = vpop.f32.mrf.mxu0
    %v2015 = vadd.f32 %v1895, %v2014
    %v2016 = vpop.f32.mrf.mxu0
    %2017 = vmatprep.mubr.f32.mxu0 0.0
    %2018 = vmatmul.mubr.f32.gmra.mxu0 %v1924
    %v2019 = vpop.f32.mrf.mxu0
    %v2020 = vadd.f32 %v1897, %v2019
    %v2021 = vpop.f32.mrf.mxu0
    %2022 = vmatprep.mubr.f32.mxu0 0.0
    %2023 = vmatmul.mubr.f32.gmra.mxu0 %v1927
    %v2024 = vpop.f32.mrf.mxu0
    %v2025 = vadd.f32 %v1899, %v2024
    %v2026 = vpop.f32.mrf.mxu0
    %2027 = vmatprep.mubr.f32.mxu0 0.0
    %2028 = vmatmul.mubr.f32.gmra.mxu0 %v1930
    %v2029 = vpop.f32.mrf.mxu0
    %v2030 = vadd.f32 %v1901, %v2029
    %v2031 = vpop.f32.mrf.mxu0
    %2032 = vmatprep.mubr.f32.mxu0 0.0
    %2033 = vmatmul.mubr.f32.gmra.mxu0 %v1933
    %v2034 = vpop.f32.mrf.mxu0
    %v2035 = vadd.f32 %v1903, %v2034
    %v2036 = vpop.f32.mrf.mxu0
    %2037 = vmatprep.mubr.f32.mxu0 0.0
    %2038 = vmatmul.mubr.f32.gmra.mxu0 %v1936
    %v2039 = vpop.f32.mrf.mxu0
    %v2040 = vadd.f32 %v1905, %v2039
    %v2041 = vpop.f32.mrf.mxu0
    %2042 = vdwg.mxu0
    %v2043 = vld [vmem:[#allocation6 + $0x1f3] sm:$0x1]
    %v2044 = vlaneseq
    %v2045 = vshrl.u32 %v2044, 7
    %v2046 = vsub.s32 0, %v2045
    %v2047 = vrot.slane %v2043, %v2046
    %v2048 = vadd.f32 %v2005, %v2047
    %v2049 = vadd.f32 %v2010, %v2047
    %v2050 = vadd.f32 %v2015, %v2047
    %v2051 = vadd.f32 %v2020, %v2047
    %v2052 = vadd.f32 %v2025, %v2047
    %v2053 = vadd.f32 %v2030, %v2047
    %v2054 = vadd.f32 %v2035, %v2047
    %v2055 = vadd.f32 %v2040, %v2047
    %v2056 = vmax.f32 %v2048, 0.0
    %v2057 = vmax.f32 %v2049, 0.0
    %v2058 = vmax.f32 %v2050, 0.0
    %v2059 = vmax.f32 %v2051, 0.0
    %v2060 = vmax.f32 %v2052, 0.0
    %v2061 = vmax.f32 %v2053, 0.0
    %v2062 = vmax.f32 %v2054, 0.0
    %v2063 = vmax.f32 %v2055, 0.0
    %v2064 = vld [vmem:[#allocation6 + $0x180] sm:$0xff]
    %v2065 = vld [vmem:[#allocation6 + $0x188] sm:$0xff]
    %v2066 = vld [vmem:[#allocation6 + $0x190] sm:$0xff]
    %v2067 = vld [vmem:[#allocation6 + $0x198] sm:$0xff]
    %v2068 = vld [vmem:[#allocation6 + $0x1f4] sm:$0x1]
    %v2069 = vlaneseq
    %v2070 = vshrl.u32 %v2069, 7
    %v2071 = vsub.s32 0, %v2070
    %v2072 = vrot.slane %v2068, %v2071
    %v2074 = vsel %vm207, %v2056, 0
    %v2077 = vsel %vm207, %v2057, 0
    %v2080 = vsel %vm207, %v2058, 0
    %v2083 = vsel %vm207, %v2059, 0
    %v2086 = vsel %vm207, %v2060, 0
    %v2089 = vsel %vm207, %v2061, 0
    %v2092 = vsel %vm207, %v2062, 0
    %v2095 = vsel %vm207, %v2063, 0
    %2097 = vmatprep.subr.mxu0 0.0
    %2098 = vmatpush1.msra.mxu0 0.0
    %2099 = vmatprep.subr.mxu0 0.0
    %2100 = vmatpush1.msra.mxu0 0.0
    %2101 = vmatprep.subr.mxu0 0.0
    %2102 = vmatpush1.msra.mxu0 0.0
    %2103 = vmatprep.subr.mxu0 0.0
    %2104 = vmatpush1.msra.mxu0 0.0
    %2105 = vmatprep.subr.mxu0 0.0
    %2106 = vmatpush1.msra.mxu0 0.0
    %2107 = vmatprep.subr.mxu0 0.0
    %2108 = vmatpush1.msra.mxu0 0.0
    %2109 = vmatprep.subr.mxu0 0.0
    %2110 = vmatpush1.msra.mxu0 0.0
    %2111 = vmatprep.subr.mxu0 0.0
    %2112 = vmatpush1.msra.mxu0 0.0
    %2113 = vmatprep.subr.mxu0 0.0
    %2114 = vmatpush1.msra.mxu0 0.0
    %2115 = vmatprep.subr.mxu0 0.0
    %2116 = vmatpush1.msra.mxu0 0.0
    %2117 = vmatprep.subr.mxu0 0.0
    %2118 = vmatpush1.msra.mxu0 0.0
    %2119 = vmatprep.subr.mxu0 0.0
    %2120 = vmatpush1.msra.mxu0 0.0
    %2121 = vmatprep.subr.mxu0 0.0
    %2122 = vmatpush1.msra.mxu0 %v2067
    %2123 = vmatprep.subr.mxu0 0.0
    %2124 = vmatpush1.msra.mxu0 %v2066
    %2125 = vmatprep.subr.mxu0 0.0
    %2126 = vmatpush1.msra.mxu0 %v2065
    %2127 = vmatprep.subr.mxu0 0.0
    %2128 = vmatpush1.msra.mxu0 %v2064
    %2129 = vmatprep.subr.mxu0 0.0
    %2130 = vmatpush2.msra.mxu0 0.0
    %2131 = vmatprep.subr.mxu0 0.0
    %2132 = vmatpush2.msra.mxu0 0.0
    %2133 = vmatprep.subr.mxu0 0.0
    %2134 = vmatpush2.msra.mxu0 0.0
    %2135 = vmatprep.subr.mxu0 0.0
    %2136 = vmatpush2.msra.mxu0 0.0
    %2137 = vmatprep.subr.mxu0 0.0
    %2138 = vmatpush2.msra.mxu0 0.0
    %2139 = vmatprep.subr.mxu0 0.0
    %2140 = vmatpush2.msra.mxu0 0.0
    %2141 = vmatprep.subr.mxu0 0.0
    %2142 = vmatpush2.msra.mxu0 0.0
    %2143 = vmatprep.subr.mxu0 0.0
    %2144 = vmatpush2.msra.mxu0 0.0
    %2145 = vmatprep.subr.mxu0 0.0
    %2146 = vmatpush2.msra.mxu0 0.0
    %2147 = vmatprep.subr.mxu0 0.0
    %2148 = vmatpush2.msra.mxu0 0.0
    %2149 = vmatprep.subr.mxu0 0.0
    %2150 = vmatpush2.msra.mxu0 0.0
    %2151 = vmatprep.subr.mxu0 0.0
    %2152 = vmatpush2.msra.mxu0 0.0
    %2153 = vmatprep.subr.mxu0 0.0
    %2154 = vmatpush2.msra.mxu0 0.0
    %2155 = vmatprep.subr.mxu0 0.0
    %2156 = vmatpush2.msra.mxu0 0.0
    %2157 = vmatprep.subr.mxu0 0.0
    %2158 = vmatpush2.msra.mxu0 0.0
    %2159 = vmatprep.subr.mxu0 0.0
    %2160 = vmatpush2.msra.mxu0 0.0
    %2161 = vmatprep.mubr.f32.mxu0 0.0
    %2162 = vmatmul.mubr.f32.gmra.mxu0 %v2074
    %v2163 = vpop.f32.mrf.mxu0
    %v2164 = vadd.f32 %v2072, %v2163
    %v2165 = vpop.f32.mrf.mxu0
    %2166 = vmatprep.mubr.f32.mxu0 0.0
    %2167 = vmatmul.mubr.f32.gmra.mxu0 %v2077
    %v2168 = vpop.f32.mrf.mxu0
    %v2169 = vadd.f32 %v2072, %v2168
    %v2170 = vpop.f32.mrf.mxu0
    %2171 = vmatprep.mubr.f32.mxu0 0.0
    %2172 = vmatmul.mubr.f32.gmra.mxu0 %v2080
    %v2173 = vpop.f32.mrf.mxu0
    %v2174 = vadd.f32 %v2072, %v2173
    %v2175 = vpop.f32.mrf.mxu0
    %2176 = vmatprep.mubr.f32.mxu0 0.0
    %2177 = vmatmul.mubr.f32.gmra.mxu0 %v2083
    %v2178 = vpop.f32.mrf.mxu0
    %v2179 = vadd.f32 %v2072, %v2178
    %v2180 = vpop.f32.mrf.mxu0
    %2181 = vmatprep.mubr.f32.mxu0 0.0
    %2182 = vmatmul.mubr.f32.gmra.mxu0 %v2086
    %v2183 = vpop.f32.mrf.mxu0
    %v2184 = vadd.f32 %v2072, %v2183
    %v2185 = vpop.f32.mrf.mxu0
    %2186 = vmatprep.mubr.f32.mxu0 0.0
    %2187 = vmatmul.mubr.f32.gmra.mxu0 %v2089
    %v2188 = vpop.f32.mrf.mxu0
    %v2189 = vadd.f32 %v2072, %v2188
    %v2190 = vpop.f32.mrf.mxu0
    %2191 = vmatprep.mubr.f32.mxu0 0.0
    %2192 = vmatmul.mubr.f32.gmra.mxu0 %v2092
    %v2193 = vpop.f32.mrf.mxu0
    %v2194 = vadd.f32 %v2072, %v2193
    %v2195 = vpop.f32.mrf.mxu0
    %2196 = vmatprep.mubr.f32.mxu0 0.0
    %2197 = vmatmul.mubr.f32.gmra.mxu0 %v2095
    %v2198 = vpop.f32.mrf.mxu0
    %v2199 = vadd.f32 %v2072, %v2198
    %v2200 = vpop.f32.mrf.mxu0
    %2201 = vdwg.mxu0
    %v2202 = vmul.f32 %v2164, 1.442695
    %v2203 = vpow.pop %v2202
    %v2204 = vmul.f32 %v2169, 1.442695
    %v2205 = vpow.pop %v2204
    %v2206 = vmul.f32 %v2174, 1.442695
    %v2207 = vpow.pop %v2206
    %v2208 = vmul.f32 %v2179, 1.442695
    %v2209 = vpow.pop %v2208
    %v2210 = vmul.f32 %v2184, 1.442695
    %v2211 = vpow.pop %v2210
    %v2212 = vmul.f32 %v2189, 1.442695
    %v2213 = vpow.pop %v2212
    %v2214 = vmul.f32 %v2194, 1.442695
    %v2215 = vpow.pop %v2214
    %v2216 = vmul.f32 %v2199, 1.442695
    %v2217 = vpow.pop %v2216
    %v2218 = vrsqrt.pop %v2203
    %v2219 = vmul.f32 %v2203, %v2218
    %vm2220 = vcmp.eq.f32.partialorder %v2203, inf
    %v2221 = vsel %vm2220, %v2203, %v2219
    %vm2222 = vcmp.eq.f32.partialorder %v2203, 0.0
    %v2223 = vand.u32 %v2203, 2147483648
    %v2224 = vsel %vm2222, %v2223, %v2221
    %v2225 = vrsqrt.pop %v2205
    %v2226 = vmul.f32 %v2205, %v2225
    %vm2227 = vcmp.eq.f32.partialorder %v2205, inf
    %v2228 = vsel %vm2227, %v2205, %v2226
    %vm2229 = vcmp.eq.f32.partialorder %v2205, 0.0
    %v2230 = vand.u32 %v2205, 2147483648
    %v2231 = vsel %vm2229, %v2230, %v2228
    %v2232 = vrsqrt.pop %v2207
    %v2233 = vmul.f32 %v2207, %v2232
    %vm2234 = vcmp.eq.f32.partialorder %v2207, inf
    %v2235 = vsel %vm2234, %v2207, %v2233
    %vm2236 = vcmp.eq.f32.partialorder %v2207, 0.0
    %v2237 = vand.u32 %v2207, 2147483648
    %v2238 = vsel %vm2236, %v2237, %v2235
    %v2239 = vrsqrt.pop %v2209
    %v2240 = vmul.f32 %v2209, %v2239
    %vm2241 = vcmp.eq.f32.partialorder %v2209, inf
    %v2242 = vsel %vm2241, %v2209, %v2240
    %vm2243 = vcmp.eq.f32.partialorder %v2209, 0.0
    %v2244 = vand.u32 %v2209, 2147483648
    %v2245 = vsel %vm2243, %v2244, %v2242
    %v2246 = vrsqrt.pop %v2211
    %v2247 = vmul.f32 %v2211, %v2246
    %vm2248 = vcmp.eq.f32.partialorder %v2211, inf
    %v2249 = vsel %vm2248, %v2211, %v2247
    %vm2250 = vcmp.eq.f32.partialorder %v2211, 0.0
    %v2251 = vand.u32 %v2211, 2147483648
    %v2252 = vsel %vm2250, %v2251, %v2249
    %v2253 = vrsqrt.pop %v2213
    %v2254 = vmul.f32 %v2213, %v2253
    %vm2255 = vcmp.eq.f32.partialorder %v2213, inf
    %v2256 = vsel %vm2255, %v2213, %v2254
    %vm2257 = vcmp.eq.f32.partialorder %v2213, 0.0
    %v2258 = vand.u32 %v2213, 2147483648
    %v2259 = vsel %vm2257, %v2258, %v2256
    %v2260 = vrsqrt.pop %v2215
    %v2261 = vmul.f32 %v2215, %v2260
    %vm2262 = vcmp.eq.f32.partialorder %v2215, inf
    %v2263 = vsel %vm2262, %v2215, %v2261
    %vm2264 = vcmp.eq.f32.partialorder %v2215, 0.0
    %v2265 = vand.u32 %v2215, 2147483648
    %v2266 = vsel %vm2264, %v2265, %v2263
    %v2267 = vrsqrt.pop %v2217
    %v2268 = vmul.f32 %v2217, %v2267
    %vm2269 = vcmp.eq.f32.partialorder %v2217, inf
    %v2270 = vsel %vm2269, %v2217, %v2268
    %vm2271 = vcmp.eq.f32.partialorder %v2217, 0.0
    %v2272 = vand.u32 %v2217, 2147483648
    %v2273 = vsel %vm2271, %v2272, %v2270
    %2282 = vrot.lane.b32.xlu0 %v2224, 16
    %v2283 = vpop.permute.xlu0 %2282
    %2284 = vrot.lane.b32.xlu0 %v2231, 16
    %v2285 = vpop.permute.xlu0 %2284
    %2286 = vrot.lane.b32.xlu0 %v2238, 16
    %v2287 = vpop.permute.xlu0 %2286
    %2288 = vrot.lane.b32.xlu0 %v2245, 16
    %v2289 = vpop.permute.xlu0 %2288
    %2290 = vrot.lane.b32.xlu0 %v2252, 16
    %v2291 = vpop.permute.xlu0 %2290
    %2292 = vrot.lane.b32.xlu0 %v2259, 16
    %v2293 = vpop.permute.xlu0 %2292
    %2294 = vrot.lane.b32.xlu0 %v2266, 16
    %v2295 = vpop.permute.xlu0 %2294
    %2296 = vrot.lane.b32.xlu0 %v2273, 16
    %v2297 = vpop.permute.xlu0 %2296
    %v2306 = vmul.f32 %v55, %v2283
    %v2307 = vmul.f32 %v56, %v2285
    %v2308 = vmul.f32 %v57, %v2287
    %v2309 = vmul.f32 %v58, %v2289
    %v2310 = vmul.f32 %v59, %v2291
    %v2311 = vmul.f32 %v60, %v2293
    %v2312 = vmul.f32 %v61, %v2295
    %v2313 = vmul.f32 %v62, %v2297
    %2322 = vrot.lane.b32.xlu0 %v2306, 96
    %v2323 = vpop.permute.xlu0 %2322
    %2324 = vrot.lane.b32.xlu0 %v2307, 96
    %v2325 = vpop.permute.xlu0 %2324
    %2326 = vrot.lane.b32.xlu0 %v2308, 96
    %v2327 = vpop.permute.xlu0 %2326
    %2328 = vrot.lane.b32.xlu0 %v2309, 96
    %v2329 = vpop.permute.xlu0 %2328
    %2330 = vrot.lane.b32.xlu0 %v2310, 96
    %v2331 = vpop.permute.xlu0 %2330
    %2332 = vrot.lane.b32.xlu0 %v2311, 96
    %v2333 = vpop.permute.xlu0 %2332
    %2334 = vrot.lane.b32.xlu0 %v2312, 96
    %v2335 = vpop.permute.xlu0 %2334
    %2336 = vrot.lane.b32.xlu0 %v2313, 96
    %v2337 = vpop.permute.xlu0 %2336
    %v2346 = vadd.f32 %v2164, %v2323
    %v2347 = vadd.f32 %v2169, %v2325
    %v2348 = vadd.f32 %v2174, %v2327
    %v2349 = vadd.f32 %v2179, %v2329
    %v2350 = vadd.f32 %v2184, %v2331
    %v2351 = vadd.f32 %v2189, %v2333
    %v2352 = vadd.f32 %v2194, %v2335
    %v2353 = vadd.f32 %v2199, %v2337
    %v2354 = vadd.f32 %v2164, 1.0
    %v2355 = vadd.f32 %v2169, 1.0
    %v2356 = vadd.f32 %v2174, 1.0
    %v2357 = vadd.f32 %v2179, 1.0
    %v2358 = vadd.f32 %v2184, 1.0
    %v2359 = vadd.f32 %v2189, 1.0
    %v2360 = vadd.f32 %v2194, 1.0
    %v2361 = vadd.f32 %v2199, 1.0
    %v2362 = vmul.f32 %v2164, %v2164
    %v2363 = vmul.f32 %v2169, %v2169
    %v2364 = vmul.f32 %v2174, %v2174
    %v2365 = vmul.f32 %v2179, %v2179
    %v2366 = vmul.f32 %v2184, %v2184
    %v2367 = vmul.f32 %v2189, %v2189
    %v2368 = vmul.f32 %v2194, %v2194
    %v2369 = vmul.f32 %v2199, %v2199
    %2378 = vrot.lane.b32.xlu0 %v2362, 16
    %v2379 = vpop.permute.xlu0 %2378
    %2380 = vrot.lane.b32.xlu0 %v2363, 16
    %v2381 = vpop.permute.xlu0 %2380
    %2382 = vrot.lane.b32.xlu0 %v2364, 16
    %v2383 = vpop.permute.xlu0 %2382
    %2384 = vrot.lane.b32.xlu0 %v2365, 16
    %v2385 = vpop.permute.xlu0 %2384
    %2386 = vrot.lane.b32.xlu0 %v2366, 16
    %v2387 = vpop.permute.xlu0 %2386
    %2388 = vrot.lane.b32.xlu0 %v2367, 16
    %v2389 = vpop.permute.xlu0 %2388
    %2390 = vrot.lane.b32.xlu0 %v2368, 16
    %v2391 = vpop.permute.xlu0 %2390
    %2392 = vrot.lane.b32.xlu0 %v2369, 16
    %v2393 = vpop.permute.xlu0 %2392
    %v2402 = vsub.f32 %v2354, %v2379
    %v2403 = vsub.f32 %v2355, %v2381
    %v2404 = vsub.f32 %v2356, %v2383
    %v2405 = vsub.f32 %v2357, %v2385
    %v2406 = vsub.f32 %v2358, %v2387
    %v2407 = vsub.f32 %v2359, %v2389
    %v2408 = vsub.f32 %v2360, %v2391
    %v2409 = vsub.f32 %v2361, %v2393
    %v2410 = vsub.f32 %v2402, %v2203
    %v2411 = vsub.f32 %v2403, %v2205
    %v2412 = vsub.f32 %v2404, %v2207
    %v2413 = vsub.f32 %v2405, %v2209
    %v2414 = vsub.f32 %v2406, %v2211
    %v2415 = vsub.f32 %v2407, %v2213
    %v2416 = vsub.f32 %v2408, %v2215
    %v2417 = vsub.f32 %v2409, %v2217
    %2426 = vrot.lane.b32.xlu0 %v2410, 112
    %v2427 = vpop.permute.xlu0 %2426
    %2428 = vrot.lane.b32.xlu0 %v2411, 112
    %v2429 = vpop.permute.xlu0 %2428
    %2430 = vrot.lane.b32.xlu0 %v2412, 112
    %v2431 = vpop.permute.xlu0 %2430
    %2432 = vrot.lane.b32.xlu0 %v2413, 112
    %v2433 = vpop.permute.xlu0 %2432
    %2434 = vrot.lane.b32.xlu0 %v2414, 112
    %v2435 = vpop.permute.xlu0 %2434
    %2436 = vrot.lane.b32.xlu0 %v2415, 112
    %v2437 = vpop.permute.xlu0 %2436
    %2438 = vrot.lane.b32.xlu0 %v2416, 112
    %v2439 = vpop.permute.xlu0 %2438
    %2440 = vrot.lane.b32.xlu0 %v2417, 112
    %v2441 = vpop.permute.xlu0 %2440
    %vm2450 = vcmask 130048
    %v2451 = vsel %vm2450, %v2427, 0.0
    %2452 = vadd.xlane.f32.xlu0 %v2451
    %v2453 = vpop.xlane.xlu0 %2452
    %v2454 = vsel %vm2450, %v2429, 0.0
    %2455 = vadd.xlane.f32.xlu0 %v2454
    %v2456 = vpop.xlane.xlu0 %2455
    %v2457 = vsel %vm2450, %v2431, 0.0
    %2458 = vadd.xlane.f32.xlu0 %v2457
    %v2459 = vpop.xlane.xlu0 %2458
    %v2460 = vsel %vm2450, %v2433, 0.0
    %2461 = vadd.xlane.f32.xlu0 %v2460
    %v2462 = vpop.xlane.xlu0 %2461
    %v2463 = vsel %vm2450, %v2435, 0.0
    %2464 = vadd.xlane.f32.xlu0 %v2463
    %v2465 = vpop.xlane.xlu0 %2464
    %v2466 = vsel %vm2450, %v2437, 0.0
    %2467 = vadd.xlane.f32.xlu0 %v2466
    %v2468 = vpop.xlane.xlu0 %2467
    %v2469 = vsel %vm2450, %v2439, 0.0
    %2470 = vadd.xlane.f32.xlu0 %v2469
    %v2471 = vpop.xlane.xlu0 %2470
    %v2472 = vsel %vm2450, %v2441, 0.0
    %2473 = vadd.xlane.f32.xlu0 %v2472
    %v2474 = vpop.xlane.xlu0 %2473
    %v2475 = vmul.f32 %v2453, -0.5
    %v2476 = vmul.f32 %v2456, -0.5
    %v2477 = vmul.f32 %v2459, -0.5
    %v2478 = vmul.f32 %v2462, -0.5
    %v2479 = vmul.f32 %v2465, -0.5
    %v2480 = vmul.f32 %v2468, -0.5
    %v2481 = vmul.f32 %v2471, -0.5
    %v2482 = vmul.f32 %v2474, -0.5
    %v2483 = vld [vmem:[#allocation6 + $0x1a0] sm:$0xff]
    %v2484 = vld [vmem:[#allocation6 + $0x1a8] sm:$0xff]
    %v2485 = vld [vmem:[#allocation6 + $0x1b0] sm:$0xff]
    %v2486 = vld [vmem:[#allocation6 + $0x1b8] sm:$0xff]
    %v2487 = vld [vmem:[#allocation6 + $0x1c0] sm:$0xff]
    %v2488 = vld [vmem:[#allocation6 + $0x1c8] sm:$0xff]
    %2489 = vmatprep.subr.mxu0 0.0
    %2490 = vmatpush1.msra.mxu0 0.0
    %2491 = vmatprep.subr.mxu0 0.0
    %2492 = vmatpush1.msra.mxu0 0.0
    %2493 = vmatprep.subr.mxu0 0.0
    %2494 = vmatpush1.msra.mxu0 0.0
    %2495 = vmatprep.subr.mxu0 0.0
    %2496 = vmatpush1.msra.mxu0 0.0
    %2497 = vmatprep.subr.mxu0 0.0
    %2498 = vmatpush1.msra.mxu0 0.0
    %2499 = vmatprep.subr.mxu0 0.0
    %2500 = vmatpush1.msra.mxu0 0.0
    %2501 = vmatprep.subr.mxu0 0.0
    %2502 = vmatpush1.msra.mxu0 0.0
    %2503 = vmatprep.subr.mxu0 0.0
    %2504 = vmatpush1.msra.mxu0 0.0
    %2505 = vmatprep.subr.mxu0 0.0
    %2506 = vmatpush1.msra.mxu0 0.0
    %2507 = vmatprep.subr.mxu0 0.0
    %2508 = vmatpush1.msra.mxu0 0.0
    %2509 = vmatprep.subr.mxu0 0.0
    %2510 = vmatpush1.msra.mxu0 0.0
    %2511 = vmatprep.subr.mxu0 0.0
    %2512 = vmatpush1.msra.mxu0 0.0
    %2513 = vmatprep.subr.mxu0 0.0
    %2514 = vmatpush1.msra.mxu0 %v2488
    %2515 = vmatprep.subr.mxu0 0.0
    %2516 = vmatpush1.msra.mxu0 %v2487
    %2517 = vmatprep.subr.mxu0 0.0
    %2518 = vmatpush1.msra.mxu0 %v2486
    %2519 = vmatprep.subr.mxu0 0.0
    %2520 = vmatpush1.msra.mxu0 %v2485
    %2521 = vmatprep.subr.mxu0 0.0
    %2522 = vmatpush2.msra.mxu0 0.0
    %2523 = vmatprep.subr.mxu0 0.0
    %2524 = vmatpush2.msra.mxu0 0.0
    %2525 = vmatprep.subr.mxu0 0.0
    %2526 = vmatpush2.msra.mxu0 0.0
    %2527 = vmatprep.subr.mxu0 0.0
    %2528 = vmatpush2.msra.mxu0 0.0
    %2529 = vmatprep.subr.mxu0 0.0
    %2530 = vmatpush2.msra.mxu0 0.0
    %2531 = vmatprep.subr.mxu0 0.0
    %2532 = vmatpush2.msra.mxu0 0.0
    %2533 = vmatprep.subr.mxu0 0.0
    %2534 = vmatpush2.msra.mxu0 0.0
    %2535 = vmatprep.subr.mxu0 0.0
    %2536 = vmatpush2.msra.mxu0 0.0
    %2537 = vmatprep.subr.mxu0 0.0
    %2538 = vmatpush2.msra.mxu0 0.0
    %2539 = vmatprep.subr.mxu0 0.0
    %2540 = vmatpush2.msra.mxu0 0.0
    %2541 = vmatprep.subr.mxu0 0.0
    %2542 = vmatpush2.msra.mxu0 0.0
    %2543 = vmatprep.subr.mxu0 0.0
    %2544 = vmatpush2.msra.mxu0 0.0
    %2545 = vmatprep.subr.mxu0 0.0
    %2546 = vmatpush2.msra.mxu0 0.0
    %2547 = vmatprep.subr.mxu0 0.0
    %2548 = vmatpush2.msra.mxu0 0.0
    %2549 = vmatprep.subr.mxu0 0.0
    %2550 = vmatpush2.msra.mxu0 0.0
    %2551 = vmatprep.subr.mxu0 0.0
    %2552 = vmatpush2.msra.mxu0 0.0
    %2553 = vmatprep.mubr.f32.mxu0 0.0
    %2554 = vmatmul.mubr.f32.gmra.mxu0 %v1915
    %v2555 = vpop.f32.mrf.mxu0
    %v2556 = vadd.f32 0.0, %v2555
    %v2557 = vpop.f32.mrf.mxu0
    %2558 = vmatprep.mubr.f32.mxu0 0.0
    %2559 = vmatmul.mubr.f32.gmra.mxu0 %v1918
    %v2560 = vpop.f32.mrf.mxu0
    %v2561 = vadd.f32 0.0, %v2560
    %v2562 = vpop.f32.mrf.mxu0
    %2563 = vmatprep.mubr.f32.mxu0 0.0
    %2564 = vmatmul.mubr.f32.gmra.mxu0 %v1921
    %v2565 = vpop.f32.mrf.mxu0
    %v2566 = vadd.f32 0.0, %v2565
    %v2567 = vpop.f32.mrf.mxu0
    %2568 = vmatprep.mubr.f32.mxu0 0.0
    %2569 = vmatmul.mubr.f32.gmra.mxu0 %v1924
    %v2570 = vpop.f32.mrf.mxu0
    %v2571 = vadd.f32 0.0, %v2570
    %v2572 = vpop.f32.mrf.mxu0
    %2573 = vmatprep.mubr.f32.mxu0 0.0
    %2574 = vmatmul.mubr.f32.gmra.mxu0 %v1927
    %v2575 = vpop.f32.mrf.mxu0
    %v2576 = vadd.f32 0.0, %v2575
    %v2577 = vpop.f32.mrf.mxu0
    %2578 = vmatprep.mubr.f32.mxu0 0.0
    %2579 = vmatmul.mubr.f32.gmra.mxu0 %v1930
    %v2580 = vpop.f32.mrf.mxu0
    %v2581 = vadd.f32 0.0, %v2580
    %v2582 = vpop.f32.mrf.mxu0
    %2583 = vmatprep.mubr.f32.mxu0 0.0
    %2584 = vmatmul.mubr.f32.gmra.mxu0 %v1933
    %v2585 = vpop.f32.mrf.mxu0
    %v2586 = vadd.f32 0.0, %v2585
    %v2587 = vpop.f32.mrf.mxu0
    %2588 = vmatprep.mubr.f32.mxu0 0.0
    %2589 = vmatmul.mubr.f32.gmra.mxu0 %v1936
    %v2590 = vpop.f32.mrf.mxu0
    %v2591 = vadd.f32 0.0, %v2590
    %v2592 = vpop.f32.mrf.mxu0
    %2593 = vdwg.mxu0
    %v2595 = vsel %vm2450, %v2346, 0
    %v2598 = vsel %vm2450, %v2347, 0
    %v2601 = vsel %vm2450, %v2348, 0
    %v2604 = vsel %vm2450, %v2349, 0
    %v2607 = vsel %vm2450, %v2350, 0
    %v2610 = vsel %vm2450, %v2351, 0
    %v2613 = vsel %vm2450, %v2352, 0
    %v2616 = vsel %vm2450, %v2353, 0
    %2618 = vmatprep.subr.mxu0 0.0
    %2619 = vmatpush1.msra.mxu0 0.0
    %2620 = vmatprep.subr.mxu0 0.0
    %2621 = vmatpush1.msra.mxu0 0.0
    %2622 = vmatprep.subr.mxu0 0.0
    %2623 = vmatpush1.msra.mxu0 0.0
    %2624 = vmatprep.subr.mxu0 0.0
    %2625 = vmatpush1.msra.mxu0 0.0
    %2626 = vmatprep.subr.mxu0 0.0
    %2627 = vmatpush1.msra.mxu0 0.0
    %2628 = vmatprep.subr.mxu0 0.0
    %2629 = vmatpush1.msra.mxu0 0.0
    %2630 = vmatprep.subr.mxu0 0.0
    %2631 = vmatpush1.msra.mxu0 0.0
    %2632 = vmatprep.subr.mxu0 0.0
    %2633 = vmatpush1.msra.mxu0 0.0
    %2634 = vmatprep.subr.mxu0 0.0
    %2635 = vmatpush1.msra.mxu0 0.0
    %2636 = vmatprep.subr.mxu0 0.0
    %2637 = vmatpush1.msra.mxu0 0.0
    %2638 = vmatprep.subr.mxu0 0.0
    %2639 = vmatpush1.msra.mxu0 0.0
    %2640 = vmatprep.subr.mxu0 0.0
    %2641 = vmatpush1.msra.mxu0 0.0
    %2642 = vmatprep.subr.mxu0 0.0
    %2643 = vmatpush1.msra.mxu0 0.0
    %2644 = vmatprep.subr.mxu0 0.0
    %2645 = vmatpush1.msra.mxu0 0.0
    %2646 = vmatprep.subr.mxu0 0.0
    %2647 = vmatpush1.msra.mxu0 %v2484
    %2648 = vmatprep.subr.mxu0 0.0
    %2649 = vmatpush1.msra.mxu0 %v2483
    %2650 = vmatprep.subr.mxu0 0.0
    %2651 = vmatpush2.msra.mxu0 0.0
    %2652 = vmatprep.subr.mxu0 0.0
    %2653 = vmatpush2.msra.mxu0 0.0
    %2654 = vmatprep.subr.mxu0 0.0
    %2655 = vmatpush2.msra.mxu0 0.0
    %2656 = vmatprep.subr.mxu0 0.0
    %2657 = vmatpush2.msra.mxu0 0.0
    %2658 = vmatprep.subr.mxu0 0.0
    %2659 = vmatpush2.msra.mxu0 0.0
    %2660 = vmatprep.subr.mxu0 0.0
    %2661 = vmatpush2.msra.mxu0 0.0
    %2662 = vmatprep.subr.mxu0 0.0
    %2663 = vmatpush2.msra.mxu0 0.0
    %2664 = vmatprep.subr.mxu0 0.0
    %2665 = vmatpush2.msra.mxu0 0.0
    %2666 = vmatprep.subr.mxu0 0.0
    %2667 = vmatpush2.msra.mxu0 0.0
    %2668 = vmatprep.subr.mxu0 0.0
    %2669 = vmatpush2.msra.mxu0 0.0
    %2670 = vmatprep.subr.mxu0 0.0
    %2671 = vmatpush2.msra.mxu0 0.0
    %2672 = vmatprep.subr.mxu0 0.0
    %2673 = vmatpush2.msra.mxu0 0.0
    %2674 = vmatprep.subr.mxu0 0.0
    %2675 = vmatpush2.msra.mxu0 0.0
    %2676 = vmatprep.subr.mxu0 0.0
    %2677 = vmatpush2.msra.mxu0 0.0
    %2678 = vmatprep.subr.mxu0 0.0
    %2679 = vmatpush2.msra.mxu0 0.0
    %2680 = vmatprep.subr.mxu0 0.0
    %2681 = vmatpush2.msra.mxu0 0.0
    %2682 = vmatprep.mubr.f32.mxu0 0.0
    %2683 = vmatmul.mubr.f32.gmra.mxu0 %v2595
    %v2684 = vpop.f32.mrf.mxu0
    %v2685 = vadd.f32 %v2556, %v2684
    %v2686 = vpop.f32.mrf.mxu0
    %2687 = vmatprep.mubr.f32.mxu0 0.0
    %2688 = vmatmul.mubr.f32.gmra.mxu0 %v2598
    %v2689 = vpop.f32.mrf.mxu0
    %v2690 = vadd.f32 %v2561, %v2689
    %v2691 = vpop.f32.mrf.mxu0
    %2692 = vmatprep.mubr.f32.mxu0 0.0
    %2693 = vmatmul.mubr.f32.gmra.mxu0 %v2601
    %v2694 = vpop.f32.mrf.mxu0
    %v2695 = vadd.f32 %v2566, %v2694
    %v2696 = vpop.f32.mrf.mxu0
    %2697 = vmatprep.mubr.f32.mxu0 0.0
    %2698 = vmatmul.mubr.f32.gmra.mxu0 %v2604
    %v2699 = vpop.f32.mrf.mxu0
    %v2700 = vadd.f32 %v2571, %v2699
    %v2701 = vpop.f32.mrf.mxu0
    %2702 = vmatprep.mubr.f32.mxu0 0.0
    %2703 = vmatmul.mubr.f32.gmra.mxu0 %v2607
    %v2704 = vpop.f32.mrf.mxu0
    %v2705 = vadd.f32 %v2576, %v2704
    %v2706 = vpop.f32.mrf.mxu0
    %2707 = vmatprep.mubr.f32.mxu0 0.0
    %2708 = vmatmul.mubr.f32.gmra.mxu0 %v2610
    %v2709 = vpop.f32.mrf.mxu0
    %v2710 = vadd.f32 %v2581, %v2709
    %v2711 = vpop.f32.mrf.mxu0
    %2712 = vmatprep.mubr.f32.mxu0 0.0
    %2713 = vmatmul.mubr.f32.gmra.mxu0 %v2613
    %v2714 = vpop.f32.mrf.mxu0
    %v2715 = vadd.f32 %v2586, %v2714
    %v2716 = vpop.f32.mrf.mxu0
    %2717 = vmatprep.mubr.f32.mxu0 0.0
    %2718 = vmatmul.mubr.f32.gmra.mxu0 %v2616
    %v2719 = vpop.f32.mrf.mxu0
    %v2720 = vadd.f32 %v2591, %v2719
    %v2721 = vpop.f32.mrf.mxu0
    %2722 = vdwg.mxu0
    %v2723 = vld [vmem:[#allocation6 + $0x1f5] sm:$0x1]
    %v2724 = vlaneseq
    %v2725 = vshrl.u32 %v2724, 7
    %v2726 = vsub.s32 0, %v2725
    %v2727 = vrot.slane %v2723, %v2726
    %v2728 = vadd.f32 %v2685, %v2727
    %v2729 = vadd.f32 %v2690, %v2727
    %v2730 = vadd.f32 %v2695, %v2727
    %v2731 = vadd.f32 %v2700, %v2727
    %v2732 = vadd.f32 %v2705, %v2727
    %v2733 = vadd.f32 %v2710, %v2727
    %v2734 = vadd.f32 %v2715, %v2727
    %v2735 = vadd.f32 %v2720, %v2727
    %v2736 = vmax.f32 %v2728, 0.0
    %v2737 = vmax.f32 %v2729, 0.0
    %v2738 = vmax.f32 %v2730, 0.0
    %v2739 = vmax.f32 %v2731, 0.0
    %v2740 = vmax.f32 %v2732, 0.0
    %v2741 = vmax.f32 %v2733, 0.0
    %v2742 = vmax.f32 %v2734, 0.0
    %v2743 = vmax.f32 %v2735, 0.0
    %v2744 = vld [vmem:[#allocation6 + $0x1d0] sm:$0xff]
    %v2745 = vld [vmem:[#allocation6 + $0x1d8] sm:$0xff]
    %v2746 = vld [vmem:[#allocation6 + $0x1e0] sm:$0xff]
    %v2747 = vld [vmem:[#allocation6 + $0x1e8] sm:$0xff]
    %v2748 = vld [vmem:[#allocation6 + $0x1f6] sm:$0x1]
    %v2749 = vlaneseq
    %v2750 = vshrl.u32 %v2749, 7
    %v2751 = vsub.s32 0, %v2750
    %v2752 = vrot.slane %v2748, %v2751
    %v2754 = vsel %vm207, %v2736, 0
    %v2757 = vsel %vm207, %v2737, 0
    %v2760 = vsel %vm207, %v2738, 0
    %v2763 = vsel %vm207, %v2739, 0
    %v2766 = vsel %vm207, %v2740, 0
    %v2769 = vsel %vm207, %v2741, 0
    %v2772 = vsel %vm207, %v2742, 0
    %v2775 = vsel %vm207, %v2743, 0
    %2777 = vmatprep.subr.mxu0 0.0
    %2778 = vmatpush1.msra.mxu0 0.0
    %2779 = vmatprep.subr.mxu0 0.0
    %2780 = vmatpush1.msra.mxu0 0.0
    %2781 = vmatprep.subr.mxu0 0.0
    %2782 = vmatpush1.msra.mxu0 0.0
    %2783 = vmatprep.subr.mxu0 0.0
    %2784 = vmatpush1.msra.mxu0 0.0
    %2785 = vmatprep.subr.mxu0 0.0
    %2786 = vmatpush1.msra.mxu0 0.0
    %2787 = vmatprep.subr.mxu0 0.0
    %2788 = vmatpush1.msra.mxu0 0.0
    %2789 = vmatprep.subr.mxu0 0.0
    %2790 = vmatpush1.msra.mxu0 0.0
    %2791 = vmatprep.subr.mxu0 0.0
    %2792 = vmatpush1.msra.mxu0 0.0
    %2793 = vmatprep.subr.mxu0 0.0
    %2794 = vmatpush1.msra.mxu0 0.0
    %2795 = vmatprep.subr.mxu0 0.0
    %2796 = vmatpush1.msra.mxu0 0.0
    %2797 = vmatprep.subr.mxu0 0.0
    %2798 = vmatpush1.msra.mxu0 0.0
    %2799 = vmatprep.subr.mxu0 0.0
    %2800 = vmatpush1.msra.mxu0 0.0
    %2801 = vmatprep.subr.mxu0 0.0
    %2802 = vmatpush1.msra.mxu0 %v2747
    %2803 = vmatprep.subr.mxu0 0.0
    %2804 = vmatpush1.msra.mxu0 %v2746
    %2805 = vmatprep.subr.mxu0 0.0
    %2806 = vmatpush1.msra.mxu0 %v2745
    %2807 = vmatprep.subr.mxu0 0.0
    %2808 = vmatpush1.msra.mxu0 %v2744
    %2809 = vmatprep.subr.mxu0 0.0
    %2810 = vmatpush2.msra.mxu0 0.0
    %2811 = vmatprep.subr.mxu0 0.0
    %2812 = vmatpush2.msra.mxu0 0.0
    %2813 = vmatprep.subr.mxu0 0.0
    %2814 = vmatpush2.msra.mxu0 0.0
    %2815 = vmatprep.subr.mxu0 0.0
    %2816 = vmatpush2.msra.mxu0 0.0
    %2817 = vmatprep.subr.mxu0 0.0
    %2818 = vmatpush2.msra.mxu0 0.0
    %2819 = vmatprep.subr.mxu0 0.0
    %2820 = vmatpush2.msra.mxu0 0.0
    %2821 = vmatprep.subr.mxu0 0.0
    %2822 = vmatpush2.msra.mxu0 0.0
    %2823 = vmatprep.subr.mxu0 0.0
    %2824 = vmatpush2.msra.mxu0 0.0
    %2825 = vmatprep.subr.mxu0 0.0
    %2826 = vmatpush2.msra.mxu0 0.0
    %2827 = vmatprep.subr.mxu0 0.0
    %2828 = vmatpush2.msra.mxu0 0.0
    %2829 = vmatprep.subr.mxu0 0.0
    %2830 = vmatpush2.msra.mxu0 0.0
    %2831 = vmatprep.subr.mxu0 0.0
    %2832 = vmatpush2.msra.mxu0 0.0
    %2833 = vmatprep.subr.mxu0 0.0
    %2834 = vmatpush2.msra.mxu0 0.0
    %2835 = vmatprep.subr.mxu0 0.0
    %2836 = vmatpush2.msra.mxu0 0.0
    %2837 = vmatprep.subr.mxu0 0.0
    %2838 = vmatpush2.msra.mxu0 0.0
    %2839 = vmatprep.subr.mxu0 0.0
    %2840 = vmatpush2.msra.mxu0 0.0
    %2841 = vmatprep.mubr.f32.mxu0 0.0
    %2842 = vmatmul.mubr.f32.gmra.mxu0 %v2754
    %v2843 = vpop.f32.mrf.mxu0
    %v2844 = vadd.f32 %v2752, %v2843
    %v2845 = vpop.f32.mrf.mxu0
    %2846 = vmatprep.mubr.f32.mxu0 0.0
    %2847 = vmatmul.mubr.f32.gmra.mxu0 %v2757
    %v2848 = vpop.f32.mrf.mxu0
    %v2849 = vadd.f32 %v2752, %v2848
    %v2850 = vpop.f32.mrf.mxu0
    %2851 = vmatprep.mubr.f32.mxu0 0.0
    %2852 = vmatmul.mubr.f32.gmra.mxu0 %v2760
    %v2853 = vpop.f32.mrf.mxu0
    %v2854 = vadd.f32 %v2752, %v2853
    %v2855 = vpop.f32.mrf.mxu0
    %2856 = vmatprep.mubr.f32.mxu0 0.0
    %2857 = vmatmul.mubr.f32.gmra.mxu0 %v2763
    %v2858 = vpop.f32.mrf.mxu0
    %v2859 = vadd.f32 %v2752, %v2858
    %v2860 = vpop.f32.mrf.mxu0
    %2861 = vmatprep.mubr.f32.mxu0 0.0
    %2862 = vmatmul.mubr.f32.gmra.mxu0 %v2766
    %v2863 = vpop.f32.mrf.mxu0
    %v2864 = vadd.f32 %v2752, %v2863
    %v2865 = vpop.f32.mrf.mxu0
    %2866 = vmatprep.mubr.f32.mxu0 0.0
    %2867 = vmatmul.mubr.f32.gmra.mxu0 %v2769
    %v2868 = vpop.f32.mrf.mxu0
    %v2869 = vadd.f32 %v2752, %v2868
    %v2870 = vpop.f32.mrf.mxu0
    %2871 = vmatprep.mubr.f32.mxu0 0.0
    %2872 = vmatmul.mubr.f32.gmra.mxu0 %v2772
    %v2873 = vpop.f32.mrf.mxu0
    %v2874 = vadd.f32 %v2752, %v2873
    %v2875 = vpop.f32.mrf.mxu0
    %2876 = vmatprep.mubr.f32.mxu0 0.0
    %2877 = vmatmul.mubr.f32.gmra.mxu0 %v2775
    %v2878 = vpop.f32.mrf.mxu0
    %v2879 = vadd.f32 %v2752, %v2878
    %v2880 = vpop.f32.mrf.mxu0
    %2881 = vdwg.mxu0
    %v2882 = vxor.u32 %v2844, 2147483648
    %v2883 = vxor.u32 %v2849, 2147483648
    %v2884 = vxor.u32 %v2854, 2147483648
    %v2885 = vxor.u32 %v2859, 2147483648
    %v2886 = vxor.u32 %v2864, 2147483648
    %v2887 = vxor.u32 %v2869, 2147483648
    %v2888 = vxor.u32 %v2874, 2147483648
    %v2889 = vxor.u32 %v2879, 2147483648
    %v2890 = vmul.f32 %v2882, 1.442695
    %v2891 = vpow.pop %v2890
    %v2892 = vmul.f32 %v2883, 1.442695
    %v2893 = vpow.pop %v2892
    %v2894 = vmul.f32 %v2884, 1.442695
    %v2895 = vpow.pop %v2894
    %v2896 = vmul.f32 %v2885, 1.442695
    %v2897 = vpow.pop %v2896
    %v2898 = vmul.f32 %v2886, 1.442695
    %v2899 = vpow.pop %v2898
    %v2900 = vmul.f32 %v2887, 1.442695
    %v2901 = vpow.pop %v2900
    %v2902 = vmul.f32 %v2888, 1.442695
    %v2903 = vpow.pop %v2902
    %v2904 = vmul.f32 %v2889, 1.442695
    %v2905 = vpow.pop %v2904
    %v2906 = vadd.f32 %v2891, 1.0
    %v2907 = vadd.f32 %v2893, 1.0
    %v2908 = vadd.f32 %v2895, 1.0
    %v2909 = vadd.f32 %v2897, 1.0
    %v2910 = vadd.f32 %v2899, 1.0
    %v2911 = vadd.f32 %v2901, 1.0
    %v2912 = vadd.f32 %v2903, 1.0
    %v2913 = vadd.f32 %v2905, 1.0
    %v2914 = vrcp.pop %v2906
    %v2915 = vmul.f32 1.0, %v2914
    %v2916 = vrcp.pop %v2907
    %v2917 = vmul.f32 1.0, %v2916
    %v2918 = vrcp.pop %v2908
    %v2919 = vmul.f32 1.0, %v2918
    %v2920 = vrcp.pop %v2909
    %v2921 = vmul.f32 1.0, %v2920
    %v2922 = vrcp.pop %v2910
    %v2923 = vmul.f32 1.0, %v2922
    %v2924 = vrcp.pop %v2911
    %v2925 = vmul.f32 1.0, %v2924
    %v2926 = vrcp.pop %v2912
    %v2927 = vmul.f32 1.0, %v2926
    %v2928 = vrcp.pop %v2913
    %v2929 = vmul.f32 1.0, %v2928
    %2938 = vrot.lane.b32.xlu0 %v2915, 16
    %v2939 = vpop.permute.xlu0 %2938
    %2940 = vrot.lane.b32.xlu0 %v2917, 16
    %v2941 = vpop.permute.xlu0 %2940
    %2942 = vrot.lane.b32.xlu0 %v2919, 16
    %v2943 = vpop.permute.xlu0 %2942
    %2944 = vrot.lane.b32.xlu0 %v2921, 16
    %v2945 = vpop.permute.xlu0 %2944
    %2946 = vrot.lane.b32.xlu0 %v2923, 16
    %v2947 = vpop.permute.xlu0 %2946
    %2948 = vrot.lane.b32.xlu0 %v2925, 16
    %v2949 = vpop.permute.xlu0 %2948
    %2950 = vrot.lane.b32.xlu0 %v2927, 16
    %v2951 = vpop.permute.xlu0 %2950
    %2952 = vrot.lane.b32.xlu0 %v2929, 16
    %v2953 = vpop.permute.xlu0 %2952
    %v2962 = vsel %vm2450, %v2346, %v2939
    %v2963 = vsel %vm2450, %v2347, %v2941
    %v2964 = vsel %vm2450, %v2348, %v2943
    %v2965 = vsel %vm2450, %v2349, %v2945
    %v2966 = vsel %vm2450, %v2350, %v2947
    %v2967 = vsel %vm2450, %v2351, %v2949
    %v2968 = vsel %vm2450, %v2352, %v2951
    %v2969 = vsel %vm2450, %v2353, %v2953
    %vm2970 = vcmask 162816
    %v2971 = vsel %vm2970, %v2962, %v2475
    %v2972 = vsel %vm2970, %v2963, %v2476
    %v2973 = vsel %vm2970, %v2964, %v2477
    %v2974 = vsel %vm2970, %v2965, %v2478
    %v2975 = vsel %vm2970, %v2966, %v2479
    %v2976 = vsel %vm2970, %v2967, %v2480
    %v2977 = vsel %vm2970, %v2968, %v2481
    %v2978 = vsel %vm2970, %v2969, %v2482
    %vm2979 = vcmask 171008
    %v2980 = vsel %vm2979, %v2971, 0.0
    %v2981 = vsel %vm2979, %v2972, 0.0
    %v2982 = vsel %vm2979, %v2973, 0.0
    %v2983 = vsel %vm2979, %v2974, 0.0
    %v2984 = vsel %vm2979, %v2975, 0.0
    %v2985 = vsel %vm2979, %v2976, 0.0
    %v2986 = vsel %vm2979, %v2977, 0.0
    %v2987 = vsel %vm2979, %v2978, 0.0
    %2988 = vst [vmem:[%s3] sm:$0xff] %v2980
    %2989 = vst [vmem:[%s3 + $0x8] sm:$0xff] %v2981
    %2990 = vst [vmem:[%s3 + $0x10] sm:$0xff] %v2982
    %2991 = vst [vmem:[%s3 + $0x18] sm:$0xff] %v2983
    %2992 = vst [vmem:[%s3 + $0x20] sm:$0xff] %v2984
    %2993 = vst [vmem:[%s3 + $0x28] sm:$0xff] %v2985
    %2994 = vst [vmem:[%s3 + $0x30] sm:$0xff] %v2986
    %2995 = vst [vmem:[%s3 + $0x38] sm:$0xff] %v2987
    // Predicated region
    $region26: #{forward_sequence.1} parent=1 // pred_check
      _
    $region27: #{forward_sequence.1} parent=1 // pred_check_branch
      %2997 = sbr.rel (0) target = $region29
    $region28: #{forward_sequence.1} parent=1 // pred_region
      _
    $region29: #{forward_sequence.1} parent=1 // pred_fallthru
      _
    // Predicated region
    $region30: #{forward_sequence.1} parent=1 // pred_check
      _
    $region31: #{forward_sequence.1} parent=1 // pred_check_branch
      %2999 = sbr.rel (0) target = $region33
    $region32: #{forward_sequence.1} parent=1 // pred_region
      _
    $region33: #{forward_sequence.1} parent=1 // pred_fallthru
      _
    // Predicated region
    $region34: #{forward_sequence.1} parent=1 // pred_check
      _
    $region35: #{forward_sequence.1} parent=1 // pred_check_branch
      %3001 = sbr.rel (0) target = $region37
    $region36: #{forward_sequence.1} parent=1 // pred_region
      _
    $region37: #{forward_sequence.1} parent=1 // pred_fallthru
      _
    // Predicated region
    $region38: #{forward_sequence.1} parent=1 // pred_check
      _
    $region39: #{forward_sequence.1} parent=1 // pred_check_branch
      %3003 = sbr.rel (0) target = $region41
    $region40: #{forward_sequence.1} parent=1 // pred_region
      _
    $region41: #{forward_sequence.1} parent=1 // pred_fallthru
      _
    %3004 = vsyncpa [#allocation3], 1
    %3005 = vsyncpa [#allocation5], 1

</llo_original>
